<compile_context>
chip_gen: v5e
topology: v5e:2x2
jax: 0.10.0
libtpu: 0.0.40
codegen_flags: <defaults>
</compile_context>

<pallas_src>
import functools

import jax
import jax.numpy as jnp
from jax.experimental import pallas as pl
from jax.experimental.pallas import tpu as pltpu

# ---- small synthetic config (TERA-like, scaled down) ----
FRAME = 256        # samples per frame (stand-in for the fbank feature dim)
HIDDEN = 32        # hidden size
NUM_HEADS = 4
HEAD_DIM = HIDDEN // NUM_HEADS
FFN = 64           # feed-forward inner size
NUM_LAYERS = 3     # tera_100hr has 3 encoder layers
LN_EPS = 1e-12


# ---------------------------------------------------------------------------
# In-kernel helpers
# ---------------------------------------------------------------------------
def _layer_norm(x, gamma, beta):
    mean = jnp.mean(x, axis=-1, keepdims=True)
    var = jnp.mean((x - mean) ** 2, axis=-1, keepdims=True)
    inv = jax.lax.rsqrt(var + LN_EPS)
    return (x - mean) * inv * gamma + beta


def _split_heads(x):
    # (T, H) -> (NH, T, HD) via static lane slices + a major-dim stack
    # (avoids a sublane/lane-mixing reshape; trivial Mosaic lowering).
    return jnp.stack(
        [x[:, h * HEAD_DIM:(h + 1) * HEAD_DIM] for h in range(NUM_HEADS)],
        axis=0)


def _flatten_rows(x, rows):
    # (rows, H) -> (1, rows*H) lane-dense flatten via sublane slices + one
    # lane concatenate (keeps the output store an unmasked, 128-lane-aligned
    # vst without relying on a lane-merging reshape).
    return jnp.concatenate([x[r:r + 1, :] for r in range(rows)], axis=1)


# ---------------------------------------------------------------------------
# Fused Pallas kernel: input proj + positions + all encoder layers
# ---------------------------------------------------------------------------
def _fused_tera_kernel(
    feats_ref, pos_ref, w_in_ref, b_in_ref,
    wqkv_ref, bqkv_ref, wo_ref, bo_ref,
    ln1g_ref, ln1b_ref, w1_ref, b1_ref, w2_ref, b2_ref, ln2g_ref, ln2b_ref,
    o_ref, *, seq, out_stages,
):
    # One grid step == one batch element. feats_ref: (1, T, FRAME) bf16;
    # pos_ref: (T, H) f32; weights bf16, biases/LN params f32; stacked
    # per-layer weights are indexed with static l (cheap static slices).
    bf16 = jnp.bfloat16

    def maybe_store(stage, x):
        # out_stages is a static tuple of selected hidden_state indices.
        # Lane-dense store: (T, H) -> (1, T*H), last dim multiple of 128.
        for slot, sel in enumerate(out_stages):
            if sel == stage:
                o_ref[0, slot:slot + 1, :] = _flatten_rows(x, seq)

    # ---- input projection + positional encoding (hidden_states[0]) ----
    x = (
        jnp.dot(feats_ref[0], w_in_ref[...], preferred_element_type=jnp.float32)
        + b_in_ref[...]
    )
    x = x + pos_ref[...]                                   # (T, H) f32
    maybe_store(0, x)

    for l in range(NUM_LAYERS):
        # ---- fused QKV: one (T, H) x (H, 3H) bf16 matmul, f32 accum ----
        # (the 1/sqrt(HEAD_DIM) scale is pre-folded into the Q columns).
        qkv = (
            jnp.dot(x.astype(bf16), wqkv_ref[l],
                    preferred_element_type=jnp.float32)
            + bqkv_ref[l]
        )                                                  # (T, 3H) f32
        qh = _split_heads(qkv[:, :HIDDEN]).astype(bf16)            # (NH, T, HD)
        kh = _split_heads(qkv[:, HIDDEN:2 * HIDDEN]).astype(bf16)
        vh = _split_heads(qkv[:, 2 * HIDDEN:]).astype(bf16)

        # ---- head-batched attention: two batched dot_generals per layer ----
        # TODO(synk): for realistic TERA sequence lengths this should become a
        # KV-tiled online softmax (flash pattern) instead of full (NH, T, T).
        s = jnp.einsum('hqd,hkd->hqk', qh, kh,
                       preferred_element_type=jnp.float32)         # (NH, T, T)
        s = s - jnp.max(s, axis=-1, keepdims=True)
        p = jnp.exp(s)
        p = p * pl.reciprocal(jnp.sum(p, axis=-1, keepdims=True), approx=True)
        ctx = jnp.einsum('hqk,hkd->hqd', p.astype(bf16), vh,
                         preferred_element_type=jnp.float32)       # (NH, T, HD)
        # merge heads back onto lanes, then ONE (T, H) x (H, H) output proj
        ctx = jnp.concatenate([ctx[h] for h in range(NUM_HEADS)], axis=1)
        attn = (
            jnp.dot(ctx.astype(bf16), wo_ref[l],
                    preferred_element_type=jnp.float32)
            + bo_ref[l]
        )

        h1 = _layer_norm(x + attn, ln1g_ref[l], ln1b_ref[l])

        ff = (jnp.dot(h1.astype(bf16), w1_ref[l],
                      preferred_element_type=jnp.float32) + b1_ref[l])
        # TODO(synk): torch/s3prl uses exact erf-based GELU; tanh approximation
        # is used here for a guaranteed EUP lowering.
        ff = jax.nn.gelu(ff, approximate=True)
        ff = (jnp.dot(ff.astype(bf16), w2_ref[l],
                      preferred_element_type=jnp.float32) + b2_ref[l])

        x = _layer_norm(h1 + ff, ln2g_ref[l], ln2b_ref[l])
        maybe_store(l + 1, x)


def _rep_spec(shape):
    # Replicated (grid-invariant) block spec: constant index_map keeps the
    # block VMEM-resident across grid steps (no re-DMA).
    nd = len(shape)
    return pl.BlockSpec(shape, lambda i, _nd=nd: (0,) * _nd)


def _prep_params(params):
    # Static param prep (zero runtime cost): fold the softmax scale into the
    # Q columns of the fused QKV weight/bias and cast matmul weights to bf16
    # (accumulation stays f32 in-kernel). Biases/LN params stay f32.
    scale = 1.0 / (HEAD_DIM ** 0.5)
    wqkv = params["wqkv"].at[:, :, :HIDDEN].multiply(scale)
    bqkv = params["bqkv"].at[:, :, :HIDDEN].multiply(scale)
    prepped = dict(params)
    prepped["wqkv"] = wqkv.astype(jnp.bfloat16)
    prepped["bqkv"] = bqkv
    for name in ("w_in", "wo", "w1", "w2"):
        prepped[name] = params[name].astype(jnp.bfloat16)
    return prepped


def tera_forward(wavs, params, layers=(-1,)):
    """wavs: (B, samples) float32 — equivalent to the list-of-tensors input.

    Returns (len(layers), B, T, HIDDEN), matching torch.stack(selected, dim=0).
    """
    # TODO(synk): real s3prl TERA pads variable-length waveforms and masks
    # attention; here trailing samples are truncated and attention is unmasked.
    b, s = wavs.shape
    t = s // FRAME
    feats = wavs[:, : t * FRAME].reshape(b, t, FRAME).astype(jnp.bfloat16)
    pos = sinusoidal_positions(t, HIDDEN)                     # (T, H) f32

    n_states = NUM_LAYERS + 1
    out_stages = tuple(int(l) % n_states for l in layers)     # normalize -1
    l_out = len(out_stages)

    p = _prep_params(params)
    kernel = functools.partial(
        _fused_tera_kernel, seq=t, out_stages=out_stages)

    in_specs = [
        pl.BlockSpec((1, t, FRAME), lambda i: (i, 0, 0)),     # feats (per batch)
        _rep_spec((t, HIDDEN)),                               # pos
        _rep_spec((FRAME, HIDDEN)),                           # w_in (bf16)
        _rep_spec((1, HIDDEN)),                               # b_in
        _rep_spec((NUM_LAYERS, HIDDEN, 3 * HIDDEN)),          # wqkv (bf16)
        _rep_spec((NUM_LAYERS, 1, 3 * HIDDEN)),               # bqkv
        _rep_spec((NUM_LAYERS, HIDDEN, HIDDEN)),              # wo (bf16)
        _rep_spec((NUM_LAYERS, 1, HIDDEN)),                   # bo
        _rep_spec((NUM_LAYERS, 1, HIDDEN)),                   # ln1_g
        _rep_spec((NUM_LAYERS, 1, HIDDEN)),                   # ln1_b
        _rep_spec((NUM_LAYERS, HIDDEN, FFN)),                 # w1 (bf16)
        _rep_spec((NUM_LAYERS, 1, FFN)),                      # b1
        _rep_spec((NUM_LAYERS, FFN, HIDDEN)),                 # w2 (bf16)
        _rep_spec((NUM_LAYERS, 1, HIDDEN)),                   # b2
        _rep_spec((NUM_LAYERS, 1, HIDDEN)),                   # ln2_g
        _rep_spec((NUM_LAYERS, 1, HIDDEN)),                   # ln2_b
    ]

    out = pl.pallas_call(
        kernel,
        # Lane-dense output: last dim t*HIDDEN (=256 here) is a multiple of 128.
        out_shape=jax.ShapeDtypeStruct((b, l_out, t * HIDDEN), jnp.float32),
        grid=(b,),
        in_specs=in_specs,
        out_specs=pl.BlockSpec((1, l_out, t * HIDDEN), lambda i: (i, 0, 0)),
        compiler_params=pltpu.CompilerParams(
            dimension_semantics=("parallel",)),   # both TensorCores on v7x
    )(
        feats, pos, p["w_in"], p["b_in"],
        p["wqkv"], p["bqkv"], p["wo"], p["bo"],
        p["ln1_g"], p["ln1_b"], p["w1"], p["b1"],
        p["w2"], p["b2"], p["ln2_g"], p["ln2_b"],
    )

    # wrapper-side layout plumbing: (B, L_sel, T*H) -> (L_sel, B, T, H)
    return out.reshape(b, l_out, t, HIDDEN).transpose(1, 0, 2, 3)


# ---------------------------------------------------------------------------
# Parameter init (deterministic) & glue
# ---------------------------------------------------------------------------
def sinusoidal_positions(t, h):
    pos = jnp.arange(t, dtype=jnp.float32)[:, None]
    i = jnp.arange(h, dtype=jnp.float32)[None, :]
    angle = pos / jnp.power(10000.0, (2.0 * jnp.floor(i / 2.0)) / h)
    return jnp.where((jnp.arange(h) % 2) == 0, jnp.sin(angle), jnp.cos(angle))


def init_params(key):
    keys = jax.random.split(key, 1 + NUM_LAYERS)
    params = {
        "w_in": jax.random.normal(keys[0], (FRAME, HIDDEN), jnp.float32) * 0.02,
        "b_in": jnp.zeros((1, HIDDEN), jnp.float32),
    }
    wqkv, bqkv, wo, bo = [], [], [], []
    ln1_g, ln1_b, w1, b1, w2, b2, ln2_g, ln2_b = [], [], [], [], [], [], [], []
    for li in range(NUM_LAYERS):
        ks = jax.random.split(keys[1 + li], 6)
        wq = jax.random.normal(ks[0], (HIDDEN, HIDDEN), jnp.float32) * 0.02
        wk = jax.random.normal(ks[1], (HIDDEN, HIDDEN), jnp.float32) * 0.02
        wv = jax.random.normal(ks[2], (HIDDEN, HIDDEN), jnp.float32) * 0.02
        wqkv.append(jnp.concatenate([wq, wk, wv], axis=1))          # (H, 3H)
        bqkv.append(jnp.zeros((1, 3 * HIDDEN), jnp.float32))
        wo.append(jax.random.normal(ks[3], (HIDDEN, HIDDEN), jnp.float32) * 0.02)
        bo.append(jnp.zeros((1, HIDDEN), jnp.float32))
        ln1_g.append(jnp.ones((1, HIDDEN), jnp.float32))
        ln1_b.append(jnp.zeros((1, HIDDEN), jnp.float32))
        w1.append(jax.random.normal(ks[4], (HIDDEN, FFN), jnp.float32) * 0.02)
        b1.append(jnp.zeros((1, FFN), jnp.float32))
        w2.append(jax.random.normal(ks[5], (FFN, HIDDEN), jnp.float32) * 0.02)
        b2.append(jnp.zeros((1, HIDDEN), jnp.float32))
        ln2_g.append(jnp.ones((1, HIDDEN), jnp.float32))
        ln2_b.append(jnp.zeros((1, HIDDEN), jnp.float32))
    params.update({
        "wqkv": jnp.stack(wqkv), "bqkv": jnp.stack(bqkv),
        "wo": jnp.stack(wo), "bo": jnp.stack(bo),
        "ln1_g": jnp.stack(ln1_g), "ln1_b": jnp.stack(ln1_b),
        "w1": jnp.stack(w1), "b1": jnp.stack(b1),
        "w2": jnp.stack(w2), "b2": jnp.stack(b2),
        "ln2_g": jnp.stack(ln2_g), "ln2_b": jnp.stack(ln2_b),
    })
    return params


if __name__ == "__main__":
    key = jax.random.PRNGKey(0)
    pkey, wkey = jax.random.split(key)
    params = init_params(pkey)

    batch, samples = 2, 8 * FRAME  # -> T = 8 frames
    wavs = jax.random.normal(wkey, (batch, samples), jnp.float32)

    out = tera_forward(wavs, params, layers=(-1,))
    out = jax.block_until_ready(out)

    assert out.shape == (1, batch, samples // FRAME, HIDDEN), out.shape
    assert bool(jnp.all(jnp.isfinite(out)))
    print("KERNEL_OK")
</pallas_src>

<mosaic_0001>
module attributes {stable_mosaic.version = 11 : i64} {
  func.func @_fused_tera_kernel(%arg0: i32, %arg1: memref<1x8x256xbf16, #tpu.memory_space<vmem>>, %arg2: memref<8x32xf32, #tpu.memory_space<vmem>>, %arg3: memref<256x32xbf16, #tpu.memory_space<vmem>>, %arg4: memref<1x32xf32, #tpu.memory_space<vmem>>, %arg5: memref<3x32x96xbf16, #tpu.memory_space<vmem>>, %arg6: memref<3x1x96xf32, #tpu.memory_space<vmem>>, %arg7: memref<3x32x32xbf16, #tpu.memory_space<vmem>>, %arg8: memref<3x1x32xf32, #tpu.memory_space<vmem>>, %arg9: memref<3x1x32xf32, #tpu.memory_space<vmem>>, %arg10: memref<3x1x32xf32, #tpu.memory_space<vmem>>, %arg11: memref<3x32x64xbf16, #tpu.memory_space<vmem>>, %arg12: memref<3x1x64xf32, #tpu.memory_space<vmem>>, %arg13: memref<3x64x32xbf16, #tpu.memory_space<vmem>>, %arg14: memref<3x1x32xf32, #tpu.memory_space<vmem>>, %arg15: memref<3x1x32xf32, #tpu.memory_space<vmem>>, %arg16: memref<3x1x32xf32, #tpu.memory_space<vmem>>, %arg17: memref<1x1x256xf32, #tpu.memory_space<vmem>>) attributes {dimension_semantics = [#tpu.dimension_semantics<parallel>], iteration_bounds = array<i64: 2>, scalar_prefetch = 0 : i64, scratch_operands = 0 : i64, tpu.core_type = #tpu.core_type<tc>, window_params = [{transform_indices = @transform_0, window_bounds = array<i64: 1, 8, 256>}, {pipeline_mode = #tpu.pipeline_mode<synchronous>, transform_indices = @transform_1, window_bounds = array<i64: 8, 32>}, {pipeline_mode = #tpu.pipeline_mode<synchronous>, transform_indices = @transform_2, window_bounds = array<i64: 256, 32>}, {pipeline_mode = #tpu.pipeline_mode<synchronous>, transform_indices = @transform_3, window_bounds = array<i64: 1, 32>}, {pipeline_mode = #tpu.pipeline_mode<synchronous>, transform_indices = @transform_4, window_bounds = array<i64: 3, 32, 96>}, {pipeline_mode = #tpu.pipeline_mode<synchronous>, transform_indices = @transform_5, window_bounds = array<i64: 3, 1, 96>}, {pipeline_mode = #tpu.pipeline_mode<synchronous>, transform_indices = @transform_6, window_bounds = array<i64: 3, 32, 32>}, {pipeline_mode = #tpu.pipeline_mode<synchronous>, transform_indices = @transform_7, window_bounds = array<i64: 3, 1, 32>}, {pipeline_mode = #tpu.pipeline_mode<synchronous>, transform_indices = @transform_8, window_bounds = array<i64: 3, 1, 32>}, {pipeline_mode = #tpu.pipeline_mode<synchronous>, transform_indices = @transform_9, window_bounds = array<i64: 3, 1, 32>}, {pipeline_mode = #tpu.pipeline_mode<synchronous>, transform_indices = @transform_10, window_bounds = array<i64: 3, 32, 64>}, {pipeline_mode = #tpu.pipeline_mode<synchronous>, transform_indices = @transform_11, window_bounds = array<i64: 3, 1, 64>}, {pipeline_mode = #tpu.pipeline_mode<synchronous>, transform_indices = @transform_12, window_bounds = array<i64: 3, 64, 32>}, {pipeline_mode = #tpu.pipeline_mode<synchronous>, transform_indices = @transform_13, window_bounds = array<i64: 3, 1, 32>}, {pipeline_mode = #tpu.pipeline_mode<synchronous>, transform_indices = @transform_14, window_bounds = array<i64: 3, 1, 32>}, {pipeline_mode = #tpu.pipeline_mode<synchronous>, transform_indices = @transform_15, window_bounds = array<i64: 3, 1, 32>}, {transform_indices = @transform_16, window_bounds = array<i64: 1, 1, 256>}]} {
    %c0 = arith.constant 0 : index
    %c0_0 = arith.constant 0 : index
    %c0_1 = arith.constant 0 : index
    %0 = vector.load %arg1[%c0, %c0_0, %c0_1] : memref<1x8x256xbf16, #tpu.memory_space<vmem>>, vector<1x8x256xbf16>
    %1 = vector.shape_cast %0 : vector<1x8x256xbf16> to vector<8x256xbf16>
    %c0_2 = arith.constant 0 : index
    %c0_3 = arith.constant 0 : index
    %2 = vector.load %arg3[%c0_2, %c0_3] : memref<256x32xbf16, #tpu.memory_space<vmem>>, vector<256x32xbf16>
    %cst = arith.constant dense<0.000000e+00> : vector<8x32xf32>
    %3 = tpu.matmul %1, %2, %cst {dimension_numbers = #tpu.dot_dimension_numbers<[1], [0], [0], [1], [0, 0, 1, 1], [], []>} : vector<8x256xbf16>, vector<256x32xbf16>, vector<8x32xf32> -> vector<8x32xf32>
    %c0_4 = arith.constant 0 : index
    %c0_5 = arith.constant 0 : index
    %4 = vector.load %arg4[%c0_4, %c0_5] : memref<1x32xf32, #tpu.memory_space<vmem>>, vector<1x32xf32>
    %5 = vector.broadcast %4 : vector<1x32xf32> to vector<8x32xf32>
    %6 = arith.addf %3, %5 : vector<8x32xf32>
    %c0_6 = arith.constant 0 : index
    %c0_7 = arith.constant 0 : index
    %7 = vector.load %arg2[%c0_6, %c0_7] : memref<8x32xf32, #tpu.memory_space<vmem>>, vector<8x32xf32>
    %8 = arith.addf %6, %7 : vector<8x32xf32>
    %9 = arith.truncf %8 : vector<8x32xf32> to vector<8x32xbf16>
    %c0_8 = arith.constant 0 : index
    %c0_9 = arith.constant 0 : index
    %c0_10 = arith.constant 0 : index
    %10 = vector.load %arg5[%c0_8, %c0_9, %c0_10] : memref<3x32x96xbf16, #tpu.memory_space<vmem>>, vector<1x32x96xbf16>
    %11 = vector.shape_cast %10 : vector<1x32x96xbf16> to vector<32x96xbf16>
    %cst_11 = arith.constant dense<0.000000e+00> : vector<8x96xf32>
    %12 = tpu.matmul %9, %11, %cst_11 {dimension_numbers = #tpu.dot_dimension_numbers<[1], [0], [0], [1], [0, 0, 1, 1], [], []>} : vector<8x32xbf16>, vector<32x96xbf16>, vector<8x96xf32> -> vector<8x96xf32>
    %c0_12 = arith.constant 0 : index
    %c0_13 = arith.constant 0 : index
    %c0_14 = arith.constant 0 : index
    %13 = vector.load %arg6[%c0_12, %c0_13, %c0_14] : memref<3x1x96xf32, #tpu.memory_space<vmem>>, vector<1x1x96xf32>
    %14 = vector.shape_cast %13 : vector<1x1x96xf32> to vector<1x96xf32>
    %15 = vector.broadcast %14 : vector<1x96xf32> to vector<8x96xf32>
    %16 = arith.addf %12, %15 : vector<8x96xf32>
    %17 = vector.extract_strided_slice %16 {offsets = [0, 0], sizes = [8, 32], strides = [1, 1]} : vector<8x96xf32> to vector<8x32xf32>
    %18 = vector.extract_strided_slice %17 {offsets = [0, 0], sizes = [8, 8], strides = [1, 1]} : vector<8x32xf32> to vector<8x8xf32>
    %19 = vector.extract_strided_slice %17 {offsets = [0, 8], sizes = [8, 8], strides = [1, 1]} : vector<8x32xf32> to vector<8x8xf32>
    %20 = vector.extract_strided_slice %17 {offsets = [0, 16], sizes = [8, 8], strides = [1, 1]} : vector<8x32xf32> to vector<8x8xf32>
    %21 = vector.extract_strided_slice %17 {offsets = [0, 24], sizes = [8, 8], strides = [1, 1]} : vector<8x32xf32> to vector<8x8xf32>
    %22 = vector.shape_cast %18 : vector<8x8xf32> to vector<1x8x8xf32>
    %23 = vector.shape_cast %19 : vector<8x8xf32> to vector<1x8x8xf32>
    %24 = vector.shape_cast %20 : vector<8x8xf32> to vector<1x8x8xf32>
    %25 = vector.shape_cast %21 : vector<8x8xf32> to vector<1x8x8xf32>
    %26 = tpu.concatenate %22, %23, %24, %25 in 0 : vector<1x8x8xf32>, vector<1x8x8xf32>, vector<1x8x8xf32>, vector<1x8x8xf32> -> vector<4x8x8xf32>
    %27 = arith.truncf %26 : vector<4x8x8xf32> to vector<4x8x8xbf16>
    %28 = vector.extract_strided_slice %16 {offsets = [0, 32], sizes = [8, 32], strides = [1, 1]} : vector<8x96xf32> to vector<8x32xf32>
    %29 = vector.extract_strided_slice %28 {offsets = [0, 0], sizes = [8, 8], strides = [1, 1]} : vector<8x32xf32> to vector<8x8xf32>
    %30 = vector.extract_strided_slice %28 {offsets = [0, 8], sizes = [8, 8], strides = [1, 1]} : vector<8x32xf32> to vector<8x8xf32>
    %31 = vector.extract_strided_slice %28 {offsets = [0, 16], sizes = [8, 8], strides = [1, 1]} : vector<8x32xf32> to vector<8x8xf32>
    %32 = vector.extract_strided_slice %28 {offsets = [0, 24], sizes = [8, 8], strides = [1, 1]} : vector<8x32xf32> to vector<8x8xf32>
    %33 = vector.shape_cast %29 : vector<8x8xf32> to vector<1x8x8xf32>
    %34 = vector.shape_cast %30 : vector<8x8xf32> to vector<1x8x8xf32>
    %35 = vector.shape_cast %31 : vector<8x8xf32> to vector<1x8x8xf32>
    %36 = vector.shape_cast %32 : vector<8x8xf32> to vector<1x8x8xf32>
    %37 = tpu.concatenate %33, %34, %35, %36 in 0 : vector<1x8x8xf32>, vector<1x8x8xf32>, vector<1x8x8xf32>, vector<1x8x8xf32> -> vector<4x8x8xf32>
    %38 = arith.truncf %37 : vector<4x8x8xf32> to vector<4x8x8xbf16>
    %39 = vector.extract_strided_slice %16 {offsets = [0, 64], sizes = [8, 32], strides = [1, 1]} : vector<8x96xf32> to vector<8x32xf32>
    %40 = vector.extract_strided_slice %39 {offsets = [0, 0], sizes = [8, 8], strides = [1, 1]} : vector<8x32xf32> to vector<8x8xf32>
    %41 = vector.extract_strided_slice %39 {offsets = [0, 8], sizes = [8, 8], strides = [1, 1]} : vector<8x32xf32> to vector<8x8xf32>
    %42 = vector.extract_strided_slice %39 {offsets = [0, 16], sizes = [8, 8], strides = [1, 1]} : vector<8x32xf32> to vector<8x8xf32>
    %43 = vector.extract_strided_slice %39 {offsets = [0, 24], sizes = [8, 8], strides = [1, 1]} : vector<8x32xf32> to vector<8x8xf32>
    %44 = vector.shape_cast %40 : vector<8x8xf32> to vector<1x8x8xf32>
    %45 = vector.shape_cast %41 : vector<8x8xf32> to vector<1x8x8xf32>
    %46 = vector.shape_cast %42 : vector<8x8xf32> to vector<1x8x8xf32>
    %47 = vector.shape_cast %43 : vector<8x8xf32> to vector<1x8x8xf32>
    %48 = tpu.concatenate %44, %45, %46, %47 in 0 : vector<1x8x8xf32>, vector<1x8x8xf32>, vector<1x8x8xf32>, vector<1x8x8xf32> -> vector<4x8x8xf32>
    %49 = arith.truncf %48 : vector<4x8x8xf32> to vector<4x8x8xbf16>
    "tpu.trace_start"() <{level = 10 : i32, message = "hqd,hkd->hqk"}> : () -> ()
    %cst_15 = arith.constant dense<0.000000e+00> : vector<4x8x8xf32>
    %50 = tpu.matmul %27, %38, %cst_15 {dimension_numbers = #tpu.dot_dimension_numbers<[2], [2], [1], [1], [0, 0, 0, 1, 1, 1], [0], [0]>} : vector<4x8x8xbf16>, vector<4x8x8xbf16>, vector<4x8x8xf32> -> vector<4x8x8xf32>
    "tpu.trace_stop"() : () -> ()
    %cst_16 = arith.constant dense<0xFF800000> : vector<4x8xf32>
    %51 = vector.multi_reduction <maximumf>, %50, %cst_16 [2] : vector<4x8x8xf32> to vector<4x8xf32>
    %52 = vector.shape_cast %51 : vector<4x8xf32> to vector<4x8x1xf32>
    %53 = vector.broadcast %52 : vector<4x8x1xf32> to vector<4x8x8xf32>
    %54 = arith.subf %50, %53 : vector<4x8x8xf32>
    %55 = math.exp %54 : vector<4x8x8xf32>
    %cst_17 = arith.constant dense<0.000000e+00> : vector<4x8xf32>
    %56 = vector.multi_reduction <add>, %55, %cst_17 [2] : vector<4x8x8xf32> to vector<4x8xf32>
    %57 = vector.shape_cast %56 : vector<4x8xf32> to vector<4x8x1xf32>
    %58 = tpu.reciprocal %57 {approx = true} : vector<4x8x1xf32> -> vector<4x8x1xf32>
    %59 = vector.broadcast %58 : vector<4x8x1xf32> to vector<4x8x8xf32>
    %60 = arith.mulf %55, %59 : vector<4x8x8xf32>
    %61 = arith.truncf %60 : vector<4x8x8xf32> to vector<4x8x8xbf16>
    "tpu.trace_start"() <{level = 10 : i32, message = "hqk,hkd->hqd"}> : () -> ()
    %cst_18 = arith.constant dense<0.000000e+00> : vector<4x8x8xf32>
    %62 = tpu.matmul %61, %49, %cst_18 {dimension_numbers = #tpu.dot_dimension_numbers<[2], [1], [1], [2], [0, 0, 0, 1, 1, 2], [0], [0]>} : vector<4x8x8xbf16>, vector<4x8x8xbf16>, vector<4x8x8xf32> -> vector<4x8x8xf32>
    "tpu.trace_stop"() : () -> ()
    %63 = vector.extract_strided_slice %62 {offsets = [0, 0, 0], sizes = [1, 8, 8], strides = [1, 1, 1]} : vector<4x8x8xf32> to vector<1x8x8xf32>
    %64 = vector.shape_cast %63 : vector<1x8x8xf32> to vector<8x8xf32>
    %65 = vector.extract_strided_slice %62 {offsets = [1, 0, 0], sizes = [1, 8, 8], strides = [1, 1, 1]} : vector<4x8x8xf32> to vector<1x8x8xf32>
    %66 = vector.shape_cast %65 : vector<1x8x8xf32> to vector<8x8xf32>
    %67 = vector.extract_strided_slice %62 {offsets = [2, 0, 0], sizes = [1, 8, 8], strides = [1, 1, 1]} : vector<4x8x8xf32> to vector<1x8x8xf32>
    %68 = vector.shape_cast %67 : vector<1x8x8xf32> to vector<8x8xf32>
    %69 = vector.extract_strided_slice %62 {offsets = [3, 0, 0], sizes = [1, 8, 8], strides = [1, 1, 1]} : vector<4x8x8xf32> to vector<1x8x8xf32>
    %70 = vector.shape_cast %69 : vector<1x8x8xf32> to vector<8x8xf32>
    %71 = tpu.concatenate %64, %66, %68, %70 in 1 : vector<8x8xf32>, vector<8x8xf32>, vector<8x8xf32>, vector<8x8xf32> -> vector<8x32xf32>
    %72 = arith.truncf %71 : vector<8x32xf32> to vector<8x32xbf16>
    %c0_19 = arith.constant 0 : index
    %c0_20 = arith.constant 0 : index
    %c0_21 = arith.constant 0 : index
    %73 = vector.load %arg7[%c0_19, %c0_20, %c0_21] : memref<3x32x32xbf16, #tpu.memory_space<vmem>>, vector<1x32x32xbf16>
    %74 = vector.shape_cast %73 : vector<1x32x32xbf16> to vector<32x32xbf16>
    %cst_22 = arith.constant dense<0.000000e+00> : vector<8x32xf32>
    %75 = tpu.matmul %72, %74, %cst_22 {dimension_numbers = #tpu.dot_dimension_numbers<[1], [0], [0], [1], [0, 0, 1, 1], [], []>} : vector<8x32xbf16>, vector<32x32xbf16>, vector<8x32xf32> -> vector<8x32xf32>
    %c0_23 = arith.constant 0 : index
    %c0_24 = arith.constant 0 : index
    %c0_25 = arith.constant 0 : index
    %76 = vector.load %arg8[%c0_23, %c0_24, %c0_25] : memref<3x1x32xf32, #tpu.memory_space<vmem>>, vector<1x1x32xf32>
    %77 = vector.shape_cast %76 : vector<1x1x32xf32> to vector<1x32xf32>
    %78 = vector.broadcast %77 : vector<1x32xf32> to vector<8x32xf32>
    %79 = arith.addf %75, %78 : vector<8x32xf32>
    %80 = arith.addf %8, %79 : vector<8x32xf32>
    %c0_26 = arith.constant 0 : index
    %c0_27 = arith.constant 0 : index
    %c0_28 = arith.constant 0 : index
    %81 = vector.load %arg9[%c0_26, %c0_27, %c0_28] : memref<3x1x32xf32, #tpu.memory_space<vmem>>, vector<1x1x32xf32>
    %82 = vector.shape_cast %81 : vector<1x1x32xf32> to vector<1x32xf32>
    %c0_29 = arith.constant 0 : index
    %c0_30 = arith.constant 0 : index
    %c0_31 = arith.constant 0 : index
    %83 = vector.load %arg10[%c0_29, %c0_30, %c0_31] : memref<3x1x32xf32, #tpu.memory_space<vmem>>, vector<1x1x32xf32>
    %84 = vector.shape_cast %83 : vector<1x1x32xf32> to vector<1x32xf32>
    %cst_32 = arith.constant dense<0.000000e+00> : vector<8xf32>
    %85 = vector.multi_reduction <add>, %80, %cst_32 [1] : vector<8x32xf32> to vector<8xf32>
    %86 = vector.shape_cast %85 : vector<8xf32> to vector<8x1xf32>
    %cst_33 = arith.constant 3.200000e+01 : f32
    %87 = vector.broadcast %cst_33 : f32 to vector<8x1xf32>
    %88 = arith.divf %86, %87 : vector<8x1xf32>
    %89 = vector.broadcast %88 : vector<8x1xf32> to vector<8x32xf32>
    %90 = arith.subf %80, %89 : vector<8x32xf32>
    %91 = arith.mulf %90, %90 : vector<8x32xf32>
    %cst_34 = arith.constant dense<0.000000e+00> : vector<8xf32>
    %92 = vector.multi_reduction <add>, %91, %cst_34 [1] : vector<8x32xf32> to vector<8xf32>
    %93 = vector.shape_cast %92 : vector<8xf32> to vector<8x1xf32>
    %cst_35 = arith.constant 3.200000e+01 : f32
    %94 = vector.broadcast %cst_35 : f32 to vector<8x1xf32>
    %95 = arith.divf %93, %94 : vector<8x1xf32>
    %cst_36 = arith.constant 9.99999996E-13 : f32
    %96 = vector.broadcast %cst_36 : f32 to vector<8x1xf32>
    %97 = arith.addf %95, %96 : vector<8x1xf32>
    %98 = math.rsqrt %97 : vector<8x1xf32>
    %99 = vector.broadcast %88 : vector<8x1xf32> to vector<8x32xf32>
    %100 = arith.subf %80, %99 : vector<8x32xf32>
    %101 = vector.broadcast %98 : vector<8x1xf32> to vector<8x32xf32>
    %102 = arith.mulf %100, %101 : vector<8x32xf32>
    %103 = vector.broadcast %82 : vector<1x32xf32> to vector<8x32xf32>
    %104 = arith.mulf %102, %103 : vector<8x32xf32>
    %105 = vector.broadcast %84 : vector<1x32xf32> to vector<8x32xf32>
    %106 = arith.addf %104, %105 : vector<8x32xf32>
    %107 = arith.truncf %106 : vector<8x32xf32> to vector<8x32xbf16>
    %c0_37 = arith.constant 0 : index
    %c0_38 = arith.constant 0 : index
    %c0_39 = arith.constant 0 : index
    %108 = vector.load %arg11[%c0_37, %c0_38, %c0_39] : memref<3x32x64xbf16, #tpu.memory_space<vmem>>, vector<1x32x64xbf16>
    %109 = vector.shape_cast %108 : vector<1x32x64xbf16> to vector<32x64xbf16>
    %cst_40 = arith.constant dense<0.000000e+00> : vector<8x64xf32>
    %110 = tpu.matmul %107, %109, %cst_40 {dimension_numbers = #tpu.dot_dimension_numbers<[1], [0], [0], [1], [0, 0, 1, 1], [], []>} : vector<8x32xbf16>, vector<32x64xbf16>, vector<8x64xf32> -> vector<8x64xf32>
    %c0_41 = arith.constant 0 : index
    %c0_42 = arith.constant 0 : index
    %c0_43 = arith.constant 0 : index
    %111 = vector.load %arg12[%c0_41, %c0_42, %c0_43] : memref<3x1x64xf32, #tpu.memory_space<vmem>>, vector<1x1x64xf32>
    %112 = vector.shape_cast %111 : vector<1x1x64xf32> to vector<1x64xf32>
    %113 = vector.broadcast %112 : vector<1x64xf32> to vector<8x64xf32>
    %114 = arith.addf %110, %113 : vector<8x64xf32>
    %115 = arith.mulf %114, %114 : vector<8x64xf32>
    %116 = arith.mulf %114, %115 : vector<8x64xf32>
    %cst_44 = arith.constant 4.471500e-02 : f32
    %117 = vector.broadcast %cst_44 : f32 to vector<8x64xf32>
    %118 = arith.mulf %117, %116 : vector<8x64xf32>
    %119 = arith.addf %114, %118 : vector<8x64xf32>
    %cst_45 = arith.constant 0.797884583 : f32
    %120 = vector.broadcast %cst_45 : f32 to vector<8x64xf32>
    %121 = arith.mulf %120, %119 : vector<8x64xf32>
    %122 = math.tanh %121 : vector<8x64xf32>
    %cst_46 = arith.constant 1.000000e+00 : f32
    %123 = vector.broadcast %cst_46 : f32 to vector<8x64xf32>
    %124 = arith.addf %123, %122 : vector<8x64xf32>
    %cst_47 = arith.constant 5.000000e-01 : f32
    %125 = vector.broadcast %cst_47 : f32 to vector<8x64xf32>
    %126 = arith.mulf %125, %124 : vector<8x64xf32>
    %127 = arith.mulf %114, %126 : vector<8x64xf32>
    %128 = arith.truncf %127 : vector<8x64xf32> to vector<8x64xbf16>
    %c0_48 = arith.constant 0 : index
    %c0_49 = arith.constant 0 : index
    %c0_50 = arith.constant 0 : index
    %129 = vector.load %arg13[%c0_48, %c0_49, %c0_50] : memref<3x64x32xbf16, #tpu.memory_space<vmem>>, vector<1x64x32xbf16>
    %130 = vector.shape_cast %129 : vector<1x64x32xbf16> to vector<64x32xbf16>
    %cst_51 = arith.constant dense<0.000000e+00> : vector<8x32xf32>
    %131 = tpu.matmul %128, %130, %cst_51 {dimension_numbers = #tpu.dot_dimension_numbers<[1], [0], [0], [1], [0, 0, 1, 1], [], []>} : vector<8x64xbf16>, vector<64x32xbf16>, vector<8x32xf32> -> vector<8x32xf32>
    %c0_52 = arith.constant 0 : index
    %c0_53 = arith.constant 0 : index
    %c0_54 = arith.constant 0 : index
    %132 = vector.load %arg14[%c0_52, %c0_53, %c0_54] : memref<3x1x32xf32, #tpu.memory_space<vmem>>, vector<1x1x32xf32>
    %133 = vector.shape_cast %132 : vector<1x1x32xf32> to vector<1x32xf32>
    %134 = vector.broadcast %133 : vector<1x32xf32> to vector<8x32xf32>
    %135 = arith.addf %131, %134 : vector<8x32xf32>
    %136 = arith.addf %106, %135 : vector<8x32xf32>
    %c0_55 = arith.constant 0 : index
    %c0_56 = arith.constant 0 : index
    %c0_57 = arith.constant 0 : index
    %137 = vector.load %arg15[%c0_55, %c0_56, %c0_57] : memref<3x1x32xf32, #tpu.memory_space<vmem>>, vector<1x1x32xf32>
    %138 = vector.shape_cast %137 : vector<1x1x32xf32> to vector<1x32xf32>
    %c0_58 = arith.constant 0 : index
    %c0_59 = arith.constant 0 : index
    %c0_60 = arith.constant 0 : index
    %139 = vector.load %arg16[%c0_58, %c0_59, %c0_60] : memref<3x1x32xf32, #tpu.memory_space<vmem>>, vector<1x1x32xf32>
    %140 = vector.shape_cast %139 : vector<1x1x32xf32> to vector<1x32xf32>
    %cst_61 = arith.constant dense<0.000000e+00> : vector<8xf32>
    %141 = vector.multi_reduction <add>, %136, %cst_61 [1] : vector<8x32xf32> to vector<8xf32>
    %142 = vector.shape_cast %141 : vector<8xf32> to vector<8x1xf32>
    %cst_62 = arith.constant 3.200000e+01 : f32
    %143 = vector.broadcast %cst_62 : f32 to vector<8x1xf32>
    %144 = arith.divf %142, %143 : vector<8x1xf32>
    %145 = vector.broadcast %144 : vector<8x1xf32> to vector<8x32xf32>
    %146 = arith.subf %136, %145 : vector<8x32xf32>
    %147 = arith.mulf %146, %146 : vector<8x32xf32>
    %cst_63 = arith.constant dense<0.000000e+00> : vector<8xf32>
    %148 = vector.multi_reduction <add>, %147, %cst_63 [1] : vector<8x32xf32> to vector<8xf32>
    %149 = vector.shape_cast %148 : vector<8xf32> to vector<8x1xf32>
    %cst_64 = arith.constant 3.200000e+01 : f32
    %150 = vector.broadcast %cst_64 : f32 to vector<8x1xf32>
    %151 = arith.divf %149, %150 : vector<8x1xf32>
    %cst_65 = arith.constant 9.99999996E-13 : f32
    %152 = vector.broadcast %cst_65 : f32 to vector<8x1xf32>
    %153 = arith.addf %151, %152 : vector<8x1xf32>
    %154 = math.rsqrt %153 : vector<8x1xf32>
    %155 = vector.broadcast %144 : vector<8x1xf32> to vector<8x32xf32>
    %156 = arith.subf %136, %155 : vector<8x32xf32>
    %157 = vector.broadcast %154 : vector<8x1xf32> to vector<8x32xf32>
    %158 = arith.mulf %156, %157 : vector<8x32xf32>
    %159 = vector.broadcast %138 : vector<1x32xf32> to vector<8x32xf32>
    %160 = arith.mulf %158, %159 : vector<8x32xf32>
    %161 = vector.broadcast %140 : vector<1x32xf32> to vector<8x32xf32>
    %162 = arith.addf %160, %161 : vector<8x32xf32>
    %163 = arith.truncf %162 : vector<8x32xf32> to vector<8x32xbf16>
    %c1 = arith.constant 1 : index
    %c0_66 = arith.constant 0 : index
    %c0_67 = arith.constant 0 : index
    %164 = vector.load %arg5[%c1, %c0_66, %c0_67] : memref<3x32x96xbf16, #tpu.memory_space<vmem>>, vector<1x32x96xbf16>
    %165 = vector.shape_cast %164 : vector<1x32x96xbf16> to vector<32x96xbf16>
    %cst_68 = arith.constant dense<0.000000e+00> : vector<8x96xf32>
    %166 = tpu.matmul %163, %165, %cst_68 {dimension_numbers = #tpu.dot_dimension_numbers<[1], [0], [0], [1], [0, 0, 1, 1], [], []>} : vector<8x32xbf16>, vector<32x96xbf16>, vector<8x96xf32> -> vector<8x96xf32>
    %c1_69 = arith.constant 1 : index
    %c0_70 = arith.constant 0 : index
    %c0_71 = arith.constant 0 : index
    %167 = vector.load %arg6[%c1_69, %c0_70, %c0_71] : memref<3x1x96xf32, #tpu.memory_space<vmem>>, vector<1x1x96xf32>
    %168 = vector.shape_cast %167 : vector<1x1x96xf32> to vector<1x96xf32>
    %169 = vector.broadcast %168 : vector<1x96xf32> to vector<8x96xf32>
    %170 = arith.addf %166, %169 : vector<8x96xf32>
    %171 = vector.extract_strided_slice %170 {offsets = [0, 0], sizes = [8, 32], strides = [1, 1]} : vector<8x96xf32> to vector<8x32xf32>
    %172 = vector.extract_strided_slice %171 {offsets = [0, 0], sizes = [8, 8], strides = [1, 1]} : vector<8x32xf32> to vector<8x8xf32>
    %173 = vector.extract_strided_slice %171 {offsets = [0, 8], sizes = [8, 8], strides = [1, 1]} : vector<8x32xf32> to vector<8x8xf32>
    %174 = vector.extract_strided_slice %171 {offsets = [0, 16], sizes = [8, 8], strides = [1, 1]} : vector<8x32xf32> to vector<8x8xf32>
    %175 = vector.extract_strided_slice %171 {offsets = [0, 24], sizes = [8, 8], strides = [1, 1]} : vector<8x32xf32> to vector<8x8xf32>
    %176 = vector.shape_cast %172 : vector<8x8xf32> to vector<1x8x8xf32>
    %177 = vector.shape_cast %173 : vector<8x8xf32> to vector<1x8x8xf32>
    %178 = vector.shape_cast %174 : vector<8x8xf32> to vector<1x8x8xf32>
    %179 = vector.shape_cast %175 : vector<8x8xf32> to vector<1x8x8xf32>
    %180 = tpu.concatenate %176, %177, %178, %179 in 0 : vector<1x8x8xf32>, vector<1x8x8xf32>, vector<1x8x8xf32>, vector<1x8x8xf32> -> vector<4x8x8xf32>
    %181 = arith.truncf %180 : vector<4x8x8xf32> to vector<4x8x8xbf16>
    %182 = vector.extract_strided_slice %170 {offsets = [0, 32], sizes = [8, 32], strides = [1, 1]} : vector<8x96xf32> to vector<8x32xf32>
    %183 = vector.extract_strided_slice %182 {offsets = [0, 0], sizes = [8, 8], strides = [1, 1]} : vector<8x32xf32> to vector<8x8xf32>
    %184 = vector.extract_strided_slice %182 {offsets = [0, 8], sizes = [8, 8], strides = [1, 1]} : vector<8x32xf32> to vector<8x8xf32>
    %185 = vector.extract_strided_slice %182 {offsets = [0, 16], sizes = [8, 8], strides = [1, 1]} : vector<8x32xf32> to vector<8x8xf32>
    %186 = vector.extract_strided_slice %182 {offsets = [0, 24], sizes = [8, 8], strides = [1, 1]} : vector<8x32xf32> to vector<8x8xf32>
    %187 = vector.shape_cast %183 : vector<8x8xf32> to vector<1x8x8xf32>
    %188 = vector.shape_cast %184 : vector<8x8xf32> to vector<1x8x8xf32>
    %189 = vector.shape_cast %185 : vector<8x8xf32> to vector<1x8x8xf32>
    %190 = vector.shape_cast %186 : vector<8x8xf32> to vector<1x8x8xf32>
    %191 = tpu.concatenate %187, %188, %189, %190 in 0 : vector<1x8x8xf32>, vector<1x8x8xf32>, vector<1x8x8xf32>, vector<1x8x8xf32> -> vector<4x8x8xf32>
    %192 = arith.truncf %191 : vector<4x8x8xf32> to vector<4x8x8xbf16>
    %193 = vector.extract_strided_slice %170 {offsets = [0, 64], sizes = [8, 32], strides = [1, 1]} : vector<8x96xf32> to vector<8x32xf32>
    %194 = vector.extract_strided_slice %193 {offsets = [0, 0], sizes = [8, 8], strides = [1, 1]} : vector<8x32xf32> to vector<8x8xf32>
    %195 = vector.extract_strided_slice %193 {offsets = [0, 8], sizes = [8, 8], strides = [1, 1]} : vector<8x32xf32> to vector<8x8xf32>
    %196 = vector.extract_strided_slice %193 {offsets = [0, 16], sizes = [8, 8], strides = [1, 1]} : vector<8x32xf32> to vector<8x8xf32>
    %197 = vector.extract_strided_slice %193 {offsets = [0, 24], sizes = [8, 8], strides = [1, 1]} : vector<8x32xf32> to vector<8x8xf32>
    %198 = vector.shape_cast %194 : vector<8x8xf32> to vector<1x8x8xf32>
    %199 = vector.shape_cast %195 : vector<8x8xf32> to vector<1x8x8xf32>
    %200 = vector.shape_cast %196 : vector<8x8xf32> to vector<1x8x8xf32>
    %201 = vector.shape_cast %197 : vector<8x8xf32> to vector<1x8x8xf32>
    %202 = tpu.concatenate %198, %199, %200, %201 in 0 : vector<1x8x8xf32>, vector<1x8x8xf32>, vector<1x8x8xf32>, vector<1x8x8xf32> -> vector<4x8x8xf32>
    %203 = arith.truncf %202 : vector<4x8x8xf32> to vector<4x8x8xbf16>
    "tpu.trace_start"() <{level = 10 : i32, message = "hqd,hkd->hqk"}> : () -> ()
    %cst_72 = arith.constant dense<0.000000e+00> : vector<4x8x8xf32>
    %204 = tpu.matmul %181, %192, %cst_72 {dimension_numbers = #tpu.dot_dimension_numbers<[2], [2], [1], [1], [0, 0, 0, 1, 1, 1], [0], [0]>} : vector<4x8x8xbf16>, vector<4x8x8xbf16>, vector<4x8x8xf32> -> vector<4x8x8xf32>
    "tpu.trace_stop"() : () -> ()
    %cst_73 = arith.constant dense<0xFF800000> : vector<4x8xf32>
    %205 = vector.multi_reduction <maximumf>, %204, %cst_73 [2] : vector<4x8x8xf32> to vector<4x8xf32>
    %206 = vector.shape_cast %205 : vector<4x8xf32> to vector<4x8x1xf32>
    %207 = vector.broadcast %206 : vector<4x8x1xf32> to vector<4x8x8xf32>
    %208 = arith.subf %204, %207 : vector<4x8x8xf32>
    %209 = math.exp %208 : vector<4x8x8xf32>
    %cst_74 = arith.constant dense<0.000000e+00> : vector<4x8xf32>
    %210 = vector.multi_reduction <add>, %209, %cst_74 [2] : vector<4x8x8xf32> to vector<4x8xf32>
    %211 = vector.shape_cast %210 : vector<4x8xf32> to vector<4x8x1xf32>
    %212 = tpu.reciprocal %211 {approx = true} : vector<4x8x1xf32> -> vector<4x8x1xf32>
    %213 = vector.broadcast %212 : vector<4x8x1xf32> to vector<4x8x8xf32>
    %214 = arith.mulf %209, %213 : vector<4x8x8xf32>
    %215 = arith.truncf %214 : vector<4x8x8xf32> to vector<4x8x8xbf16>
    "tpu.trace_start"() <{level = 10 : i32, message = "hqk,hkd->hqd"}> : () -> ()
    %cst_75 = arith.constant dense<0.000000e+00> : vector<4x8x8xf32>
    %216 = tpu.matmul %215, %203, %cst_75 {dimension_numbers = #tpu.dot_dimension_numbers<[2], [1], [1], [2], [0, 0, 0, 1, 1, 2], [0], [0]>} : vector<4x8x8xbf16>, vector<4x8x8xbf16>, vector<4x8x8xf32> -> vector<4x8x8xf32>
    "tpu.trace_stop"() : () -> ()
    %217 = vector.extract_strided_slice %216 {offsets = [0, 0, 0], sizes = [1, 8, 8], strides = [1, 1, 1]} : vector<4x8x8xf32> to vector<1x8x8xf32>
    %218 = vector.shape_cast %217 : vector<1x8x8xf32> to vector<8x8xf32>
    %219 = vector.extract_strided_slice %216 {offsets = [1, 0, 0], sizes = [1, 8, 8], strides = [1, 1, 1]} : vector<4x8x8xf32> to vector<1x8x8xf32>
    %220 = vector.shape_cast %219 : vector<1x8x8xf32> to vector<8x8xf32>
    %221 = vector.extract_strided_slice %216 {offsets = [2, 0, 0], sizes = [1, 8, 8], strides = [1, 1, 1]} : vector<4x8x8xf32> to vector<1x8x8xf32>
    %222 = vector.shape_cast %221 : vector<1x8x8xf32> to vector<8x8xf32>
    %223 = vector.extract_strided_slice %216 {offsets = [3, 0, 0], sizes = [1, 8, 8], strides = [1, 1, 1]} : vector<4x8x8xf32> to vector<1x8x8xf32>
    %224 = vector.shape_cast %223 : vector<1x8x8xf32> to vector<8x8xf32>
    %225 = tpu.concatenate %218, %220, %222, %224 in 1 : vector<8x8xf32>, vector<8x8xf32>, vector<8x8xf32>, vector<8x8xf32> -> vector<8x32xf32>
    %226 = arith.truncf %225 : vector<8x32xf32> to vector<8x32xbf16>
    %c1_76 = arith.constant 1 : index
    %c0_77 = arith.constant 0 : index
    %c0_78 = arith.constant 0 : index
    %227 = vector.load %arg7[%c1_76, %c0_77, %c0_78] : memref<3x32x32xbf16, #tpu.memory_space<vmem>>, vector<1x32x32xbf16>
    %228 = vector.shape_cast %227 : vector<1x32x32xbf16> to vector<32x32xbf16>
    %cst_79 = arith.constant dense<0.000000e+00> : vector<8x32xf32>
    %229 = tpu.matmul %226, %228, %cst_79 {dimension_numbers = #tpu.dot_dimension_numbers<[1], [0], [0], [1], [0, 0, 1, 1], [], []>} : vector<8x32xbf16>, vector<32x32xbf16>, vector<8x32xf32> -> vector<8x32xf32>
    %c1_80 = arith.constant 1 : index
    %c0_81 = arith.constant 0 : index
    %c0_82 = arith.constant 0 : index
    %230 = vector.load %arg8[%c1_80, %c0_81, %c0_82] : memref<3x1x32xf32, #tpu.memory_space<vmem>>, vector<1x1x32xf32>
    %231 = vector.shape_cast %230 : vector<1x1x32xf32> to vector<1x32xf32>
    %232 = vector.broadcast %231 : vector<1x32xf32> to vector<8x32xf32>
    %233 = arith.addf %229, %232 : vector<8x32xf32>
    %234 = arith.addf %162, %233 : vector<8x32xf32>
    %c1_83 = arith.constant 1 : index
    %c0_84 = arith.constant 0 : index
    %c0_85 = arith.constant 0 : index
    %235 = vector.load %arg9[%c1_83, %c0_84, %c0_85] : memref<3x1x32xf32, #tpu.memory_space<vmem>>, vector<1x1x32xf32>
    %236 = vector.shape_cast %235 : vector<1x1x32xf32> to vector<1x32xf32>
    %c1_86 = arith.constant 1 : index
    %c0_87 = arith.constant 0 : index
    %c0_88 = arith.constant 0 : index
    %237 = vector.load %arg10[%c1_86, %c0_87, %c0_88] : memref<3x1x32xf32, #tpu.memory_space<vmem>>, vector<1x1x32xf32>
    %238 = vector.shape_cast %237 : vector<1x1x32xf32> to vector<1x32xf32>
    %cst_89 = arith.constant dense<0.000000e+00> : vector<8xf32>
    %239 = vector.multi_reduction <add>, %234, %cst_89 [1] : vector<8x32xf32> to vector<8xf32>
    %240 = vector.shape_cast %239 : vector<8xf32> to vector<8x1xf32>
    %cst_90 = arith.constant 3.200000e+01 : f32
    %241 = vector.broadcast %cst_90 : f32 to vector<8x1xf32>
    %242 = arith.divf %240, %241 : vector<8x1xf32>
    %243 = vector.broadcast %242 : vector<8x1xf32> to vector<8x32xf32>
    %244 = arith.subf %234, %243 : vector<8x32xf32>
    %245 = arith.mulf %244, %244 : vector<8x32xf32>
    %cst_91 = arith.constant dense<0.000000e+00> : vector<8xf32>
    %246 = vector.multi_reduction <add>, %245, %cst_91 [1] : vector<8x32xf32> to vector<8xf32>
    %247 = vector.shape_cast %246 : vector<8xf32> to vector<8x1xf32>
    %cst_92 = arith.constant 3.200000e+01 : f32
    %248 = vector.broadcast %cst_92 : f32 to vector<8x1xf32>
    %249 = arith.divf %247, %248 : vector<8x1xf32>
    %cst_93 = arith.constant 9.99999996E-13 : f32
    %250 = vector.broadcast %cst_93 : f32 to vector<8x1xf32>
    %251 = arith.addf %249, %250 : vector<8x1xf32>
    %252 = math.rsqrt %251 : vector<8x1xf32>
    %253 = vector.broadcast %242 : vector<8x1xf32> to vector<8x32xf32>
    %254 = arith.subf %234, %253 : vector<8x32xf32>
    %255 = vector.broadcast %252 : vector<8x1xf32> to vector<8x32xf32>
    %256 = arith.mulf %254, %255 : vector<8x32xf32>
    %257 = vector.broadcast %236 : vector<1x32xf32> to vector<8x32xf32>
    %258 = arith.mulf %256, %257 : vector<8x32xf32>
    %259 = vector.broadcast %238 : vector<1x32xf32> to vector<8x32xf32>
    %260 = arith.addf %258, %259 : vector<8x32xf32>
    %261 = arith.truncf %260 : vector<8x32xf32> to vector<8x32xbf16>
    %c1_94 = arith.constant 1 : index
    %c0_95 = arith.constant 0 : index
    %c0_96 = arith.constant 0 : index
    %262 = vector.load %arg11[%c1_94, %c0_95, %c0_96] : memref<3x32x64xbf16, #tpu.memory_space<vmem>>, vector<1x32x64xbf16>
    %263 = vector.shape_cast %262 : vector<1x32x64xbf16> to vector<32x64xbf16>
    %cst_97 = arith.constant dense<0.000000e+00> : vector<8x64xf32>
    %264 = tpu.matmul %261, %263, %cst_97 {dimension_numbers = #tpu.dot_dimension_numbers<[1], [0], [0], [1], [0, 0, 1, 1], [], []>} : vector<8x32xbf16>, vector<32x64xbf16>, vector<8x64xf32> -> vector<8x64xf32>
    %c1_98 = arith.constant 1 : index
    %c0_99 = arith.constant 0 : index
    %c0_100 = arith.constant 0 : index
    %265 = vector.load %arg12[%c1_98, %c0_99, %c0_100] : memref<3x1x64xf32, #tpu.memory_space<vmem>>, vector<1x1x64xf32>
    %266 = vector.shape_cast %265 : vector<1x1x64xf32> to vector<1x64xf32>
    %267 = vector.broadcast %266 : vector<1x64xf32> to vector<8x64xf32>
    %268 = arith.addf %264, %267 : vector<8x64xf32>
    %269 = arith.mulf %268, %268 : vector<8x64xf32>
    %270 = arith.mulf %268, %269 : vector<8x64xf32>
    %cst_101 = arith.constant 4.471500e-02 : f32
    %271 = vector.broadcast %cst_101 : f32 to vector<8x64xf32>
    %272 = arith.mulf %271, %270 : vector<8x64xf32>
    %273 = arith.addf %268, %272 : vector<8x64xf32>
    %cst_102 = arith.constant 0.797884583 : f32
    %274 = vector.broadcast %cst_102 : f32 to vector<8x64xf32>
    %275 = arith.mulf %274, %273 : vector<8x64xf32>
    %276 = math.tanh %275 : vector<8x64xf32>
    %cst_103 = arith.constant 1.000000e+00 : f32
    %277 = vector.broadcast %cst_103 : f32 to vector<8x64xf32>
    %278 = arith.addf %277, %276 : vector<8x64xf32>
    %cst_104 = arith.constant 5.000000e-01 : f32
    %279 = vector.broadcast %cst_104 : f32 to vector<8x64xf32>
    %280 = arith.mulf %279, %278 : vector<8x64xf32>
    %281 = arith.mulf %268, %280 : vector<8x64xf32>
    %282 = arith.truncf %281 : vector<8x64xf32> to vector<8x64xbf16>
    %c1_105 = arith.constant 1 : index
    %c0_106 = arith.constant 0 : index
    %c0_107 = arith.constant 0 : index
    %283 = vector.load %arg13[%c1_105, %c0_106, %c0_107] : memref<3x64x32xbf16, #tpu.memory_space<vmem>>, vector<1x64x32xbf16>
    %284 = vector.shape_cast %283 : vector<1x64x32xbf16> to vector<64x32xbf16>
    %cst_108 = arith.constant dense<0.000000e+00> : vector<8x32xf32>
    %285 = tpu.matmul %282, %284, %cst_108 {dimension_numbers = #tpu.dot_dimension_numbers<[1], [0], [0], [1], [0, 0, 1, 1], [], []>} : vector<8x64xbf16>, vector<64x32xbf16>, vector<8x32xf32> -> vector<8x32xf32>
    %c1_109 = arith.constant 1 : index
    %c0_110 = arith.constant 0 : index
    %c0_111 = arith.constant 0 : index
    %286 = vector.load %arg14[%c1_109, %c0_110, %c0_111] : memref<3x1x32xf32, #tpu.memory_space<vmem>>, vector<1x1x32xf32>
    %287 = vector.shape_cast %286 : vector<1x1x32xf32> to vector<1x32xf32>
    %288 = vector.broadcast %287 : vector<1x32xf32> to vector<8x32xf32>
    %289 = arith.addf %285, %288 : vector<8x32xf32>
    %290 = arith.addf %260, %289 : vector<8x32xf32>
    %c1_112 = arith.constant 1 : index
    %c0_113 = arith.constant 0 : index
    %c0_114 = arith.constant 0 : index
    %291 = vector.load %arg15[%c1_112, %c0_113, %c0_114] : memref<3x1x32xf32, #tpu.memory_space<vmem>>, vector<1x1x32xf32>
    %292 = vector.shape_cast %291 : vector<1x1x32xf32> to vector<1x32xf32>
    %c1_115 = arith.constant 1 : index
    %c0_116 = arith.constant 0 : index
    %c0_117 = arith.constant 0 : index
    %293 = vector.load %arg16[%c1_115, %c0_116, %c0_117] : memref<3x1x32xf32, #tpu.memory_space<vmem>>, vector<1x1x32xf32>
    %294 = vector.shape_cast %293 : vector<1x1x32xf32> to vector<1x32xf32>
    %cst_118 = arith.constant dense<0.000000e+00> : vector<8xf32>
    %295 = vector.multi_reduction <add>, %290, %cst_118 [1] : vector<8x32xf32> to vector<8xf32>
    %296 = vector.shape_cast %295 : vector<8xf32> to vector<8x1xf32>
    %cst_119 = arith.constant 3.200000e+01 : f32
    %297 = vector.broadcast %cst_119 : f32 to vector<8x1xf32>
    %298 = arith.divf %296, %297 : vector<8x1xf32>
    %299 = vector.broadcast %298 : vector<8x1xf32> to vector<8x32xf32>
    %300 = arith.subf %290, %299 : vector<8x32xf32>
    %301 = arith.mulf %300, %300 : vector<8x32xf32>
    %cst_120 = arith.constant dense<0.000000e+00> : vector<8xf32>
    %302 = vector.multi_reduction <add>, %301, %cst_120 [1] : vector<8x32xf32> to vector<8xf32>
    %303 = vector.shape_cast %302 : vector<8xf32> to vector<8x1xf32>
    %cst_121 = arith.constant 3.200000e+01 : f32
    %304 = vector.broadcast %cst_121 : f32 to vector<8x1xf32>
    %305 = arith.divf %303, %304 : vector<8x1xf32>
    %cst_122 = arith.constant 9.99999996E-13 : f32
    %306 = vector.broadcast %cst_122 : f32 to vector<8x1xf32>
    %307 = arith.addf %305, %306 : vector<8x1xf32>
    %308 = math.rsqrt %307 : vector<8x1xf32>
    %309 = vector.broadcast %298 : vector<8x1xf32> to vector<8x32xf32>
    %310 = arith.subf %290, %309 : vector<8x32xf32>
    %311 = vector.broadcast %308 : vector<8x1xf32> to vector<8x32xf32>
    %312 = arith.mulf %310, %311 : vector<8x32xf32>
    %313 = vector.broadcast %292 : vector<1x32xf32> to vector<8x32xf32>
    %314 = arith.mulf %312, %313 : vector<8x32xf32>
    %315 = vector.broadcast %294 : vector<1x32xf32> to vector<8x32xf32>
    %316 = arith.addf %314, %315 : vector<8x32xf32>
    %317 = arith.truncf %316 : vector<8x32xf32> to vector<8x32xbf16>
    %c2 = arith.constant 2 : index
    %c0_123 = arith.constant 0 : index
    %c0_124 = arith.constant 0 : index
    %318 = vector.load %arg5[%c2, %c0_123, %c0_124] : memref<3x32x96xbf16, #tpu.memory_space<vmem>>, vector<1x32x96xbf16>
    %319 = vector.shape_cast %318 : vector<1x32x96xbf16> to vector<32x96xbf16>
    %cst_125 = arith.constant dense<0.000000e+00> : vector<8x96xf32>
    %320 = tpu.matmul %317, %319, %cst_125 {dimension_numbers = #tpu.dot_dimension_numbers<[1], [0], [0], [1], [0, 0, 1, 1], [], []>} : vector<8x32xbf16>, vector<32x96xbf16>, vector<8x96xf32> -> vector<8x96xf32>
    %c2_126 = arith.constant 2 : index
    %c0_127 = arith.constant 0 : index
    %c0_128 = arith.constant 0 : index
    %321 = vector.load %arg6[%c2_126, %c0_127, %c0_128] : memref<3x1x96xf32, #tpu.memory_space<vmem>>, vector<1x1x96xf32>
    %322 = vector.shape_cast %321 : vector<1x1x96xf32> to vector<1x96xf32>
    %323 = vector.broadcast %322 : vector<1x96xf32> to vector<8x96xf32>
    %324 = arith.addf %320, %323 : vector<8x96xf32>
    %325 = vector.extract_strided_slice %324 {offsets = [0, 0], sizes = [8, 32], strides = [1, 1]} : vector<8x96xf32> to vector<8x32xf32>
    %326 = vector.extract_strided_slice %325 {offsets = [0, 0], sizes = [8, 8], strides = [1, 1]} : vector<8x32xf32> to vector<8x8xf32>
    %327 = vector.extract_strided_slice %325 {offsets = [0, 8], sizes = [8, 8], strides = [1, 1]} : vector<8x32xf32> to vector<8x8xf32>
    %328 = vector.extract_strided_slice %325 {offsets = [0, 16], sizes = [8, 8], strides = [1, 1]} : vector<8x32xf32> to vector<8x8xf32>
    %329 = vector.extract_strided_slice %325 {offsets = [0, 24], sizes = [8, 8], strides = [1, 1]} : vector<8x32xf32> to vector<8x8xf32>
    %330 = vector.shape_cast %326 : vector<8x8xf32> to vector<1x8x8xf32>
    %331 = vector.shape_cast %327 : vector<8x8xf32> to vector<1x8x8xf32>
    %332 = vector.shape_cast %328 : vector<8x8xf32> to vector<1x8x8xf32>
    %333 = vector.shape_cast %329 : vector<8x8xf32> to vector<1x8x8xf32>
    %334 = tpu.concatenate %330, %331, %332, %333 in 0 : vector<1x8x8xf32>, vector<1x8x8xf32>, vector<1x8x8xf32>, vector<1x8x8xf32> -> vector<4x8x8xf32>
    %335 = arith.truncf %334 : vector<4x8x8xf32> to vector<4x8x8xbf16>
    %336 = vector.extract_strided_slice %324 {offsets = [0, 32], sizes = [8, 32], strides = [1, 1]} : vector<8x96xf32> to vector<8x32xf32>
    %337 = vector.extract_strided_slice %336 {offsets = [0, 0], sizes = [8, 8], strides = [1, 1]} : vector<8x32xf32> to vector<8x8xf32>
    %338 = vector.extract_strided_slice %336 {offsets = [0, 8], sizes = [8, 8], strides = [1, 1]} : vector<8x32xf32> to vector<8x8xf32>
    %339 = vector.extract_strided_slice %336 {offsets = [0, 16], sizes = [8, 8], strides = [1, 1]} : vector<8x32xf32> to vector<8x8xf32>
    %340 = vector.extract_strided_slice %336 {offsets = [0, 24], sizes = [8, 8], strides = [1, 1]} : vector<8x32xf32> to vector<8x8xf32>
    %341 = vector.shape_cast %337 : vector<8x8xf32> to vector<1x8x8xf32>
    %342 = vector.shape_cast %338 : vector<8x8xf32> to vector<1x8x8xf32>
    %343 = vector.shape_cast %339 : vector<8x8xf32> to vector<1x8x8xf32>
    %344 = vector.shape_cast %340 : vector<8x8xf32> to vector<1x8x8xf32>
    %345 = tpu.concatenate %341, %342, %343, %344 in 0 : vector<1x8x8xf32>, vector<1x8x8xf32>, vector<1x8x8xf32>, vector<1x8x8xf32> -> vector<4x8x8xf32>
    %346 = arith.truncf %345 : vector<4x8x8xf32> to vector<4x8x8xbf16>
    %347 = vector.extract_strided_slice %324 {offsets = [0, 64], sizes = [8, 32], strides = [1, 1]} : vector<8x96xf32> to vector<8x32xf32>
    %348 = vector.extract_strided_slice %347 {offsets = [0, 0], sizes = [8, 8], strides = [1, 1]} : vector<8x32xf32> to vector<8x8xf32>
    %349 = vector.extract_strided_slice %347 {offsets = [0, 8], sizes = [8, 8], strides = [1, 1]} : vector<8x32xf32> to vector<8x8xf32>
    %350 = vector.extract_strided_slice %347 {offsets = [0, 16], sizes = [8, 8], strides = [1, 1]} : vector<8x32xf32> to vector<8x8xf32>
    %351 = vector.extract_strided_slice %347 {offsets = [0, 24], sizes = [8, 8], strides = [1, 1]} : vector<8x32xf32> to vector<8x8xf32>
    %352 = vector.shape_cast %348 : vector<8x8xf32> to vector<1x8x8xf32>
    %353 = vector.shape_cast %349 : vector<8x8xf32> to vector<1x8x8xf32>
    %354 = vector.shape_cast %350 : vector<8x8xf32> to vector<1x8x8xf32>
    %355 = vector.shape_cast %351 : vector<8x8xf32> to vector<1x8x8xf32>
    %356 = tpu.concatenate %352, %353, %354, %355 in 0 : vector<1x8x8xf32>, vector<1x8x8xf32>, vector<1x8x8xf32>, vector<1x8x8xf32> -> vector<4x8x8xf32>
    %357 = arith.truncf %356 : vector<4x8x8xf32> to vector<4x8x8xbf16>
    "tpu.trace_start"() <{level = 10 : i32, message = "hqd,hkd->hqk"}> : () -> ()
    %cst_129 = arith.constant dense<0.000000e+00> : vector<4x8x8xf32>
    %358 = tpu.matmul %335, %346, %cst_129 {dimension_numbers = #tpu.dot_dimension_numbers<[2], [2], [1], [1], [0, 0, 0, 1, 1, 1], [0], [0]>} : vector<4x8x8xbf16>, vector<4x8x8xbf16>, vector<4x8x8xf32> -> vector<4x8x8xf32>
    "tpu.trace_stop"() : () -> ()
    %cst_130 = arith.constant dense<0xFF800000> : vector<4x8xf32>
    %359 = vector.multi_reduction <maximumf>, %358, %cst_130 [2] : vector<4x8x8xf32> to vector<4x8xf32>
    %360 = vector.shape_cast %359 : vector<4x8xf32> to vector<4x8x1xf32>
    %361 = vector.broadcast %360 : vector<4x8x1xf32> to vector<4x8x8xf32>
    %362 = arith.subf %358, %361 : vector<4x8x8xf32>
    %363 = math.exp %362 : vector<4x8x8xf32>
    %cst_131 = arith.constant dense<0.000000e+00> : vector<4x8xf32>
    %364 = vector.multi_reduction <add>, %363, %cst_131 [2] : vector<4x8x8xf32> to vector<4x8xf32>
    %365 = vector.shape_cast %364 : vector<4x8xf32> to vector<4x8x1xf32>
    %366 = tpu.reciprocal %365 {approx = true} : vector<4x8x1xf32> -> vector<4x8x1xf32>
    %367 = vector.broadcast %366 : vector<4x8x1xf32> to vector<4x8x8xf32>
    %368 = arith.mulf %363, %367 : vector<4x8x8xf32>
    %369 = arith.truncf %368 : vector<4x8x8xf32> to vector<4x8x8xbf16>
    "tpu.trace_start"() <{level = 10 : i32, message = "hqk,hkd->hqd"}> : () -> ()
    %cst_132 = arith.constant dense<0.000000e+00> : vector<4x8x8xf32>
    %370 = tpu.matmul %369, %357, %cst_132 {dimension_numbers = #tpu.dot_dimension_numbers<[2], [1], [1], [2], [0, 0, 0, 1, 1, 2], [0], [0]>} : vector<4x8x8xbf16>, vector<4x8x8xbf16>, vector<4x8x8xf32> -> vector<4x8x8xf32>
    "tpu.trace_stop"() : () -> ()
    %371 = vector.extract_strided_slice %370 {offsets = [0, 0, 0], sizes = [1, 8, 8], strides = [1, 1, 1]} : vector<4x8x8xf32> to vector<1x8x8xf32>
    %372 = vector.shape_cast %371 : vector<1x8x8xf32> to vector<8x8xf32>
    %373 = vector.extract_strided_slice %370 {offsets = [1, 0, 0], sizes = [1, 8, 8], strides = [1, 1, 1]} : vector<4x8x8xf32> to vector<1x8x8xf32>
    %374 = vector.shape_cast %373 : vector<1x8x8xf32> to vector<8x8xf32>
    %375 = vector.extract_strided_slice %370 {offsets = [2, 0, 0], sizes = [1, 8, 8], strides = [1, 1, 1]} : vector<4x8x8xf32> to vector<1x8x8xf32>
    %376 = vector.shape_cast %375 : vector<1x8x8xf32> to vector<8x8xf32>
    %377 = vector.extract_strided_slice %370 {offsets = [3, 0, 0], sizes = [1, 8, 8], strides = [1, 1, 1]} : vector<4x8x8xf32> to vector<1x8x8xf32>
    %378 = vector.shape_cast %377 : vector<1x8x8xf32> to vector<8x8xf32>
    %379 = tpu.concatenate %372, %374, %376, %378 in 1 : vector<8x8xf32>, vector<8x8xf32>, vector<8x8xf32>, vector<8x8xf32> -> vector<8x32xf32>
    %380 = arith.truncf %379 : vector<8x32xf32> to vector<8x32xbf16>
    %c2_133 = arith.constant 2 : index
    %c0_134 = arith.constant 0 : index
    %c0_135 = arith.constant 0 : index
    %381 = vector.load %arg7[%c2_133, %c0_134, %c0_135] : memref<3x32x32xbf16, #tpu.memory_space<vmem>>, vector<1x32x32xbf16>
    %382 = vector.shape_cast %381 : vector<1x32x32xbf16> to vector<32x32xbf16>
    %cst_136 = arith.constant dense<0.000000e+00> : vector<8x32xf32>
    %383 = tpu.matmul %380, %382, %cst_136 {dimension_numbers = #tpu.dot_dimension_numbers<[1], [0], [0], [1], [0, 0, 1, 1], [], []>} : vector<8x32xbf16>, vector<32x32xbf16>, vector<8x32xf32> -> vector<8x32xf32>
    %c2_137 = arith.constant 2 : index
    %c0_138 = arith.constant 0 : index
    %c0_139 = arith.constant 0 : index
    %384 = vector.load %arg8[%c2_137, %c0_138, %c0_139] : memref<3x1x32xf32, #tpu.memory_space<vmem>>, vector<1x1x32xf32>
    %385 = vector.shape_cast %384 : vector<1x1x32xf32> to vector<1x32xf32>
    %386 = vector.broadcast %385 : vector<1x32xf32> to vector<8x32xf32>
    %387 = arith.addf %383, %386 : vector<8x32xf32>
    %388 = arith.addf %316, %387 : vector<8x32xf32>
    %c2_140 = arith.constant 2 : index
    %c0_141 = arith.constant 0 : index
    %c0_142 = arith.constant 0 : index
    %389 = vector.load %arg9[%c2_140, %c0_141, %c0_142] : memref<3x1x32xf32, #tpu.memory_space<vmem>>, vector<1x1x32xf32>
    %390 = vector.shape_cast %389 : vector<1x1x32xf32> to vector<1x32xf32>
    %c2_143 = arith.constant 2 : index
    %c0_144 = arith.constant 0 : index
    %c0_145 = arith.constant 0 : index
    %391 = vector.load %arg10[%c2_143, %c0_144, %c0_145] : memref<3x1x32xf32, #tpu.memory_space<vmem>>, vector<1x1x32xf32>
    %392 = vector.shape_cast %391 : vector<1x1x32xf32> to vector<1x32xf32>
    %cst_146 = arith.constant dense<0.000000e+00> : vector<8xf32>
    %393 = vector.multi_reduction <add>, %388, %cst_146 [1] : vector<8x32xf32> to vector<8xf32>
    %394 = vector.shape_cast %393 : vector<8xf32> to vector<8x1xf32>
    %cst_147 = arith.constant 3.200000e+01 : f32
    %395 = vector.broadcast %cst_147 : f32 to vector<8x1xf32>
    %396 = arith.divf %394, %395 : vector<8x1xf32>
    %397 = vector.broadcast %396 : vector<8x1xf32> to vector<8x32xf32>
    %398 = arith.subf %388, %397 : vector<8x32xf32>
    %399 = arith.mulf %398, %398 : vector<8x32xf32>
    %cst_148 = arith.constant dense<0.000000e+00> : vector<8xf32>
    %400 = vector.multi_reduction <add>, %399, %cst_148 [1] : vector<8x32xf32> to vector<8xf32>
    %401 = vector.shape_cast %400 : vector<8xf32> to vector<8x1xf32>
    %cst_149 = arith.constant 3.200000e+01 : f32
    %402 = vector.broadcast %cst_149 : f32 to vector<8x1xf32>
    %403 = arith.divf %401, %402 : vector<8x1xf32>
    %cst_150 = arith.constant 9.99999996E-13 : f32
    %404 = vector.broadcast %cst_150 : f32 to vector<8x1xf32>
    %405 = arith.addf %403, %404 : vector<8x1xf32>
    %406 = math.rsqrt %405 : vector<8x1xf32>
    %407 = vector.broadcast %396 : vector<8x1xf32> to vector<8x32xf32>
    %408 = arith.subf %388, %407 : vector<8x32xf32>
    %409 = vector.broadcast %406 : vector<8x1xf32> to vector<8x32xf32>
    %410 = arith.mulf %408, %409 : vector<8x32xf32>
    %411 = vector.broadcast %390 : vector<1x32xf32> to vector<8x32xf32>
    %412 = arith.mulf %410, %411 : vector<8x32xf32>
    %413 = vector.broadcast %392 : vector<1x32xf32> to vector<8x32xf32>
    %414 = arith.addf %412, %413 : vector<8x32xf32>
    %415 = arith.truncf %414 : vector<8x32xf32> to vector<8x32xbf16>
    %c2_151 = arith.constant 2 : index
    %c0_152 = arith.constant 0 : index
    %c0_153 = arith.constant 0 : index
    %416 = vector.load %arg11[%c2_151, %c0_152, %c0_153] : memref<3x32x64xbf16, #tpu.memory_space<vmem>>, vector<1x32x64xbf16>
    %417 = vector.shape_cast %416 : vector<1x32x64xbf16> to vector<32x64xbf16>
    %cst_154 = arith.constant dense<0.000000e+00> : vector<8x64xf32>
    %418 = tpu.matmul %415, %417, %cst_154 {dimension_numbers = #tpu.dot_dimension_numbers<[1], [0], [0], [1], [0, 0, 1, 1], [], []>} : vector<8x32xbf16>, vector<32x64xbf16>, vector<8x64xf32> -> vector<8x64xf32>
    %c2_155 = arith.constant 2 : index
    %c0_156 = arith.constant 0 : index
    %c0_157 = arith.constant 0 : index
    %419 = vector.load %arg12[%c2_155, %c0_156, %c0_157] : memref<3x1x64xf32, #tpu.memory_space<vmem>>, vector<1x1x64xf32>
    %420 = vector.shape_cast %419 : vector<1x1x64xf32> to vector<1x64xf32>
    %421 = vector.broadcast %420 : vector<1x64xf32> to vector<8x64xf32>
    %422 = arith.addf %418, %421 : vector<8x64xf32>
    %423 = arith.mulf %422, %422 : vector<8x64xf32>
    %424 = arith.mulf %422, %423 : vector<8x64xf32>
    %cst_158 = arith.constant 4.471500e-02 : f32
    %425 = vector.broadcast %cst_158 : f32 to vector<8x64xf32>
    %426 = arith.mulf %425, %424 : vector<8x64xf32>
    %427 = arith.addf %422, %426 : vector<8x64xf32>
    %cst_159 = arith.constant 0.797884583 : f32
    %428 = vector.broadcast %cst_159 : f32 to vector<8x64xf32>
    %429 = arith.mulf %428, %427 : vector<8x64xf32>
    %430 = math.tanh %429 : vector<8x64xf32>
    %cst_160 = arith.constant 1.000000e+00 : f32
    %431 = vector.broadcast %cst_160 : f32 to vector<8x64xf32>
    %432 = arith.addf %431, %430 : vector<8x64xf32>
    %cst_161 = arith.constant 5.000000e-01 : f32
    %433 = vector.broadcast %cst_161 : f32 to vector<8x64xf32>
    %434 = arith.mulf %433, %432 : vector<8x64xf32>
    %435 = arith.mulf %422, %434 : vector<8x64xf32>
    %436 = arith.truncf %435 : vector<8x64xf32> to vector<8x64xbf16>
    %c2_162 = arith.constant 2 : index
    %c0_163 = arith.constant 0 : index
    %c0_164 = arith.constant 0 : index
    %437 = vector.load %arg13[%c2_162, %c0_163, %c0_164] : memref<3x64x32xbf16, #tpu.memory_space<vmem>>, vector<1x64x32xbf16>
    %438 = vector.shape_cast %437 : vector<1x64x32xbf16> to vector<64x32xbf16>
    %cst_165 = arith.constant dense<0.000000e+00> : vector<8x32xf32>
    %439 = tpu.matmul %436, %438, %cst_165 {dimension_numbers = #tpu.dot_dimension_numbers<[1], [0], [0], [1], [0, 0, 1, 1], [], []>} : vector<8x64xbf16>, vector<64x32xbf16>, vector<8x32xf32> -> vector<8x32xf32>
    %c2_166 = arith.constant 2 : index
    %c0_167 = arith.constant 0 : index
    %c0_168 = arith.constant 0 : index
    %440 = vector.load %arg14[%c2_166, %c0_167, %c0_168] : memref<3x1x32xf32, #tpu.memory_space<vmem>>, vector<1x1x32xf32>
    %441 = vector.shape_cast %440 : vector<1x1x32xf32> to vector<1x32xf32>
    %442 = vector.broadcast %441 : vector<1x32xf32> to vector<8x32xf32>
    %443 = arith.addf %439, %442 : vector<8x32xf32>
    %444 = arith.addf %414, %443 : vector<8x32xf32>
    %c2_169 = arith.constant 2 : index
    %c0_170 = arith.constant 0 : index
    %c0_171 = arith.constant 0 : index
    %445 = vector.load %arg15[%c2_169, %c0_170, %c0_171] : memref<3x1x32xf32, #tpu.memory_space<vmem>>, vector<1x1x32xf32>
    %446 = vector.shape_cast %445 : vector<1x1x32xf32> to vector<1x32xf32>
    %c2_172 = arith.constant 2 : index
    %c0_173 = arith.constant 0 : index
    %c0_174 = arith.constant 0 : index
    %447 = vector.load %arg16[%c2_172, %c0_173, %c0_174] : memref<3x1x32xf32, #tpu.memory_space<vmem>>, vector<1x1x32xf32>
    %448 = vector.shape_cast %447 : vector<1x1x32xf32> to vector<1x32xf32>
    %cst_175 = arith.constant dense<0.000000e+00> : vector<8xf32>
    %449 = vector.multi_reduction <add>, %444, %cst_175 [1] : vector<8x32xf32> to vector<8xf32>
    %450 = vector.shape_cast %449 : vector<8xf32> to vector<8x1xf32>
    %cst_176 = arith.constant 3.200000e+01 : f32
    %451 = vector.broadcast %cst_176 : f32 to vector<8x1xf32>
    %452 = arith.divf %450, %451 : vector<8x1xf32>
    %453 = vector.broadcast %452 : vector<8x1xf32> to vector<8x32xf32>
    %454 = arith.subf %444, %453 : vector<8x32xf32>
    %455 = arith.mulf %454, %454 : vector<8x32xf32>
    %cst_177 = arith.constant dense<0.000000e+00> : vector<8xf32>
    %456 = vector.multi_reduction <add>, %455, %cst_177 [1] : vector<8x32xf32> to vector<8xf32>
    %457 = vector.shape_cast %456 : vector<8xf32> to vector<8x1xf32>
    %cst_178 = arith.constant 3.200000e+01 : f32
    %458 = vector.broadcast %cst_178 : f32 to vector<8x1xf32>
    %459 = arith.divf %457, %458 : vector<8x1xf32>
    %cst_179 = arith.constant 9.99999996E-13 : f32
    %460 = vector.broadcast %cst_179 : f32 to vector<8x1xf32>
    %461 = arith.addf %459, %460 : vector<8x1xf32>
    %462 = math.rsqrt %461 : vector<8x1xf32>
    %463 = vector.broadcast %452 : vector<8x1xf32> to vector<8x32xf32>
    %464 = arith.subf %444, %463 : vector<8x32xf32>
    %465 = vector.broadcast %462 : vector<8x1xf32> to vector<8x32xf32>
    %466 = arith.mulf %464, %465 : vector<8x32xf32>
    %467 = vector.broadcast %446 : vector<1x32xf32> to vector<8x32xf32>
    %468 = arith.mulf %466, %467 : vector<8x32xf32>
    %469 = vector.broadcast %448 : vector<1x32xf32> to vector<8x32xf32>
    %470 = arith.addf %468, %469 : vector<8x32xf32>
    %471 = vector.extract_strided_slice %470 {offsets = [0, 0], sizes = [1, 32], strides = [1, 1]} : vector<8x32xf32> to vector<1x32xf32>
    %472 = vector.extract_strided_slice %470 {offsets = [1, 0], sizes = [1, 32], strides = [1, 1]} : vector<8x32xf32> to vector<1x32xf32>
    %473 = vector.extract_strided_slice %470 {offsets = [2, 0], sizes = [1, 32], strides = [1, 1]} : vector<8x32xf32> to vector<1x32xf32>
    %474 = vector.extract_strided_slice %470 {offsets = [3, 0], sizes = [1, 32], strides = [1, 1]} : vector<8x32xf32> to vector<1x32xf32>
    %475 = vector.extract_strided_slice %470 {offsets = [4, 0], sizes = [1, 32], strides = [1, 1]} : vector<8x32xf32> to vector<1x32xf32>
    %476 = vector.extract_strided_slice %470 {offsets = [5, 0], sizes = [1, 32], strides = [1, 1]} : vector<8x32xf32> to vector<1x32xf32>
    %477 = vector.extract_strided_slice %470 {offsets = [6, 0], sizes = [1, 32], strides = [1, 1]} : vector<8x32xf32> to vector<1x32xf32>
    %478 = vector.extract_strided_slice %470 {offsets = [7, 0], sizes = [1, 32], strides = [1, 1]} : vector<8x32xf32> to vector<1x32xf32>
    %479 = tpu.concatenate %471, %472, %473, %474, %475, %476, %477, %478 in 1 : vector<1x32xf32>, vector<1x32xf32>, vector<1x32xf32>, vector<1x32xf32>, vector<1x32xf32>, vector<1x32xf32>, vector<1x32xf32>, vector<1x32xf32> -> vector<1x256xf32>
    %c0_180 = arith.constant 0 : index
    %c0_181 = arith.constant 0 : index
    %c0_182 = arith.constant 0 : index
    %480 = vector.load %arg17[%c0_180, %c0_181, %c0_182] : memref<1x1x256xf32, #tpu.memory_space<vmem>>, vector<1x1x256xf32>
    %481 = vector.shape_cast %480 : vector<1x1x256xf32> to vector<1x256xf32>
    %482 = vector.shape_cast %479 : vector<1x256xf32> to vector<1x1x256xf32>
    tpu.vector_store %arg17[%c0_180, %c0_181, %c0_182], %482 {strides = array<i32>} : memref<1x1x256xf32, #tpu.memory_space<vmem>>, vector<1x1x256xf32>,
    return
  }
  func.func @transform_0(%arg0: i32) -> (i32, i32, i32) {
    %c0_i32 = arith.constant 0 : i32
    %c0_i32_0 = arith.constant 0 : i32
    %c0_i32_1 = arith.constant 0 : i32
    return %arg0, %c0_i32, %c0_i32_0 : i32, i32, i32
  }
  func.func @transform_1(%arg0: i32) -> (i32, i32) {
    %c0_i32 = arith.constant 0 : i32
    %c0_i32_0 = arith.constant 0 : i32
    %c0_i32_1 = arith.constant 0 : i32
    return %c0_i32, %c0_i32_0 : i32, i32
  }
  func.func @transform_2(%arg0: i32) -> (i32, i32) {
    %c0_i32 = arith.constant 0 : i32
    %c0_i32_0 = arith.constant 0 : i32
    %c0_i32_1 = arith.constant 0 : i32
    return %c0_i32, %c0_i32_0 : i32, i32
  }
  func.func @transform_3(%arg0: i32) -> (i32, i32) {
    %c0_i32 = arith.constant 0 : i32
    %c0_i32_0 = arith.constant 0 : i32
    %c0_i32_1 = arith.constant 0 : i32
    return %c0_i32, %c0_i32_0 : i32, i32
  }
  func.func @transform_4(%arg0: i32) -> (i32, i32, i32) {
    %c0_i32 = arith.constant 0 : i32
    %c0_i32_0 = arith.constant 0 : i32
    %c0_i32_1 = arith.constant 0 : i32
    %c0_i32_2 = arith.constant 0 : i32
    return %c0_i32, %c0_i32_0, %c0_i32_1 : i32, i32, i32
  }
  func.func @transform_5(%arg0: i32) -> (i32, i32, i32) {
    %c0_i32 = arith.constant 0 : i32
    %c0_i32_0 = arith.constant 0 : i32
    %c0_i32_1 = arith.constant 0 : i32
    %c0_i32_2 = arith.constant 0 : i32
    return %c0_i32, %c0_i32_0, %c0_i32_1 : i32, i32, i32
  }
  func.func @transform_6(%arg0: i32) -> (i32, i32, i32) {
    %c0_i32 = arith.constant 0 : i32
    %c0_i32_0 = arith.constant 0 : i32
    %c0_i32_1 = arith.constant 0 : i32
    %c0_i32_2 = arith.constant 0 : i32
    return %c0_i32, %c0_i32_0, %c0_i32_1 : i32, i32, i32
  }
  func.func @transform_7(%arg0: i32) -> (i32, i32, i32) {
    %c0_i32 = arith.constant 0 : i32
    %c0_i32_0 = arith.constant 0 : i32
    %c0_i32_1 = arith.constant 0 : i32
    %c0_i32_2 = arith.constant 0 : i32
    return %c0_i32, %c0_i32_0, %c0_i32_1 : i32, i32, i32
  }
  func.func @transform_8(%arg0: i32) -> (i32, i32, i32) {
    %c0_i32 = arith.constant 0 : i32
    %c0_i32_0 = arith.constant 0 : i32
    %c0_i32_1 = arith.constant 0 : i32
    %c0_i32_2 = arith.constant 0 : i32
    return %c0_i32, %c0_i32_0, %c0_i32_1 : i32, i32, i32
  }
  func.func @transform_9(%arg0: i32) -> (i32, i32, i32) {
    %c0_i32 = arith.constant 0 : i32
    %c0_i32_0 = arith.constant 0 : i32
    %c0_i32_1 = arith.constant 0 : i32
    %c0_i32_2 = arith.constant 0 : i32
    return %c0_i32, %c0_i32_0, %c0_i32_1 : i32, i32, i32
  }
  func.func @transform_10(%arg0: i32) -> (i32, i32, i32) {
    %c0_i32 = arith.constant 0 : i32
    %c0_i32_0 = arith.constant 0 : i32
    %c0_i32_1 = arith.constant 0 : i32
    %c0_i32_2 = arith.constant 0 : i32
    return %c0_i32, %c0_i32_0, %c0_i32_1 : i32, i32, i32
  }
  func.func @transform_11(%arg0: i32) -> (i32, i32, i32) {
    %c0_i32 = arith.constant 0 : i32
    %c0_i32_0 = arith.constant 0 : i32
    %c0_i32_1 = arith.constant 0 : i32
    %c0_i32_2 = arith.constant 0 : i32
    return %c0_i32, %c0_i32_0, %c0_i32_1 : i32, i32, i32
  }
  func.func @transform_12(%arg0: i32) -> (i32, i32, i32) {
    %c0_i32 = arith.constant 0 : i32
    %c0_i32_0 = arith.constant 0 : i32
    %c0_i32_1 = arith.constant 0 : i32
    %c0_i32_2 = arith.constant 0 : i32
    return %c0_i32, %c0_i32_0, %c0_i32_1 : i32, i32, i32
  }
  func.func @transform_13(%arg0: i32) -> (i32, i32, i32) {
    %c0_i32 = arith.constant 0 : i32
    %c0_i32_0 = arith.constant 0 : i32
    %c0_i32_1 = arith.constant 0 : i32
    %c0_i32_2 = arith.constant 0 : i32
    return %c0_i32, %c0_i32_0, %c0_i32_1 : i32, i32, i32
  }
  func.func @transform_14(%arg0: i32) -> (i32, i32, i32) {
    %c0_i32 = arith.constant 0 : i32
    %c0_i32_0 = arith.constant 0 : i32
    %c0_i32_1 = arith.constant 0 : i32
    %c0_i32_2 = arith.constant 0 : i32
    return %c0_i32, %c0_i32_0, %c0_i32_1 : i32, i32, i32
  }
  func.func @transform_15(%arg0: i32) -> (i32, i32, i32) {
    %c0_i32 = arith.constant 0 : i32
    %c0_i32_0 = arith.constant 0 : i32
    %c0_i32_1 = arith.constant 0 : i32
    %c0_i32_2 = arith.constant 0 : i32
    return %c0_i32, %c0_i32_0, %c0_i32_1 : i32, i32, i32
  }
  func.func @transform_16(%arg0: i32) -> (i32, i32, i32) {
    %c0_i32 = arith.constant 0 : i32
    %c0_i32_0 = arith.constant 0 : i32
    %c0_i32_1 = arith.constant 0 : i32
    return %arg0, %c0_i32, %c0_i32_0 : i32, i32, i32
  }
}

</mosaic_0001>

<llo_original>
// kernel: tpu_custom_call.1
$region0: #{tpu_custom_call.1}
  #allocation0 [shape = 'u32[]', space=smem, size = 0x4, offset = 0x4, fixed_abs, tag = 'smem constant byte address 0x4 - core index']
  #allocation1 [shape = 'u32[72,128]{1,0:T(1,128)}', space=vmem, size = 0x9000, scoped, tag = 'internal scratch']
  %s0 = inlined_call_operand.vmem [shape: bf16[2,8,256], index: 0, kind: input, shape index: {}]
  %s1 = inlined_call_operand.vmem [shape: f32[8,32], index: 1, kind: input, shape index: {}]
  %s2 = inlined_call_operand.vmem [shape: bf16[256,32], index: 2, kind: input, shape index: {}]
  %s3 = inlined_call_operand.vmem [shape: f32[1,32], index: 3, kind: input, shape index: {}]
  %s4 = inlined_call_operand.vmem [shape: bf16[3,32,96], index: 4, kind: input, shape index: {}]
  %s5 = inlined_call_operand.vmem [shape: f32[3,1,96], index: 5, kind: input, shape index: {}]
  %s6 = inlined_call_operand.vmem [shape: bf16[3,32,32], index: 6, kind: input, shape index: {}]
  %s7 = inlined_call_operand.vmem [shape: f32[3,1,32], index: 7, kind: input, shape index: {}]
  %s8 = inlined_call_operand.vmem [shape: f32[3,1,32], index: 8, kind: input, shape index: {}]
  %s9 = inlined_call_operand.vmem [shape: f32[3,1,32], index: 9, kind: input, shape index: {}]
  %s10 = inlined_call_operand.vmem [shape: bf16[3,32,64], index: 10, kind: input, shape index: {}]
  %s11 = inlined_call_operand.vmem [shape: f32[3,1,64], index: 11, kind: input, shape index: {}]
  %s12 = inlined_call_operand.vmem [shape: bf16[3,64,32], index: 12, kind: input, shape index: {}]
  %s13 = inlined_call_operand.vmem [shape: f32[3,1,32], index: 13, kind: input, shape index: {}]
  %s14 = inlined_call_operand.vmem [shape: f32[3,1,32], index: 14, kind: input, shape index: {}]
  %s15 = inlined_call_operand.vmem [shape: f32[3,1,32], index: 15, kind: input, shape index: {}]
  %s16 = inlined_call_operand.hbm [shape: f32[2,1,256], index: 16, kind: output, shape index: {}]
  %s17 = sld [smem:[#allocation0]]
  $region97: #{tpu_custom_call.1} parent=0
    _
  %s19 = ssub.s32 1, %s17
  %s20 = scalar_select 0, %s19, %s17
  $region1: #{tpu_custom_call.1} parent=0
    #allocation2 [shape = 'u8[2048]{0}', space=vmem, size = 0x800, scoped, tag = 'output window, operand 0']
    #allocation3 [shape = 's32[2]{0}', space=sflag, size = 0x8, scoped, tag = 'scoped memory for tpu_custom_call.1']
    %21 = vsyncpa [#allocation3], 0
    %s22 = scalar_lea.sflag [#allocation3], 1
    %23 = vsyncpa %s22, 0
    loop: start=0, step=1, limit=4
    $region2: #{tpu_custom_call.1} parent=1 // loop_pre_header
      _
    $region3: #{tpu_custom_call.1} parent=1 // loop_header
      %s25 = sphi 0, %s29
      %p26 = scmp.ge.s32.totalorder %s25, 4
      %s35 = sphi 0, %s37
      %s38 = sphi 0, %s35
      %s39 = sphi 0, %s38
      %s55 = sphi 0, %s39
      %s59 = sphi 0, %s59
      %s61 = sphi 0, %s59
      %s62 = sphi 0, %s61
      %s76 = sphi 0, %s62
      %s80 = sphi 0, %s80
      %s82 = sphi 0, %s80
      %s83 = sphi 0, %s82
      %s97 = sphi 0, %s83
      %s101 = sphi 0, %s101
      %s103 = sphi 0, %s101
      %s104 = sphi 0, %s103
      %s118 = sphi 0, %s104
      %s122 = sphi 0, %s122
      %s124 = sphi 0, %s122
      %s125 = sphi 0, %s124
      %s139 = sphi 0, %s125
      %s143 = sphi 0, %s143
      %s145 = sphi 0, %s143
      %s146 = sphi 0, %s145
      %s160 = sphi 0, %s146
      %s164 = sphi 0, %s164
      %s166 = sphi 0, %s164
      %s167 = sphi 0, %s166
      %s181 = sphi 0, %s167
      %s185 = sphi 0, %s185
      %s187 = sphi 0, %s185
      %s188 = sphi 0, %s187
      %s202 = sphi 0, %s188
      %s206 = sphi 0, %s206
      %s208 = sphi 0, %s206
      %s209 = sphi 0, %s208
      %s223 = sphi 0, %s209
      %s227 = sphi 0, %s227
      %s229 = sphi 0, %s227
      %s230 = sphi 0, %s229
      %s244 = sphi 0, %s230
      %s248 = sphi 0, %s248
      %s250 = sphi 0, %s248
      %s251 = sphi 0, %s250
      %s265 = sphi 0, %s251
      %s269 = sphi 0, %s269
      %s271 = sphi 0, %s269
      %s272 = sphi 0, %s271
      %s286 = sphi 0, %s272
      %s290 = sphi 0, %s290
      %s292 = sphi 0, %s290
      %s293 = sphi 0, %s292
      %s307 = sphi 0, %s293
      %s311 = sphi 0, %s311
      %s313 = sphi 0, %s311
      %s314 = sphi 0, %s313
      %s328 = sphi 0, %s314
      %s332 = sphi 0, %s332
      %s334 = sphi 0, %s332
      %s335 = sphi 0, %s334
      %s349 = sphi 0, %s335
      %s353 = sphi 0, %s353
      %s355 = sphi 0, %s353
      %s356 = sphi 0, %s355
      %s370 = sphi 0, %s356
      %s376 = sphi 0, %s378
      %s379 = sphi 0, %s376
      %s380 = sphi 0, %s379
      %s396 = sphi 0, %s380
    $region4: #{tpu_custom_call.1} parent=1 // loop_header_branch
      %28 = sbr.rel (%p26) target = $region8
    $region5: #{tpu_custom_call.1} parent=1 // loop_body
      %s30 = ssub.s32 %s25, 1
      %s31 = ssub.s32 %s25, 2
      %s32 = sadd.s32 %s25, 1
      %s33 = ssub.s32 %s25, %s32
      %p34 = scmp.eq.s32.totalorder %s33, 0
      %s36 = sadd.s32 %s35, 1
      %s37 = scalar_select %p34, %s35, %s36
      %p40 = pneg %p34
      %p41 = scmp.eq.s32.totalorder %s25, 1
      %p42 = por %p40, %p41
      %p43 = scmp.ne.s32.totalorder %s35, %s38
      %p44 = scmp.eq.s32.totalorder %s25, 0
      %p45 = por %p43, %p44
      %p46 = scmp.ne.s32.totalorder %s35, %s38
      %p47 = scmp.eq.s32.totalorder %s30, 1
      %p48 = por %p46, %p47
      %p49 = scmp.ne.s32.totalorder %s38, %s39
      %p50 = scmp.eq.s32.totalorder %s30, 0
      %p51 = por %p49, %p50
      %p52 = scmp.ne.s32.totalorder %s38, %s39
      %p53 = scmp.eq.s32.totalorder %s31, 1
      %p54 = por %p52, %p53
      %p56 = scmp.ne.s32.totalorder %s39, %s55
      %p57 = scmp.eq.s32.totalorder %s31, 0
      %p58 = por %p56, %p57
      %s60 = sadd.s32 %s59, 1
      %p63 = scmp.eq.s32.totalorder %s25, 1
      %p64 = scmp.ne.s32.totalorder %s59, %s61
      %p65 = scmp.eq.s32.totalorder %s25, 0
      %p66 = por %p64, %p65
      %p67 = scmp.ne.s32.totalorder %s59, %s61
      %p68 = scmp.eq.s32.totalorder %s30, 1
      %p69 = por %p67, %p68
      %p70 = scmp.ne.s32.totalorder %s61, %s62
      %p71 = scmp.eq.s32.totalorder %s30, 0
      %p72 = por %p70, %p71
      %p73 = scmp.ne.s32.totalorder %s61, %s62
      %p74 = scmp.eq.s32.totalorder %s31, 1
      %p75 = por %p73, %p74
      %p77 = scmp.ne.s32.totalorder %s62, %s76
      %p78 = scmp.eq.s32.totalorder %s31, 0
      %p79 = por %p77, %p78
      %s81 = sadd.s32 %s80, 1
      %p84 = scmp.eq.s32.totalorder %s25, 1
      %p85 = scmp.ne.s32.totalorder %s80, %s82
      %p86 = scmp.eq.s32.totalorder %s25, 0
      %p87 = por %p85, %p86
      %p88 = scmp.ne.s32.totalorder %s80, %s82
      %p89 = scmp.eq.s32.totalorder %s30, 1
      %p90 = por %p88, %p89
      %p91 = scmp.ne.s32.totalorder %s82, %s83
      %p92 = scmp.eq.s32.totalorder %s30, 0
      %p93 = por %p91, %p92
      %p94 = scmp.ne.s32.totalorder %s82, %s83
      %p95 = scmp.eq.s32.totalorder %s31, 1
      %p96 = por %p94, %p95
      %p98 = scmp.ne.s32.totalorder %s83, %s97
      %p99 = scmp.eq.s32.totalorder %s31, 0
      %p100 = por %p98, %p99
      %s102 = sadd.s32 %s101, 1
      %p105 = scmp.eq.s32.totalorder %s25, 1
      %p106 = scmp.ne.s32.totalorder %s101, %s103
      %p107 = scmp.eq.s32.totalorder %s25, 0
      %p108 = por %p106, %p107
      %p109 = scmp.ne.s32.totalorder %s101, %s103
      %p110 = scmp.eq.s32.totalorder %s30, 1
      %p111 = por %p109, %p110
      %p112 = scmp.ne.s32.totalorder %s103, %s104
      %p113 = scmp.eq.s32.totalorder %s30, 0
      %p114 = por %p112, %p113
      %p115 = scmp.ne.s32.totalorder %s103, %s104
      %p116 = scmp.eq.s32.totalorder %s31, 1
      %p117 = por %p115, %p116
      %p119 = scmp.ne.s32.totalorder %s104, %s118
      %p120 = scmp.eq.s32.totalorder %s31, 0
      %p121 = por %p119, %p120
      %s123 = sadd.s32 %s122, 1
      %p126 = scmp.eq.s32.totalorder %s25, 1
      %p127 = scmp.ne.s32.totalorder %s122, %s124
      %p128 = scmp.eq.s32.totalorder %s25, 0
      %p129 = por %p127, %p128
      %p130 = scmp.ne.s32.totalorder %s122, %s124
      %p131 = scmp.eq.s32.totalorder %s30, 1
      %p132 = por %p130, %p131
      %p133 = scmp.ne.s32.totalorder %s124, %s125
      %p134 = scmp.eq.s32.totalorder %s30, 0
      %p135 = por %p133, %p134
      %p136 = scmp.ne.s32.totalorder %s124, %s125
      %p137 = scmp.eq.s32.totalorder %s31, 1
      %p138 = por %p136, %p137
      %p140 = scmp.ne.s32.totalorder %s125, %s139
      %p141 = scmp.eq.s32.totalorder %s31, 0
      %p142 = por %p140, %p141
      %s144 = sadd.s32 %s143, 1
      %p147 = scmp.eq.s32.totalorder %s25, 1
      %p148 = scmp.ne.s32.totalorder %s143, %s145
      %p149 = scmp.eq.s32.totalorder %s25, 0
      %p150 = por %p148, %p149
      %p151 = scmp.ne.s32.totalorder %s143, %s145
      %p152 = scmp.eq.s32.totalorder %s30, 1
      %p153 = por %p151, %p152
      %p154 = scmp.ne.s32.totalorder %s145, %s146
      %p155 = scmp.eq.s32.totalorder %s30, 0
      %p156 = por %p154, %p155
      %p157 = scmp.ne.s32.totalorder %s145, %s146
      %p158 = scmp.eq.s32.totalorder %s31, 1
      %p159 = por %p157, %p158
      %p161 = scmp.ne.s32.totalorder %s146, %s160
      %p162 = scmp.eq.s32.totalorder %s31, 0
      %p163 = por %p161, %p162
      %s165 = sadd.s32 %s164, 1
      %p168 = scmp.eq.s32.totalorder %s25, 1
      %p169 = scmp.ne.s32.totalorder %s164, %s166
      %p170 = scmp.eq.s32.totalorder %s25, 0
      %p171 = por %p169, %p170
      %p172 = scmp.ne.s32.totalorder %s164, %s166
      %p173 = scmp.eq.s32.totalorder %s30, 1
      %p174 = por %p172, %p173
      %p175 = scmp.ne.s32.totalorder %s166, %s167
      %p176 = scmp.eq.s32.totalorder %s30, 0
      %p177 = por %p175, %p176
      %p178 = scmp.ne.s32.totalorder %s166, %s167
      %p179 = scmp.eq.s32.totalorder %s31, 1
      %p180 = por %p178, %p179
      %p182 = scmp.ne.s32.totalorder %s167, %s181
      %p183 = scmp.eq.s32.totalorder %s31, 0
      %p184 = por %p182, %p183
      %s186 = sadd.s32 %s185, 1
      %p189 = scmp.eq.s32.totalorder %s25, 1
      %p190 = scmp.ne.s32.totalorder %s185, %s187
      %p191 = scmp.eq.s32.totalorder %s25, 0
      %p192 = por %p190, %p191
      %p193 = scmp.ne.s32.totalorder %s185, %s187
      %p194 = scmp.eq.s32.totalorder %s30, 1
      %p195 = por %p193, %p194
      %p196 = scmp.ne.s32.totalorder %s187, %s188
      %p197 = scmp.eq.s32.totalorder %s30, 0
      %p198 = por %p196, %p197
      %p199 = scmp.ne.s32.totalorder %s187, %s188
      %p200 = scmp.eq.s32.totalorder %s31, 1
      %p201 = por %p199, %p200
      %p203 = scmp.ne.s32.totalorder %s188, %s202
      %p204 = scmp.eq.s32.totalorder %s31, 0
      %p205 = por %p203, %p204
      %s207 = sadd.s32 %s206, 1
      %p210 = scmp.eq.s32.totalorder %s25, 1
      %p211 = scmp.ne.s32.totalorder %s206, %s208
      %p212 = scmp.eq.s32.totalorder %s25, 0
      %p213 = por %p211, %p212
      %p214 = scmp.ne.s32.totalorder %s206, %s208
      %p215 = scmp.eq.s32.totalorder %s30, 1
      %p216 = por %p214, %p215
      %p217 = scmp.ne.s32.totalorder %s208, %s209
      %p218 = scmp.eq.s32.totalorder %s30, 0
      %p219 = por %p217, %p218
      %p220 = scmp.ne.s32.totalorder %s208, %s209
      %p221 = scmp.eq.s32.totalorder %s31, 1
      %p222 = por %p220, %p221
      %p224 = scmp.ne.s32.totalorder %s209, %s223
      %p225 = scmp.eq.s32.totalorder %s31, 0
      %p226 = por %p224, %p225
      %s228 = sadd.s32 %s227, 1
      %p231 = scmp.eq.s32.totalorder %s25, 1
      %p232 = scmp.ne.s32.totalorder %s227, %s229
      %p233 = scmp.eq.s32.totalorder %s25, 0
      %p234 = por %p232, %p233
      %p235 = scmp.ne.s32.totalorder %s227, %s229
      %p236 = scmp.eq.s32.totalorder %s30, 1
      %p237 = por %p235, %p236
      %p238 = scmp.ne.s32.totalorder %s229, %s230
      %p239 = scmp.eq.s32.totalorder %s30, 0
      %p240 = por %p238, %p239
      %p241 = scmp.ne.s32.totalorder %s229, %s230
      %p242 = scmp.eq.s32.totalorder %s31, 1
      %p243 = por %p241, %p242
      %p245 = scmp.ne.s32.totalorder %s230, %s244
      %p246 = scmp.eq.s32.totalorder %s31, 0
      %p247 = por %p245, %p246
      %s249 = sadd.s32 %s248, 1
      %p252 = scmp.eq.s32.totalorder %s25, 1
      %p253 = scmp.ne.s32.totalorder %s248, %s250
      %p254 = scmp.eq.s32.totalorder %s25, 0
      %p255 = por %p253, %p254
      %p256 = scmp.ne.s32.totalorder %s248, %s250
      %p257 = scmp.eq.s32.totalorder %s30, 1
      %p258 = por %p256, %p257
      %p259 = scmp.ne.s32.totalorder %s250, %s251
      %p260 = scmp.eq.s32.totalorder %s30, 0
      %p261 = por %p259, %p260
      %p262 = scmp.ne.s32.totalorder %s250, %s251
      %p263 = scmp.eq.s32.totalorder %s31, 1
      %p264 = por %p262, %p263
      %p266 = scmp.ne.s32.totalorder %s251, %s265
      %p267 = scmp.eq.s32.totalorder %s31, 0
      %p268 = por %p266, %p267
      %s270 = sadd.s32 %s269, 1
      %p273 = scmp.eq.s32.totalorder %s25, 1
      %p274 = scmp.ne.s32.totalorder %s269, %s271
      %p275 = scmp.eq.s32.totalorder %s25, 0
      %p276 = por %p274, %p275
      %p277 = scmp.ne.s32.totalorder %s269, %s271
      %p278 = scmp.eq.s32.totalorder %s30, 1
      %p279 = por %p277, %p278
      %p280 = scmp.ne.s32.totalorder %s271, %s272
      %p281 = scmp.eq.s32.totalorder %s30, 0
      %p282 = por %p280, %p281
      %p283 = scmp.ne.s32.totalorder %s271, %s272
      %p284 = scmp.eq.s32.totalorder %s31, 1
      %p285 = por %p283, %p284
      %p287 = scmp.ne.s32.totalorder %s272, %s286
      %p288 = scmp.eq.s32.totalorder %s31, 0
      %p289 = por %p287, %p288
      %s291 = sadd.s32 %s290, 1
      %p294 = scmp.eq.s32.totalorder %s25, 1
      %p295 = scmp.ne.s32.totalorder %s290, %s292
      %p296 = scmp.eq.s32.totalorder %s25, 0
      %p297 = por %p295, %p296
      %p298 = scmp.ne.s32.totalorder %s290, %s292
      %p299 = scmp.eq.s32.totalorder %s30, 1
      %p300 = por %p298, %p299
      %p301 = scmp.ne.s32.totalorder %s292, %s293
      %p302 = scmp.eq.s32.totalorder %s30, 0
      %p303 = por %p301, %p302
      %p304 = scmp.ne.s32.totalorder %s292, %s293
      %p305 = scmp.eq.s32.totalorder %s31, 1
      %p306 = por %p304, %p305
      %p308 = scmp.ne.s32.totalorder %s293, %s307
      %p309 = scmp.eq.s32.totalorder %s31, 0
      %p310 = por %p308, %p309
      %s312 = sadd.s32 %s311, 1
      %p315 = scmp.eq.s32.totalorder %s25, 1
      %p316 = scmp.ne.s32.totalorder %s311, %s313
      %p317 = scmp.eq.s32.totalorder %s25, 0
      %p318 = por %p316, %p317
      %p319 = scmp.ne.s32.totalorder %s311, %s313
      %p320 = scmp.eq.s32.totalorder %s30, 1
      %p321 = por %p319, %p320
      %p322 = scmp.ne.s32.totalorder %s313, %s314
      %p323 = scmp.eq.s32.totalorder %s30, 0
      %p324 = por %p322, %p323
      %p325 = scmp.ne.s32.totalorder %s313, %s314
      %p326 = scmp.eq.s32.totalorder %s31, 1
      %p327 = por %p325, %p326
      %p329 = scmp.ne.s32.totalorder %s314, %s328
      %p330 = scmp.eq.s32.totalorder %s31, 0
      %p331 = por %p329, %p330
      %s333 = sadd.s32 %s332, 1
      %p336 = scmp.eq.s32.totalorder %s25, 1
      %p337 = scmp.ne.s32.totalorder %s332, %s334
      %p338 = scmp.eq.s32.totalorder %s25, 0
      %p339 = por %p337, %p338
      %p340 = scmp.ne.s32.totalorder %s332, %s334
      %p341 = scmp.eq.s32.totalorder %s30, 1
      %p342 = por %p340, %p341
      %p343 = scmp.ne.s32.totalorder %s334, %s335
      %p344 = scmp.eq.s32.totalorder %s30, 0
      %p345 = por %p343, %p344
      %p346 = scmp.ne.s32.totalorder %s334, %s335
      %p347 = scmp.eq.s32.totalorder %s31, 1
      %p348 = por %p346, %p347
      %p350 = scmp.ne.s32.totalorder %s335, %s349
      %p351 = scmp.eq.s32.totalorder %s31, 0
      %p352 = por %p350, %p351
      %s354 = sadd.s32 %s353, 1
      %p357 = scmp.eq.s32.totalorder %s25, 1
      %p358 = scmp.ne.s32.totalorder %s353, %s355
      %p359 = scmp.eq.s32.totalorder %s25, 0
      %p360 = por %p358, %p359
      %p361 = scmp.ne.s32.totalorder %s353, %s355
      %p362 = scmp.eq.s32.totalorder %s30, 1
      %p363 = por %p361, %p362
      %p364 = scmp.ne.s32.totalorder %s355, %s356
      %p365 = scmp.eq.s32.totalorder %s30, 0
      %p366 = por %p364, %p365
      %p367 = scmp.ne.s32.totalorder %s355, %s356
      %p368 = scmp.eq.s32.totalorder %s31, 1
      %p369 = por %p367, %p368
      %p371 = scmp.ne.s32.totalorder %s356, %s370
      %p372 = scmp.eq.s32.totalorder %s31, 0
      %p373 = por %p371, %p372
      %s374 = ssub.s32 %s25, %s32
      %p375 = scmp.eq.s32.totalorder %s374, 0
      %s377 = sadd.s32 %s376, 1
      %s378 = scalar_select %p375, %s376, %s377
      %p381 = pneg %p375
      %p382 = scmp.eq.s32.totalorder %s25, 1
      %p383 = por %p381, %p382
      %p384 = scmp.ne.s32.totalorder %s376, %s379
      %p385 = scmp.eq.s32.totalorder %s25, 0
      %p386 = por %p384, %p385
      %p387 = scmp.ne.s32.totalorder %s376, %s379
      %p388 = scmp.eq.s32.totalorder %s30, 1
      %p389 = por %p387, %p388
      %p390 = scmp.ne.s32.totalorder %s379, %s380
      %p391 = scmp.eq.s32.totalorder %s30, 0
      %p392 = por %p390, %p391
      %p393 = scmp.ne.s32.totalorder %s379, %s380
      %p394 = scmp.eq.s32.totalorder %s31, 1
      %p395 = por %p393, %p394
      %p397 = scmp.ne.s32.totalorder %s380, %s396
      %p398 = scmp.eq.s32.totalorder %s31, 0
      %p399 = por %p397, %p398
      %p400 = scmp.le.s32.totalorder 1, %s25
      %p401 = scmp.lt.s32.totalorder %s25, 3
      %p402 = pnand %p400, %p401
      %p403 = pneg %p402
      // Predicated region
      $region9: #{tpu_custom_call.1} parent=5 // pred_check
        _
      $region10: #{tpu_custom_call.1} parent=5 // pred_check_branch
        %405 = sbr.rel (%p402) target = $region12
      $region11: #{tpu_custom_call.1} parent=5 // pred_region
        %s406 = ssub.s32 %s25, 1
        // Predicated region
        $region13: #{tpu_custom_call.1} parent=11 // pred_check
          %p407 = pneg %p72
        $region14: #{tpu_custom_call.1} parent=11 // pred_check_branch
          %409 = sbr.rel (%p407) target = $region16
        $region15: #{tpu_custom_call.1} parent=11 // pred_region
          _
        $region16: #{tpu_custom_call.1} parent=11 // pred_fallthru
          _
        // Predicated region
        $region17: #{tpu_custom_call.1} parent=11 // pred_check
          %p410 = pneg %p93
        $region18: #{tpu_custom_call.1} parent=11 // pred_check_branch
          %412 = sbr.rel (%p410) target = $region20
        $region19: #{tpu_custom_call.1} parent=11 // pred_region
          _
        $region20: #{tpu_custom_call.1} parent=11 // pred_fallthru
          _
        // Predicated region
        $region21: #{tpu_custom_call.1} parent=11 // pred_check
          %p413 = pneg %p114
        $region22: #{tpu_custom_call.1} parent=11 // pred_check_branch
          %415 = sbr.rel (%p413) target = $region24
        $region23: #{tpu_custom_call.1} parent=11 // pred_region
          _
        $region24: #{tpu_custom_call.1} parent=11 // pred_fallthru
          _
        // Predicated region
        $region25: #{tpu_custom_call.1} parent=11 // pred_check
          %p416 = pneg %p135
        $region26: #{tpu_custom_call.1} parent=11 // pred_check_branch
          %418 = sbr.rel (%p416) target = $region28
        $region27: #{tpu_custom_call.1} parent=11 // pred_region
          _
        $region28: #{tpu_custom_call.1} parent=11 // pred_fallthru
          _
        // Predicated region
        $region29: #{tpu_custom_call.1} parent=11 // pred_check
          %p419 = pneg %p156
        $region30: #{tpu_custom_call.1} parent=11 // pred_check_branch
          %421 = sbr.rel (%p419) target = $region32
        $region31: #{tpu_custom_call.1} parent=11 // pred_region
          _
        $region32: #{tpu_custom_call.1} parent=11 // pred_fallthru
          _
        // Predicated region
        $region33: #{tpu_custom_call.1} parent=11 // pred_check
          %p422 = pneg %p177
        $region34: #{tpu_custom_call.1} parent=11 // pred_check_branch
          %424 = sbr.rel (%p422) target = $region36
        $region35: #{tpu_custom_call.1} parent=11 // pred_region
          _
        $region36: #{tpu_custom_call.1} parent=11 // pred_fallthru
          _
        // Predicated region
        $region37: #{tpu_custom_call.1} parent=11 // pred_check
          %p425 = pneg %p198
        $region38: #{tpu_custom_call.1} parent=11 // pred_check_branch
          %427 = sbr.rel (%p425) target = $region40
        $region39: #{tpu_custom_call.1} parent=11 // pred_region
          _
        $region40: #{tpu_custom_call.1} parent=11 // pred_fallthru
          _
        // Predicated region
        $region41: #{tpu_custom_call.1} parent=11 // pred_check
          %p428 = pneg %p219
        $region42: #{tpu_custom_call.1} parent=11 // pred_check_branch
          %430 = sbr.rel (%p428) target = $region44
        $region43: #{tpu_custom_call.1} parent=11 // pred_region
          _
        $region44: #{tpu_custom_call.1} parent=11 // pred_fallthru
          _
        // Predicated region
        $region45: #{tpu_custom_call.1} parent=11 // pred_check
          %p431 = pneg %p240
        $region46: #{tpu_custom_call.1} parent=11 // pred_check_branch
          %433 = sbr.rel (%p431) target = $region48
        $region47: #{tpu_custom_call.1} parent=11 // pred_region
          _
        $region48: #{tpu_custom_call.1} parent=11 // pred_fallthru
          _
        // Predicated region
        $region49: #{tpu_custom_call.1} parent=11 // pred_check
          %p434 = pneg %p261
        $region50: #{tpu_custom_call.1} parent=11 // pred_check_branch
          %436 = sbr.rel (%p434) target = $region52
        $region51: #{tpu_custom_call.1} parent=11 // pred_region
          _
        $region52: #{tpu_custom_call.1} parent=11 // pred_fallthru
          _
        // Predicated region
        $region53: #{tpu_custom_call.1} parent=11 // pred_check
          %p437 = pneg %p282
        $region54: #{tpu_custom_call.1} parent=11 // pred_check_branch
          %439 = sbr.rel (%p437) target = $region56
        $region55: #{tpu_custom_call.1} parent=11 // pred_region
          _
        $region56: #{tpu_custom_call.1} parent=11 // pred_fallthru
          _
        // Predicated region
        $region57: #{tpu_custom_call.1} parent=11 // pred_check
          %p440 = pneg %p303
        $region58: #{tpu_custom_call.1} parent=11 // pred_check_branch
          %442 = sbr.rel (%p440) target = $region60
        $region59: #{tpu_custom_call.1} parent=11 // pred_region
          _
        $region60: #{tpu_custom_call.1} parent=11 // pred_fallthru
          _
        // Predicated region
        $region61: #{tpu_custom_call.1} parent=11 // pred_check
          %p443 = pneg %p324
        $region62: #{tpu_custom_call.1} parent=11 // pred_check_branch
          %445 = sbr.rel (%p443) target = $region64
        $region63: #{tpu_custom_call.1} parent=11 // pred_region
          _
        $region64: #{tpu_custom_call.1} parent=11 // pred_fallthru
          _
        // Predicated region
        $region65: #{tpu_custom_call.1} parent=11 // pred_check
          %p446 = pneg %p345
        $region66: #{tpu_custom_call.1} parent=11 // pred_check_branch
          %448 = sbr.rel (%p446) target = $region68
        $region67: #{tpu_custom_call.1} parent=11 // pred_region
          _
        $region68: #{tpu_custom_call.1} parent=11 // pred_fallthru
          _
        // Predicated region
        $region69: #{tpu_custom_call.1} parent=11 // pred_check
          %p449 = pneg %p366
        $region70: #{tpu_custom_call.1} parent=11 // pred_check_branch
          %451 = sbr.rel (%p449) target = $region72
        $region71: #{tpu_custom_call.1} parent=11 // pred_region
          _
        $region72: #{tpu_custom_call.1} parent=11 // pred_fallthru
          _
      $region12: #{tpu_custom_call.1} parent=5 // pred_fallthru
        _
      %p452 = scmp.lt.s32.totalorder %s25, 2
      // Predicated region
      $region73: #{tpu_custom_call.1} parent=5 // pred_check
        %p453 = pneg %p452
      $region74: #{tpu_custom_call.1} parent=5 // pred_check_branch
        %455 = sbr.rel (%p453) target = $region76
      $region75: #{tpu_custom_call.1} parent=5 // pred_region
        // Predicated region
        $region77: #{tpu_custom_call.1} parent=75 // pred_check
          %p456 = pneg %p45
        $region78: #{tpu_custom_call.1} parent=75 // pred_check_branch
          %458 = sbr.rel (%p456) target = $region80
        $region79: #{tpu_custom_call.1} parent=75 // pred_region
          %p459 = scmp.lt.s32.totalorder %s25, 1
          %s460 = scalar_select %p459, %s25, 1
          %s461 = smul.addr %s460, 2
          %s462 = smul.addr %s461, 4
          %s463 = scalar_lea.vmem %s0, %s462
        $region80: #{tpu_custom_call.1} parent=75 // pred_fallthru
          _
      $region76: #{tpu_custom_call.1} parent=5 // pred_fallthru
        _
      %p464 = scmp.le.s32.totalorder 1, %s25
      %p465 = scmp.lt.s32.totalorder %s25, 3
      %p466 = pnand %p464, %p465
      %p467 = pneg %p466
      // Predicated region
      $region81: #{tpu_custom_call.1} parent=5 // pred_check
        _
      $region82: #{tpu_custom_call.1} parent=5 // pred_check_branch
        %469 = sbr.rel (%p466) target = $region84
      $region83: #{tpu_custom_call.1} parent=5 // pred_region
        %s470 = ssub.s32 %s25, 1
        %p471 = scmp.lt.s32.totalorder %s30, 1
        %s472 = scalar_select %p471, %s30, 1
        %s473 = smul.addr %s472, 2
        %s474 = smul.addr %s473, 4
        %s475 = scalar_lea.vmem %s0, %s474
        %p476 = pneg %p51
        %p477 = pneg %p48
        %p478 = pneg %p72
        %p479 = pneg %p69
        %p480 = pneg %p93
        %p481 = pneg %p90
        %p482 = pneg %p114
        %p483 = pneg %p111
        %p484 = pneg %p135
        %p485 = pneg %p132
        %p486 = pneg %p156
        %p487 = pneg %p153
        %p488 = pneg %p177
        %p489 = pneg %p174
        %p490 = pneg %p198
        %p491 = pneg %p195
        %p492 = pneg %p219
        %p493 = pneg %p216
        %p494 = pneg %p240
        %p495 = pneg %p237
        %p496 = pneg %p261
        %p497 = pneg %p258
        %p498 = pneg %p282
        %p499 = pneg %p279
        %p500 = pneg %p303
        %p501 = pneg %p300
        %p502 = pneg %p324
        %p503 = pneg %p321
        %p504 = pneg %p345
        %p505 = pneg %p342
        %p506 = pneg %p366
        %p507 = pneg %p363
        %p508 = pneg %p392
        %p509 = pneg %p389
        %s510 = sand.u32 %s379, 1
        %s511 = scalar_lea.sflag [#allocation3], %s510
        %s512 = sand.u32 %s379, 1
        %s513 = smul.addr %s512, 2
        %s514 = scalar_lea.vmem [#allocation2], %s513
        %p515 = scmp.lt.s32.totalorder %s30, 1
        %s516 = scalar_select %p515, %s30, 1
        %s517 = smul.addr %s516, 2
        %s518 = smul.addr %s517, 4
        %s519 = scalar_lea.vmem %s0, %s518
        %v521 = vld [vmem:[%s519] sm:$0xff]
        %v522 = vld [vmem:[%s2] sm:$0xf]
        %v523 = vld [vmem:[%s2 + $0x4] sm:$0xf]
        %v524 = vld [vmem:[%s2 + $0x8] sm:$0xf]
        %v525 = vld [vmem:[%s2 + $0xc] sm:$0xf]
        %v526 = vld [vmem:[%s2 + $0x10] sm:$0xf]
        %v527 = vld [vmem:[%s2 + $0x14] sm:$0xf]
        %v528 = vld [vmem:[%s2 + $0x18] sm:$0xf]
        %v529 = vld [vmem:[%s2 + $0x1c] sm:$0xf]
        %v530 = vld [vmem:[%s2 + $0x20] sm:$0xf]
        %v531 = vld [vmem:[%s2 + $0x24] sm:$0xf]
        %v532 = vld [vmem:[%s2 + $0x28] sm:$0xf]
        %v533 = vld [vmem:[%s2 + $0x2c] sm:$0xf]
        %v534 = vld [vmem:[%s2 + $0x30] sm:$0xf]
        %v535 = vld [vmem:[%s2 + $0x34] sm:$0xf]
        %v536 = vld [vmem:[%s2 + $0x38] sm:$0xf]
        %v537 = vld [vmem:[%s2 + $0x3c] sm:$0xf]
        %v538 = vld [vmem:[%s2 + $0x40] sm:$0xf]
        %v539 = vld [vmem:[%s2 + $0x44] sm:$0xf]
        %v540 = vld [vmem:[%s2 + $0x48] sm:$0xf]
        %v541 = vld [vmem:[%s2 + $0x4c] sm:$0xf]
        %v542 = vld [vmem:[%s2 + $0x50] sm:$0xf]
        %v543 = vld [vmem:[%s2 + $0x54] sm:$0xf]
        %v544 = vld [vmem:[%s2 + $0x58] sm:$0xf]
        %v545 = vld [vmem:[%s2 + $0x5c] sm:$0xf]
        %v546 = vld [vmem:[%s2 + $0x60] sm:$0xf]
        %v547 = vld [vmem:[%s2 + $0x64] sm:$0xf]
        %v548 = vld [vmem:[%s2 + $0x68] sm:$0xf]
        %v549 = vld [vmem:[%s2 + $0x6c] sm:$0xf]
        %v550 = vld [vmem:[%s2 + $0x70] sm:$0xf]
        %v551 = vld [vmem:[%s2 + $0x74] sm:$0xf]
        %v552 = vld [vmem:[%s2 + $0x78] sm:$0xf]
        %v553 = vld [vmem:[%s2 + $0x7c] sm:$0xf]
        %v554 = vld [vmem:[%s3] sm:$0x1]
        %v556 = vperm.slane %v554, 0
        %v559 = vunpack.c.l.b16 %v521
        %v560 = vunpack.c.h.b16 %v521
        %v561 = vpack.c.b16 %v559, %v559
        %v562 = vpack.c.b16 %v560, %v560
        %v597 = vunpack.c.l.b16 %v522
        %v598 = vunpack.c.l.b16 %v523
        %v599 = vunpack.c.l.b16 %v524
        %v600 = vunpack.c.l.b16 %v525
        %v601 = vunpack.c.l.b16 %v526
        %v602 = vunpack.c.l.b16 %v527
        %v603 = vunpack.c.l.b16 %v528
        %v604 = vunpack.c.l.b16 %v529
        %v605 = vunpack.c.l.b16 %v530
        %v606 = vunpack.c.l.b16 %v531
        %v607 = vunpack.c.l.b16 %v532
        %v608 = vunpack.c.l.b16 %v533
        %v609 = vunpack.c.l.b16 %v534
        %v610 = vunpack.c.l.b16 %v535
        %v611 = vunpack.c.l.b16 %v536
        %v612 = vunpack.c.l.b16 %v537
        %v613 = vunpack.c.l.b16 %v538
        %v614 = vunpack.c.l.b16 %v539
        %v615 = vunpack.c.l.b16 %v540
        %v616 = vunpack.c.l.b16 %v541
        %v617 = vunpack.c.l.b16 %v542
        %v618 = vunpack.c.l.b16 %v543
        %v619 = vunpack.c.l.b16 %v544
        %v620 = vunpack.c.l.b16 %v545
        %v621 = vunpack.c.l.b16 %v546
        %v622 = vunpack.c.l.b16 %v547
        %v623 = vunpack.c.l.b16 %v548
        %v624 = vunpack.c.l.b16 %v549
        %v625 = vunpack.c.l.b16 %v550
        %v626 = vunpack.c.l.b16 %v551
        %v627 = vunpack.c.l.b16 %v552
        %v628 = vunpack.c.l.b16 %v553
        %v629 = vpack.c.b16 %v598, %v597
        %v630 = vpack.c.b16 %v600, %v599
        %v631 = vpack.c.b16 %v602, %v601
        %v632 = vpack.c.b16 %v604, %v603
        %v633 = vpack.c.b16 %v606, %v605
        %v634 = vpack.c.b16 %v608, %v607
        %v635 = vpack.c.b16 %v610, %v609
        %v636 = vpack.c.b16 %v612, %v611
        %v637 = vpack.c.b16 %v614, %v613
        %v638 = vpack.c.b16 %v616, %v615
        %v639 = vpack.c.b16 %v618, %v617
        %v640 = vpack.c.b16 %v620, %v619
        %v641 = vpack.c.b16 %v622, %v621
        %v642 = vpack.c.b16 %v624, %v623
        %v643 = vpack.c.b16 %v626, %v625
        %v644 = vpack.c.b16 %v628, %v627
        %661 = vmatpush.bf16.msra.mxu0 %v636
        %662 = vmatpush.bf16.msra.mxu0 %v635
        %663 = vmatpush.bf16.msra.mxu0 %v634
        %664 = vmatpush.bf16.msra.mxu0 %v633
        %665 = vmatpush.bf16.msra.mxu0 %v632
        %666 = vmatpush.bf16.msra.mxu0 %v631
        %667 = vmatpush.bf16.msra.mxu0 %v630
        %668 = vmatpush.bf16.msra.mxu0 %v629
        %669 = vmatmul.bf16.gmra.mxu0 %v561
        %v670 = vpop.f32.mrf.mxu0
        %v671 = vadd.f32 %v556, %v670
        %v672 = vpop.f32.mrf.mxu0
        %673 = vdwg.mxu0
        %674 = vmatpush.bf16.msra.mxu0 %v644
        %675 = vmatpush.bf16.msra.mxu0 %v643
        %676 = vmatpush.bf16.msra.mxu0 %v642
        %677 = vmatpush.bf16.msra.mxu0 %v641
        %678 = vmatpush.bf16.msra.mxu0 %v640
        %679 = vmatpush.bf16.msra.mxu0 %v639
        %680 = vmatpush.bf16.msra.mxu0 %v638
        %681 = vmatpush.bf16.msra.mxu0 %v637
        %682 = vmatmul.bf16.gmra.mxu0 %v562
        %v683 = vpop.f32.mrf.mxu0
        %v684 = vadd.f32 %v671, %v683
        %v685 = vpop.f32.mrf.mxu0
        %686 = vdwg.mxu0
        %v687 = vld [vmem:[%s1] sm:$0xff]
        %v688 = vadd.f32 %v684, %v687
        %v689 = vpack.c.bf16 %v688, %v688
        %v690 = vld [vmem:[%s4] sm:$0xf]
        %v691 = vld [vmem:[%s4 + $0x4] sm:$0xf]
        %v692 = vld [vmem:[%s4 + $0x8] sm:$0xf]
        %v693 = vld [vmem:[%s4 + $0xc] sm:$0xf]
        %v694 = vld [vmem:[%s5] sm:$0x1]
        %v696 = vperm.slane %v694, 0
        %v702 = vunpack.c.l.b16 %v690
        %v703 = vunpack.c.l.b16 %v691
        %v704 = vunpack.c.l.b16 %v692
        %v705 = vunpack.c.l.b16 %v693
        %v706 = vpack.c.b16 %v703, %v702
        %v707 = vpack.c.b16 %v705, %v704
        %vm710 = vcmask 261120
        %v712 = vsel %vm710, %v689, 0
        %714 = vmatpush.bf16.msra.mxu0 0
        %715 = vmatpush.bf16.msra.mxu0 0
        %716 = vmatpush.bf16.msra.mxu0 0
        %717 = vmatpush.bf16.msra.mxu0 0
        %718 = vmatpush.bf16.msra.mxu0 0
        %719 = vmatpush.bf16.msra.mxu0 0
        %720 = vmatpush.bf16.msra.mxu0 %v707
        %721 = vmatpush.bf16.msra.mxu0 %v706
        %722 = vmatmul.bf16.gmra.mxu0 %v712
        %v723 = vpop.f32.mrf.mxu0
        %v724 = vadd.f32 %v696, %v723
        %v725 = vpop.f32.mrf.mxu0
        %726 = vdwg.mxu0
        %728 = vrot.lane.b32.xlu0 %v724, 120
        %v729 = vpop.permute.xlu0 %728
        %731 = vrot.lane.b32.xlu0 %v724, 112
        %v732 = vpop.permute.xlu0 %731
        %734 = vrot.lane.b32.xlu0 %v724, 104
        %v735 = vpop.permute.xlu0 %734
        %v737 = vpack.c.bf16 %v724, %v724
        %v738 = vpack.c.bf16 %v729, %v729
        %v739 = vpack.c.bf16 %v732, %v732
        %v740 = vpack.c.bf16 %v735, %v735
        %v742 = vunpack.c.l.b16 %v737
        %v743 = vpack.c.b16 %v742, %v742
        %744 = vrot.lane.b32.xlu0 %v743, 96
        %v745 = vpop.permute.xlu0 %744
        %vm746 = vcmask 64512
        %v748 = vsel %vm746, %v737, 0
        %v751 = vsel %vm746, %v745, 0
        %753 = vmatpush.bf16.xpose.msra.mxu0 0
        %754 = vmatpush.bf16.xpose.msra.mxu0 0
        %755 = vmatpush.bf16.xpose.msra.mxu0 0
        %756 = vmatpush.bf16.xpose.msra.mxu0 0
        %757 = vmatpush.bf16.xpose.msra.mxu0 0
        %758 = vmatpush.bf16.xpose.msra.mxu0 0
        %759 = vmatpush.bf16.xpose.msra.mxu0 0
        %760 = vmatpush.bf16.xpose.msra.mxu0 %v751
        %761 = vmatmul.bf16.gmra.mxu0 %v748
        %v762 = vpop.f32.mrf.mxu0
        %v763 = vadd.f32 0.0, %v762
        %v764 = vpop.f32.mrf.mxu0
        %765 = vdwg.mxu0
        %v767 = vunpack.c.l.b16 %v738
        %v768 = vpack.c.b16 %v767, %v767
        %769 = vrot.lane.b32.xlu0 %v768, 96
        %v770 = vpop.permute.xlu0 %769
        %v772 = vsel %vm746, %v738, 0
        %v775 = vsel %vm746, %v770, 0
        %777 = vmatpush.bf16.xpose.msra.mxu0 0
        %778 = vmatpush.bf16.xpose.msra.mxu0 0
        %779 = vmatpush.bf16.xpose.msra.mxu0 0
        %780 = vmatpush.bf16.xpose.msra.mxu0 0
        %781 = vmatpush.bf16.xpose.msra.mxu0 0
        %782 = vmatpush.bf16.xpose.msra.mxu0 0
        %783 = vmatpush.bf16.xpose.msra.mxu0 0
        %784 = vmatpush.bf16.xpose.msra.mxu0 %v775
        %785 = vmatmul.bf16.gmra.mxu0 %v772
        %v786 = vpop.f32.mrf.mxu0
        %v787 = vadd.f32 0.0, %v786
        %v788 = vpop.f32.mrf.mxu0
        %789 = vdwg.mxu0
        %v791 = vunpack.c.l.b16 %v739
        %v792 = vpack.c.b16 %v791, %v791
        %793 = vrot.lane.b32.xlu0 %v792, 96
        %v794 = vpop.permute.xlu0 %793
        %v796 = vsel %vm746, %v739, 0
        %v799 = vsel %vm746, %v794, 0
        %801 = vmatpush.bf16.xpose.msra.mxu0 0
        %802 = vmatpush.bf16.xpose.msra.mxu0 0
        %803 = vmatpush.bf16.xpose.msra.mxu0 0
        %804 = vmatpush.bf16.xpose.msra.mxu0 0
        %805 = vmatpush.bf16.xpose.msra.mxu0 0
        %806 = vmatpush.bf16.xpose.msra.mxu0 0
        %807 = vmatpush.bf16.xpose.msra.mxu0 0
        %808 = vmatpush.bf16.xpose.msra.mxu0 %v799
        %809 = vmatmul.bf16.gmra.mxu0 %v796
        %v810 = vpop.f32.mrf.mxu0
        %v811 = vadd.f32 0.0, %v810
        %v812 = vpop.f32.mrf.mxu0
        %813 = vdwg.mxu0
        %v815 = vunpack.c.l.b16 %v740
        %v816 = vpack.c.b16 %v815, %v815
        %817 = vrot.lane.b32.xlu0 %v816, 96
        %v818 = vpop.permute.xlu0 %817
        %v820 = vsel %vm746, %v740, 0
        %v823 = vsel %vm746, %v818, 0
        %825 = vmatpush.bf16.xpose.msra.mxu0 0
        %826 = vmatpush.bf16.xpose.msra.mxu0 0
        %827 = vmatpush.bf16.xpose.msra.mxu0 0
        %828 = vmatpush.bf16.xpose.msra.mxu0 0
        %829 = vmatpush.bf16.xpose.msra.mxu0 0
        %830 = vmatpush.bf16.xpose.msra.mxu0 0
        %831 = vmatpush.bf16.xpose.msra.mxu0 0
        %832 = vmatpush.bf16.xpose.msra.mxu0 %v823
        %833 = vmatmul.bf16.gmra.mxu0 %v820
        %v834 = vpop.f32.mrf.mxu0
        %v835 = vadd.f32 0.0, %v834
        %v836 = vpop.f32.mrf.mxu0
        %837 = vdwg.mxu0
        %v838 = vsel %vm746, %v763, -inf
        %839 = vmax.xlane.f32.xlu0 %v838
        %v840 = vpop.xlane.xlu0 %839
        %v841 = vsel %vm746, %v787, -inf
        %842 = vmax.xlane.f32.xlu0 %v841
        %v843 = vpop.xlane.xlu0 %842
        %v844 = vsel %vm746, %v811, -inf
        %845 = vmax.xlane.f32.xlu0 %v844
        %v846 = vpop.xlane.xlu0 %845
        %v847 = vsel %vm746, %v835, -inf
        %848 = vmax.xlane.f32.xlu0 %v847
        %v849 = vpop.xlane.xlu0 %848
        %v850 = vsub.f32 %v763, %v840
        %v851 = vsub.f32 %v787, %v843
        %v852 = vsub.f32 %v811, %v846
        %v853 = vsub.f32 %v835, %v849
        %v854 = vmul.f32 %v850, 1.442695
        %v855 = vpow.pop %v854
        %v856 = vmul.f32 %v851, 1.442695
        %v857 = vpow.pop %v856
        %v858 = vmul.f32 %v852, 1.442695
        %v859 = vpow.pop %v858
        %v860 = vmul.f32 %v853, 1.442695
        %v861 = vpow.pop %v860
        %v862 = vsel %vm746, %v855, 0.0
        %863 = vadd.xlane.f32.xlu0 %v862
        %v864 = vpop.xlane.xlu0 %863
        %v865 = vsel %vm746, %v857, 0.0
        %866 = vadd.xlane.f32.xlu0 %v865
        %v867 = vpop.xlane.xlu0 %866
        %v868 = vsel %vm746, %v859, 0.0
        %869 = vadd.xlane.f32.xlu0 %v868
        %v870 = vpop.xlane.xlu0 %869
        %v871 = vsel %vm746, %v861, 0.0
        %872 = vadd.xlane.f32.xlu0 %v871
        %v873 = vpop.xlane.xlu0 %872
        %v874 = vrcp.pop %v864
        %v875 = vrcp.pop %v867
        %v876 = vrcp.pop %v870
        %v877 = vrcp.pop %v873
        %v878 = vmul.f32 %v855, %v874
        %v879 = vmul.f32 %v857, %v875
        %v880 = vmul.f32 %v859, %v876
        %v881 = vmul.f32 %v861, %v877
        %v882 = vpack.c.bf16 %v878, %v878
        %v883 = vpack.c.bf16 %v879, %v879
        %v884 = vpack.c.bf16 %v880, %v880
        %v885 = vpack.c.bf16 %v881, %v881
        %886 = vrot.lane.b32.xlu0 %v743, 64
        %v887 = vpop.permute.xlu0 %886
        %v889 = vsel %vm746, %v882, 0
        %vm891 = vcmask 1043456
        %v893 = vsel %vm891, %v887, 0
        %895 = vmatpush.bf16.msra.mxu0 0
        %896 = vmatpush.bf16.msra.mxu0 0
        %897 = vmatpush.bf16.msra.mxu0 0
        %898 = vmatpush.bf16.msra.mxu0 0
        %899 = vmatpush.bf16.msra.mxu0 0
        %900 = vmatpush.bf16.msra.mxu0 0
        %901 = vmatpush.bf16.msra.mxu0 0
        %902 = vmatpush.bf16.msra.mxu0 %v893
        %903 = vmatmul.bf16.gmra.mxu0 %v889
        %v904 = vpop.f32.mrf.mxu0
        %v905 = vadd.f32 0.0, %v904
        %v906 = vpop.f32.mrf.mxu0
        %907 = vdwg.mxu0
        %908 = vrot.lane.b32.xlu0 %v768, 64
        %v909 = vpop.permute.xlu0 %908
        %v911 = vsel %vm746, %v883, 0
        %v914 = vsel %vm891, %v909, 0
        %916 = vmatpush.bf16.msra.mxu0 0
        %917 = vmatpush.bf16.msra.mxu0 0
        %918 = vmatpush.bf16.msra.mxu0 0
        %919 = vmatpush.bf16.msra.mxu0 0
        %920 = vmatpush.bf16.msra.mxu0 0
        %921 = vmatpush.bf16.msra.mxu0 0
        %922 = vmatpush.bf16.msra.mxu0 0
        %923 = vmatpush.bf16.msra.mxu0 %v914
        %924 = vmatmul.bf16.gmra.mxu0 %v911
        %v925 = vpop.f32.mrf.mxu0
        %v926 = vadd.f32 0.0, %v925
        %v927 = vpop.f32.mrf.mxu0
        %928 = vdwg.mxu0
        %929 = vrot.lane.b32.xlu0 %v792, 64
        %v930 = vpop.permute.xlu0 %929
        %v932 = vsel %vm746, %v884, 0
        %v935 = vsel %vm891, %v930, 0
        %937 = vmatpush.bf16.msra.mxu0 0
        %938 = vmatpush.bf16.msra.mxu0 0
        %939 = vmatpush.bf16.msra.mxu0 0
        %940 = vmatpush.bf16.msra.mxu0 0
        %941 = vmatpush.bf16.msra.mxu0 0
        %942 = vmatpush.bf16.msra.mxu0 0
        %943 = vmatpush.bf16.msra.mxu0 0
        %944 = vmatpush.bf16.msra.mxu0 %v935
        %945 = vmatmul.bf16.gmra.mxu0 %v932
        %v946 = vpop.f32.mrf.mxu0
        %v947 = vadd.f32 0.0, %v946
        %v948 = vpop.f32.mrf.mxu0
        %949 = vdwg.mxu0
        %950 = vrot.lane.b32.xlu0 %v816, 64
        %v951 = vpop.permute.xlu0 %950
        %v953 = vsel %vm746, %v885, 0
        %v956 = vsel %vm891, %v951, 0
        %958 = vmatpush.bf16.msra.mxu0 0
        %959 = vmatpush.bf16.msra.mxu0 0
        %960 = vmatpush.bf16.msra.mxu0 0
        %961 = vmatpush.bf16.msra.mxu0 0
        %962 = vmatpush.bf16.msra.mxu0 0
        %963 = vmatpush.bf16.msra.mxu0 0
        %964 = vmatpush.bf16.msra.mxu0 0
        %965 = vmatpush.bf16.msra.mxu0 %v956
        %966 = vmatmul.bf16.gmra.mxu0 %v953
        %v967 = vpop.f32.mrf.mxu0
        %v968 = vadd.f32 0.0, %v967
        %v969 = vpop.f32.mrf.mxu0
        %970 = vdwg.mxu0
        %972 = vrot.lane.b32.xlu0 %v926, 8
        %v973 = vpop.permute.xlu0 %972
        %976 = vrot.lane.b32.xlu0 %v947, 16
        %v977 = vpop.permute.xlu0 %976
        %980 = vrot.lane.b32.xlu0 %v968, 24
        %v981 = vpop.permute.xlu0 %980
        %v983 = vsel %vm746, %v905, %v973
        %vm984 = vcmask 130048
        %v985 = vsel %vm984, %v983, %v977
        %vm986 = vcmask 195584
        %v987 = vsel %vm986, %v985, %v981
        %v988 = vpack.c.bf16 %v987, %v987
        %v989 = vld [vmem:[%s6] sm:$0xf]
        %v990 = vld [vmem:[%s6 + $0x4] sm:$0xf]
        %v991 = vld [vmem:[%s6 + $0x8] sm:$0xf]
        %v992 = vld [vmem:[%s6 + $0xc] sm:$0xf]
        %v993 = vld [vmem:[%s7] sm:$0x1]
        %v995 = vperm.slane %v993, 0
        %v1001 = vunpack.c.l.b16 %v989
        %v1002 = vunpack.c.l.b16 %v990
        %v1003 = vunpack.c.l.b16 %v991
        %v1004 = vunpack.c.l.b16 %v992
        %v1005 = vpack.c.b16 %v1002, %v1001
        %v1006 = vpack.c.b16 %v1004, %v1003
        %v1010 = vsel %vm710, %v988, 0
        %1012 = vmatpush.bf16.msra.mxu0 0
        %1013 = vmatpush.bf16.msra.mxu0 0
        %1014 = vmatpush.bf16.msra.mxu0 0
        %1015 = vmatpush.bf16.msra.mxu0 0
        %1016 = vmatpush.bf16.msra.mxu0 0
        %1017 = vmatpush.bf16.msra.mxu0 0
        %1018 = vmatpush.bf16.msra.mxu0 %v1006
        %1019 = vmatpush.bf16.msra.mxu0 %v1005
        %1020 = vmatmul.bf16.gmra.mxu0 %v1010
        %v1021 = vpop.f32.mrf.mxu0
        %v1022 = vadd.f32 %v995, %v1021
        %v1023 = vpop.f32.mrf.mxu0
        %1024 = vdwg.mxu0
        %v1025 = vadd.f32 %v688, %v1022
        %v1026 = vld [vmem:[%s8] sm:$0x1]
        %v1027 = vld [vmem:[%s9] sm:$0x1]
        %v1028 = vsel %vm710, %v1025, 0.0
        %1029 = vadd.xlane.f32.xlu0 %v1028
        %v1030 = vpop.xlane.xlu0 %1029
        %v1031 = vrcp.pop 32.0
        %v1032 = vmul.f32 32.0, %v1031
        %v1033 = vsub.f32 1.0, %v1032
        %v1034 = vmul.f32 %v1031, %v1033
        %v1035 = vadd.f32 %v1031, %v1034
        %vm1036 = vweird.f32 %v1031
        %v1037 = vsel %vm1036, %v1031, %v1035
        %v1038 = vmul.f32 %v1030, %v1037
        %v1039 = vsub.f32 %v1025, %v1038
        %v1040 = vmul.f32 %v1039, %v1039
        %v1041 = vsel %vm710, %v1040, 0.0
        %1042 = vadd.xlane.f32.xlu0 %v1041
        %v1043 = vpop.xlane.xlu0 %1042
        %v1044 = vmul.f32 %v1043, %v1037
        %v1045 = vadd.f32 %v1044, 1e-12
        %v1046 = vrsqrt.pop %v1045
        %v1047 = vmul.f32 %v1046, %v1045
        %v1048 = vmul.f32 %v1047, %v1046
        %v1049 = vmul.f32 0.5, %v1048
        %v1050 = vsub.f32 1.5, %v1049
        %v1051 = vmul.f32 %v1046, %v1050
        %vm1052 = vweird.f32 %v1045
        %vm1053 = vweird.f32 %v1046
        %vm1054 = vmor %vm1052, %vm1053
        %v1055 = vsel %vm1054, %v1046, %v1051
        %v1056 = vmul.f32 %v1039, %v1055
        %v1058 = vperm.slane %v1026, 0
        %v1060 = vmul.f32 %v1056, %v1058
        %v1062 = vperm.slane %v1027, 0
        %v1064 = vadd.f32 %v1060, %v1062
        %v1065 = vpack.c.bf16 %v1064, %v1064
        %v1066 = vld [vmem:[%s10] sm:$0xf]
        %v1067 = vld [vmem:[%s10 + $0x4] sm:$0xf]
        %v1068 = vld [vmem:[%s10 + $0x8] sm:$0xf]
        %v1069 = vld [vmem:[%s10 + $0xc] sm:$0xf]
        %v1070 = vld [vmem:[%s11] sm:$0x1]
        %v1072 = vperm.slane %v1070, 0
        %v1078 = vunpack.c.l.b16 %v1066
        %v1079 = vunpack.c.l.b16 %v1067
        %v1080 = vunpack.c.l.b16 %v1068
        %v1081 = vunpack.c.l.b16 %v1069
        %v1082 = vpack.c.b16 %v1079, %v1078
        %v1083 = vpack.c.b16 %v1081, %v1080
        %v1087 = vsel %vm710, %v1065, 0
        %1089 = vmatpush.bf16.msra.mxu0 0
        %1090 = vmatpush.bf16.msra.mxu0 0
        %1091 = vmatpush.bf16.msra.mxu0 0
        %1092 = vmatpush.bf16.msra.mxu0 0
        %1093 = vmatpush.bf16.msra.mxu0 0
        %1094 = vmatpush.bf16.msra.mxu0 0
        %1095 = vmatpush.bf16.msra.mxu0 %v1083
        %1096 = vmatpush.bf16.msra.mxu0 %v1082
        %1097 = vmatmul.bf16.gmra.mxu0 %v1087
        %v1098 = vpop.f32.mrf.mxu0
        %v1099 = vadd.f32 %v1072, %v1098
        %v1100 = vpop.f32.mrf.mxu0
        %1101 = vdwg.mxu0
        %v1102 = vmul.f32 %v1099, %v1099
        %v1103 = vmul.f32 %v1099, %v1102
        %v1104 = vmul.f32 %v1103, 0.044715
        %v1105 = vadd.f32 %v1099, %v1104
        %v1106 = vmul.f32 %v1105, 0.7978846
        %v1107 = vtanh.pop %v1106
        %v1108 = vadd.f32 %v1107, 1.0
        %v1109 = vmul.f32 %v1108, 0.5
        %v1110 = vmul.f32 %v1099, %v1109
        %v1111 = vpack.c.bf16 %v1110, %v1110
        %v1112 = vld [vmem:[%s12] sm:$0xf]
        %v1113 = vld [vmem:[%s12 + $0x4] sm:$0xf]
        %v1114 = vld [vmem:[%s12 + $0x8] sm:$0xf]
        %v1115 = vld [vmem:[%s12 + $0xc] sm:$0xf]
        %v1116 = vld [vmem:[%s12 + $0x10] sm:$0xf]
        %v1117 = vld [vmem:[%s12 + $0x14] sm:$0xf]
        %v1118 = vld [vmem:[%s12 + $0x18] sm:$0xf]
        %v1119 = vld [vmem:[%s12 + $0x1c] sm:$0xf]
        %v1120 = vld [vmem:[%s13] sm:$0x1]
        %v1122 = vperm.slane %v1120, 0
        %v1132 = vunpack.c.l.b16 %v1112
        %v1133 = vunpack.c.l.b16 %v1113
        %v1134 = vunpack.c.l.b16 %v1114
        %v1135 = vunpack.c.l.b16 %v1115
        %v1136 = vunpack.c.l.b16 %v1116
        %v1137 = vunpack.c.l.b16 %v1117
        %v1138 = vunpack.c.l.b16 %v1118
        %v1139 = vunpack.c.l.b16 %v1119
        %v1140 = vpack.c.b16 %v1133, %v1132
        %v1141 = vpack.c.b16 %v1135, %v1134
        %v1142 = vpack.c.b16 %v1137, %v1136
        %v1143 = vpack.c.b16 %v1139, %v1138
        %vm1148 = vcmask 523264
        %v1150 = vsel %vm1148, %v1111, 0
        %1152 = vmatpush.bf16.msra.mxu0 0
        %1153 = vmatpush.bf16.msra.mxu0 0
        %1154 = vmatpush.bf16.msra.mxu0 0
        %1155 = vmatpush.bf16.msra.mxu0 0
        %1156 = vmatpush.bf16.msra.mxu0 %v1143
        %1157 = vmatpush.bf16.msra.mxu0 %v1142
        %1158 = vmatpush.bf16.msra.mxu0 %v1141
        %1159 = vmatpush.bf16.msra.mxu0 %v1140
        %1160 = vmatmul.bf16.gmra.mxu0 %v1150
        %v1161 = vpop.f32.mrf.mxu0
        %v1162 = vadd.f32 %v1122, %v1161
        %v1163 = vpop.f32.mrf.mxu0
        %1164 = vdwg.mxu0
        %v1165 = vadd.f32 %v1064, %v1162
        %v1166 = vld [vmem:[%s14] sm:$0x1]
        %v1167 = vld [vmem:[%s15] sm:$0x1]
        %v1168 = vsel %vm710, %v1165, 0.0
        %1169 = vadd.xlane.f32.xlu0 %v1168
        %v1170 = vpop.xlane.xlu0 %1169
        %v1171 = vmul.f32 %v1170, %v1037
        %v1172 = vsub.f32 %v1165, %v1171
        %v1173 = vmul.f32 %v1172, %v1172
        %v1174 = vsel %vm710, %v1173, 0.0
        %1175 = vadd.xlane.f32.xlu0 %v1174
        %v1176 = vpop.xlane.xlu0 %1175
        %v1177 = vmul.f32 %v1176, %v1037
        %v1178 = vadd.f32 %v1177, 1e-12
        %v1179 = vrsqrt.pop %v1178
        %v1180 = vmul.f32 %v1179, %v1178
        %v1181 = vmul.f32 %v1180, %v1179
        %v1182 = vmul.f32 0.5, %v1181
        %v1183 = vsub.f32 1.5, %v1182
        %v1184 = vmul.f32 %v1179, %v1183
        %vm1185 = vweird.f32 %v1178
        %vm1186 = vweird.f32 %v1179
        %vm1187 = vmor %vm1185, %vm1186
        %v1188 = vsel %vm1187, %v1179, %v1184
        %v1189 = vmul.f32 %v1172, %v1188
        %v1191 = vperm.slane %v1166, 0
        %v1193 = vmul.f32 %v1189, %v1191
        %v1195 = vperm.slane %v1167, 0
        %v1197 = vadd.f32 %v1193, %v1195
        %v1198 = vpack.c.bf16 %v1197, %v1197
        %s1199 = scalar_lea.vmem %s4, 16
        %v1200 = vld [vmem:[%s1199] sm:$0xf]
        %v1201 = vld [vmem:[%s1199 + $0x4] sm:$0xf]
        %v1202 = vld [vmem:[%s1199 + $0x8] sm:$0xf]
        %v1203 = vld [vmem:[%s1199 + $0xc] sm:$0xf]
        %s1204 = scalar_lea.vmem %s5, 1
        %v1205 = vld [vmem:[%s1204] sm:$0x1]
        %v1207 = vperm.slane %v1205, 0
        %v1213 = vunpack.c.l.b16 %v1200
        %v1214 = vunpack.c.l.b16 %v1201
        %v1215 = vunpack.c.l.b16 %v1202
        %v1216 = vunpack.c.l.b16 %v1203
        %v1217 = vpack.c.b16 %v1214, %v1213
        %v1218 = vpack.c.b16 %v1216, %v1215
        %v1222 = vsel %vm710, %v1198, 0
        %1224 = vmatpush.bf16.msra.mxu0 0
        %1225 = vmatpush.bf16.msra.mxu0 0
        %1226 = vmatpush.bf16.msra.mxu0 0
        %1227 = vmatpush.bf16.msra.mxu0 0
        %1228 = vmatpush.bf16.msra.mxu0 0
        %1229 = vmatpush.bf16.msra.mxu0 0
        %1230 = vmatpush.bf16.msra.mxu0 %v1218
        %1231 = vmatpush.bf16.msra.mxu0 %v1217
        %1232 = vmatmul.bf16.gmra.mxu0 %v1222
        %v1233 = vpop.f32.mrf.mxu0
        %v1234 = vadd.f32 %v1207, %v1233
        %v1235 = vpop.f32.mrf.mxu0
        %1236 = vdwg.mxu0
        %1238 = vrot.lane.b32.xlu0 %v1234, 120
        %v1239 = vpop.permute.xlu0 %1238
        %1241 = vrot.lane.b32.xlu0 %v1234, 112
        %v1242 = vpop.permute.xlu0 %1241
        %1244 = vrot.lane.b32.xlu0 %v1234, 104
        %v1245 = vpop.permute.xlu0 %1244
        %v1247 = vpack.c.bf16 %v1234, %v1234
        %v1248 = vpack.c.bf16 %v1239, %v1239
        %v1249 = vpack.c.bf16 %v1242, %v1242
        %v1250 = vpack.c.bf16 %v1245, %v1245
        %v1252 = vunpack.c.l.b16 %v1247
        %v1253 = vpack.c.b16 %v1252, %v1252
        %1254 = vrot.lane.b32.xlu0 %v1253, 96
        %v1255 = vpop.permute.xlu0 %1254
        %v1257 = vsel %vm746, %v1247, 0
        %v1260 = vsel %vm746, %v1255, 0
        %1262 = vmatpush.bf16.xpose.msra.mxu0 0
        %1263 = vmatpush.bf16.xpose.msra.mxu0 0
        %1264 = vmatpush.bf16.xpose.msra.mxu0 0
        %1265 = vmatpush.bf16.xpose.msra.mxu0 0
        %1266 = vmatpush.bf16.xpose.msra.mxu0 0
        %1267 = vmatpush.bf16.xpose.msra.mxu0 0
        %1268 = vmatpush.bf16.xpose.msra.mxu0 0
        %1269 = vmatpush.bf16.xpose.msra.mxu0 %v1260
        %1270 = vmatmul.bf16.gmra.mxu0 %v1257
        %v1271 = vpop.f32.mrf.mxu0
        %v1272 = vadd.f32 0.0, %v1271
        %v1273 = vpop.f32.mrf.mxu0
        %1274 = vdwg.mxu0
        %v1276 = vunpack.c.l.b16 %v1248
        %v1277 = vpack.c.b16 %v1276, %v1276
        %1278 = vrot.lane.b32.xlu0 %v1277, 96
        %v1279 = vpop.permute.xlu0 %1278
        %v1281 = vsel %vm746, %v1248, 0
        %v1284 = vsel %vm746, %v1279, 0
        %1286 = vmatpush.bf16.xpose.msra.mxu0 0
        %1287 = vmatpush.bf16.xpose.msra.mxu0 0
        %1288 = vmatpush.bf16.xpose.msra.mxu0 0
        %1289 = vmatpush.bf16.xpose.msra.mxu0 0
        %1290 = vmatpush.bf16.xpose.msra.mxu0 0
        %1291 = vmatpush.bf16.xpose.msra.mxu0 0
        %1292 = vmatpush.bf16.xpose.msra.mxu0 0
        %1293 = vmatpush.bf16.xpose.msra.mxu0 %v1284
        %1294 = vmatmul.bf16.gmra.mxu0 %v1281
        %v1295 = vpop.f32.mrf.mxu0
        %v1296 = vadd.f32 0.0, %v1295
        %v1297 = vpop.f32.mrf.mxu0
        %1298 = vdwg.mxu0
        %v1300 = vunpack.c.l.b16 %v1249
        %v1301 = vpack.c.b16 %v1300, %v1300
        %1302 = vrot.lane.b32.xlu0 %v1301, 96
        %v1303 = vpop.permute.xlu0 %1302
        %v1305 = vsel %vm746, %v1249, 0
        %v1308 = vsel %vm746, %v1303, 0
        %1310 = vmatpush.bf16.xpose.msra.mxu0 0
        %1311 = vmatpush.bf16.xpose.msra.mxu0 0
        %1312 = vmatpush.bf16.xpose.msra.mxu0 0
        %1313 = vmatpush.bf16.xpose.msra.mxu0 0
        %1314 = vmatpush.bf16.xpose.msra.mxu0 0
        %1315 = vmatpush.bf16.xpose.msra.mxu0 0
        %1316 = vmatpush.bf16.xpose.msra.mxu0 0
        %1317 = vmatpush.bf16.xpose.msra.mxu0 %v1308
        %1318 = vmatmul.bf16.gmra.mxu0 %v1305
        %v1319 = vpop.f32.mrf.mxu0
        %v1320 = vadd.f32 0.0, %v1319
        %v1321 = vpop.f32.mrf.mxu0
        %1322 = vdwg.mxu0
        %v1324 = vunpack.c.l.b16 %v1250
        %v1325 = vpack.c.b16 %v1324, %v1324
        %1326 = vrot.lane.b32.xlu0 %v1325, 96
        %v1327 = vpop.permute.xlu0 %1326
        %v1329 = vsel %vm746, %v1250, 0
        %v1332 = vsel %vm746, %v1327, 0
        %1334 = vmatpush.bf16.xpose.msra.mxu0 0
        %1335 = vmatpush.bf16.xpose.msra.mxu0 0
        %1336 = vmatpush.bf16.xpose.msra.mxu0 0
        %1337 = vmatpush.bf16.xpose.msra.mxu0 0
        %1338 = vmatpush.bf16.xpose.msra.mxu0 0
        %1339 = vmatpush.bf16.xpose.msra.mxu0 0
        %1340 = vmatpush.bf16.xpose.msra.mxu0 0
        %1341 = vmatpush.bf16.xpose.msra.mxu0 %v1332
        %1342 = vmatmul.bf16.gmra.mxu0 %v1329
        %v1343 = vpop.f32.mrf.mxu0
        %v1344 = vadd.f32 0.0, %v1343
        %v1345 = vpop.f32.mrf.mxu0
        %1346 = vdwg.mxu0
        %v1347 = vsel %vm746, %v1272, -inf
        %1348 = vmax.xlane.f32.xlu0 %v1347
        %v1349 = vpop.xlane.xlu0 %1348
        %v1350 = vsel %vm746, %v1296, -inf
        %1351 = vmax.xlane.f32.xlu0 %v1350
        %v1352 = vpop.xlane.xlu0 %1351
        %v1353 = vsel %vm746, %v1320, -inf
        %1354 = vmax.xlane.f32.xlu0 %v1353
        %v1355 = vpop.xlane.xlu0 %1354
        %v1356 = vsel %vm746, %v1344, -inf
        %1357 = vmax.xlane.f32.xlu0 %v1356
        %v1358 = vpop.xlane.xlu0 %1357
        %v1359 = vsub.f32 %v1272, %v1349
        %v1360 = vsub.f32 %v1296, %v1352
        %v1361 = vsub.f32 %v1320, %v1355
        %v1362 = vsub.f32 %v1344, %v1358
        %v1363 = vmul.f32 %v1359, 1.442695
        %v1364 = vpow.pop %v1363
        %v1365 = vmul.f32 %v1360, 1.442695
        %v1366 = vpow.pop %v1365
        %v1367 = vmul.f32 %v1361, 1.442695
        %v1368 = vpow.pop %v1367
        %v1369 = vmul.f32 %v1362, 1.442695
        %v1370 = vpow.pop %v1369
        %v1371 = vsel %vm746, %v1364, 0.0
        %1372 = vadd.xlane.f32.xlu0 %v1371
        %v1373 = vpop.xlane.xlu0 %1372
        %v1374 = vsel %vm746, %v1366, 0.0
        %1375 = vadd.xlane.f32.xlu0 %v1374
        %v1376 = vpop.xlane.xlu0 %1375
        %v1377 = vsel %vm746, %v1368, 0.0
        %1378 = vadd.xlane.f32.xlu0 %v1377
        %v1379 = vpop.xlane.xlu0 %1378
        %v1380 = vsel %vm746, %v1370, 0.0
        %1381 = vadd.xlane.f32.xlu0 %v1380
        %v1382 = vpop.xlane.xlu0 %1381
        %v1383 = vrcp.pop %v1373
        %v1384 = vrcp.pop %v1376
        %v1385 = vrcp.pop %v1379
        %v1386 = vrcp.pop %v1382
        %v1387 = vmul.f32 %v1364, %v1383
        %v1388 = vmul.f32 %v1366, %v1384
        %v1389 = vmul.f32 %v1368, %v1385
        %v1390 = vmul.f32 %v1370, %v1386
        %v1391 = vpack.c.bf16 %v1387, %v1387
        %v1392 = vpack.c.bf16 %v1388, %v1388
        %v1393 = vpack.c.bf16 %v1389, %v1389
        %v1394 = vpack.c.bf16 %v1390, %v1390
        %1395 = vrot.lane.b32.xlu0 %v1253, 64
        %v1396 = vpop.permute.xlu0 %1395
        %v1398 = vsel %vm746, %v1391, 0
        %v1401 = vsel %vm891, %v1396, 0
        %1403 = vmatpush.bf16.msra.mxu0 0
        %1404 = vmatpush.bf16.msra.mxu0 0
        %1405 = vmatpush.bf16.msra.mxu0 0
        %1406 = vmatpush.bf16.msra.mxu0 0
        %1407 = vmatpush.bf16.msra.mxu0 0
        %1408 = vmatpush.bf16.msra.mxu0 0
        %1409 = vmatpush.bf16.msra.mxu0 0
        %1410 = vmatpush.bf16.msra.mxu0 %v1401
        %1411 = vmatmul.bf16.gmra.mxu0 %v1398
        %v1412 = vpop.f32.mrf.mxu0
        %v1413 = vadd.f32 0.0, %v1412
        %v1414 = vpop.f32.mrf.mxu0
        %1415 = vdwg.mxu0
        %1416 = vrot.lane.b32.xlu0 %v1277, 64
        %v1417 = vpop.permute.xlu0 %1416
        %v1419 = vsel %vm746, %v1392, 0
        %v1422 = vsel %vm891, %v1417, 0
        %1424 = vmatpush.bf16.msra.mxu0 0
        %1425 = vmatpush.bf16.msra.mxu0 0
        %1426 = vmatpush.bf16.msra.mxu0 0
        %1427 = vmatpush.bf16.msra.mxu0 0
        %1428 = vmatpush.bf16.msra.mxu0 0
        %1429 = vmatpush.bf16.msra.mxu0 0
        %1430 = vmatpush.bf16.msra.mxu0 0
        %1431 = vmatpush.bf16.msra.mxu0 %v1422
        %1432 = vmatmul.bf16.gmra.mxu0 %v1419
        %v1433 = vpop.f32.mrf.mxu0
        %v1434 = vadd.f32 0.0, %v1433
        %v1435 = vpop.f32.mrf.mxu0
        %1436 = vdwg.mxu0
        %1437 = vrot.lane.b32.xlu0 %v1301, 64
        %v1438 = vpop.permute.xlu0 %1437
        %v1440 = vsel %vm746, %v1393, 0
        %v1443 = vsel %vm891, %v1438, 0
        %1445 = vmatpush.bf16.msra.mxu0 0
        %1446 = vmatpush.bf16.msra.mxu0 0
        %1447 = vmatpush.bf16.msra.mxu0 0
        %1448 = vmatpush.bf16.msra.mxu0 0
        %1449 = vmatpush.bf16.msra.mxu0 0
        %1450 = vmatpush.bf16.msra.mxu0 0
        %1451 = vmatpush.bf16.msra.mxu0 0
        %1452 = vmatpush.bf16.msra.mxu0 %v1443
        %1453 = vmatmul.bf16.gmra.mxu0 %v1440
        %v1454 = vpop.f32.mrf.mxu0
        %v1455 = vadd.f32 0.0, %v1454
        %v1456 = vpop.f32.mrf.mxu0
        %1457 = vdwg.mxu0
        %1458 = vrot.lane.b32.xlu0 %v1325, 64
        %v1459 = vpop.permute.xlu0 %1458
        %v1461 = vsel %vm746, %v1394, 0
        %v1464 = vsel %vm891, %v1459, 0
        %1466 = vmatpush.bf16.msra.mxu0 0
        %1467 = vmatpush.bf16.msra.mxu0 0
        %1468 = vmatpush.bf16.msra.mxu0 0
        %1469 = vmatpush.bf16.msra.mxu0 0
        %1470 = vmatpush.bf16.msra.mxu0 0
        %1471 = vmatpush.bf16.msra.mxu0 0
        %1472 = vmatpush.bf16.msra.mxu0 0
        %1473 = vmatpush.bf16.msra.mxu0 %v1464
        %1474 = vmatmul.bf16.gmra.mxu0 %v1461
        %v1475 = vpop.f32.mrf.mxu0
        %v1476 = vadd.f32 0.0, %v1475
        %v1477 = vpop.f32.mrf.mxu0
        %1478 = vdwg.mxu0
        %1480 = vrot.lane.b32.xlu0 %v1434, 8
        %v1481 = vpop.permute.xlu0 %1480
        %1484 = vrot.lane.b32.xlu0 %v1455, 16
        %v1485 = vpop.permute.xlu0 %1484
        %1488 = vrot.lane.b32.xlu0 %v1476, 24
        %v1489 = vpop.permute.xlu0 %1488
        %v1491 = vsel %vm746, %v1413, %v1481
        %v1492 = vsel %vm984, %v1491, %v1485
        %v1493 = vsel %vm986, %v1492, %v1489
        %v1494 = vpack.c.bf16 %v1493, %v1493
        %s1495 = scalar_lea.vmem %s6, 16
        %v1496 = vld [vmem:[%s1495] sm:$0xf]
        %v1497 = vld [vmem:[%s1495 + $0x4] sm:$0xf]
        %v1498 = vld [vmem:[%s1495 + $0x8] sm:$0xf]
        %v1499 = vld [vmem:[%s1495 + $0xc] sm:$0xf]
        %s1500 = scalar_lea.vmem %s7, 1
        %v1501 = vld [vmem:[%s1500] sm:$0x1]
        %v1503 = vperm.slane %v1501, 0
        %v1509 = vunpack.c.l.b16 %v1496
        %v1510 = vunpack.c.l.b16 %v1497
        %v1511 = vunpack.c.l.b16 %v1498
        %v1512 = vunpack.c.l.b16 %v1499
        %v1513 = vpack.c.b16 %v1510, %v1509
        %v1514 = vpack.c.b16 %v1512, %v1511
        %v1518 = vsel %vm710, %v1494, 0
        %1520 = vmatpush.bf16.msra.mxu0 0
        %1521 = vmatpush.bf16.msra.mxu0 0
        %1522 = vmatpush.bf16.msra.mxu0 0
        %1523 = vmatpush.bf16.msra.mxu0 0
        %1524 = vmatpush.bf16.msra.mxu0 0
        %1525 = vmatpush.bf16.msra.mxu0 0
        %1526 = vmatpush.bf16.msra.mxu0 %v1514
        %1527 = vmatpush.bf16.msra.mxu0 %v1513
        %1528 = vmatmul.bf16.gmra.mxu0 %v1518
        %v1529 = vpop.f32.mrf.mxu0
        %v1530 = vadd.f32 %v1503, %v1529
        %v1531 = vpop.f32.mrf.mxu0
        %1532 = vdwg.mxu0
        %v1533 = vadd.f32 %v1197, %v1530
        %s1534 = scalar_lea.vmem %s8, 1
        %v1535 = vld [vmem:[%s1534] sm:$0x1]
        %s1536 = scalar_lea.vmem %s9, 1
        %v1537 = vld [vmem:[%s1536] sm:$0x1]
        %v1538 = vsel %vm710, %v1533, 0.0
        %1539 = vadd.xlane.f32.xlu0 %v1538
        %v1540 = vpop.xlane.xlu0 %1539
        %v1541 = vmul.f32 %v1540, %v1037
        %v1542 = vsub.f32 %v1533, %v1541
        %v1543 = vmul.f32 %v1542, %v1542
        %v1544 = vsel %vm710, %v1543, 0.0
        %1545 = vadd.xlane.f32.xlu0 %v1544
        %v1546 = vpop.xlane.xlu0 %1545
        %v1547 = vmul.f32 %v1546, %v1037
        %v1548 = vadd.f32 %v1547, 1e-12
        %v1549 = vrsqrt.pop %v1548
        %v1550 = vmul.f32 %v1549, %v1548
        %v1551 = vmul.f32 %v1550, %v1549
        %v1552 = vmul.f32 0.5, %v1551
        %v1553 = vsub.f32 1.5, %v1552
        %v1554 = vmul.f32 %v1549, %v1553
        %vm1555 = vweird.f32 %v1548
        %vm1556 = vweird.f32 %v1549
        %vm1557 = vmor %vm1555, %vm1556
        %v1558 = vsel %vm1557, %v1549, %v1554
        %v1559 = vmul.f32 %v1542, %v1558
        %v1561 = vperm.slane %v1535, 0
        %v1563 = vmul.f32 %v1559, %v1561
        %v1565 = vperm.slane %v1537, 0
        %v1567 = vadd.f32 %v1563, %v1565
        %v1568 = vpack.c.bf16 %v1567, %v1567
        %s1569 = scalar_lea.vmem %s10, 16
        %v1570 = vld [vmem:[%s1569] sm:$0xf]
        %v1571 = vld [vmem:[%s1569 + $0x4] sm:$0xf]
        %v1572 = vld [vmem:[%s1569 + $0x8] sm:$0xf]
        %v1573 = vld [vmem:[%s1569 + $0xc] sm:$0xf]
        %s1574 = scalar_lea.vmem %s11, 1
        %v1575 = vld [vmem:[%s1574] sm:$0x1]
        %v1577 = vperm.slane %v1575, 0
        %v1583 = vunpack.c.l.b16 %v1570
        %v1584 = vunpack.c.l.b16 %v1571
        %v1585 = vunpack.c.l.b16 %v1572
        %v1586 = vunpack.c.l.b16 %v1573
        %v1587 = vpack.c.b16 %v1584, %v1583
        %v1588 = vpack.c.b16 %v1586, %v1585
        %v1592 = vsel %vm710, %v1568, 0
        %1594 = vmatpush.bf16.msra.mxu0 0
        %1595 = vmatpush.bf16.msra.mxu0 0
        %1596 = vmatpush.bf16.msra.mxu0 0
        %1597 = vmatpush.bf16.msra.mxu0 0
        %1598 = vmatpush.bf16.msra.mxu0 0
        %1599 = vmatpush.bf16.msra.mxu0 0
        %1600 = vmatpush.bf16.msra.mxu0 %v1588
        %1601 = vmatpush.bf16.msra.mxu0 %v1587
        %1602 = vmatmul.bf16.gmra.mxu0 %v1592
        %v1603 = vpop.f32.mrf.mxu0
        %v1604 = vadd.f32 %v1577, %v1603
        %v1605 = vpop.f32.mrf.mxu0
        %1606 = vdwg.mxu0
        %v1607 = vmul.f32 %v1604, %v1604
        %v1608 = vmul.f32 %v1604, %v1607
        %v1609 = vmul.f32 %v1608, 0.044715
        %v1610 = vadd.f32 %v1604, %v1609
        %v1611 = vmul.f32 %v1610, 0.7978846
        %v1612 = vtanh.pop %v1611
        %v1613 = vadd.f32 %v1612, 1.0
        %v1614 = vmul.f32 %v1613, 0.5
        %v1615 = vmul.f32 %v1604, %v1614
        %v1616 = vpack.c.bf16 %v1615, %v1615
        %s1617 = scalar_lea.vmem %s12, 32
        %v1618 = vld [vmem:[%s1617] sm:$0xf]
        %v1619 = vld [vmem:[%s1617 + $0x4] sm:$0xf]
        %v1620 = vld [vmem:[%s1617 + $0x8] sm:$0xf]
        %v1621 = vld [vmem:[%s1617 + $0xc] sm:$0xf]
        %v1622 = vld [vmem:[%s1617 + $0x10] sm:$0xf]
        %v1623 = vld [vmem:[%s1617 + $0x14] sm:$0xf]
        %v1624 = vld [vmem:[%s1617 + $0x18] sm:$0xf]
        %v1625 = vld [vmem:[%s1617 + $0x1c] sm:$0xf]
        %s1626 = scalar_lea.vmem %s13, 1
        %v1627 = vld [vmem:[%s1626] sm:$0x1]
        %v1629 = vperm.slane %v1627, 0
        %v1639 = vunpack.c.l.b16 %v1618
        %v1640 = vunpack.c.l.b16 %v1619
        %v1641 = vunpack.c.l.b16 %v1620
        %v1642 = vunpack.c.l.b16 %v1621
        %v1643 = vunpack.c.l.b16 %v1622
        %v1644 = vunpack.c.l.b16 %v1623
        %v1645 = vunpack.c.l.b16 %v1624
        %v1646 = vunpack.c.l.b16 %v1625
        %v1647 = vpack.c.b16 %v1640, %v1639
        %v1648 = vpack.c.b16 %v1642, %v1641
        %v1649 = vpack.c.b16 %v1644, %v1643
        %v1650 = vpack.c.b16 %v1646, %v1645
        %v1656 = vsel %vm1148, %v1616, 0
        %1658 = vmatpush.bf16.msra.mxu0 0
        %1659 = vmatpush.bf16.msra.mxu0 0
        %1660 = vmatpush.bf16.msra.mxu0 0
        %1661 = vmatpush.bf16.msra.mxu0 0
        %1662 = vmatpush.bf16.msra.mxu0 %v1650
        %1663 = vmatpush.bf16.msra.mxu0 %v1649
        %1664 = vmatpush.bf16.msra.mxu0 %v1648
        %1665 = vmatpush.bf16.msra.mxu0 %v1647
        %1666 = vmatmul.bf16.gmra.mxu0 %v1656
        %v1667 = vpop.f32.mrf.mxu0
        %v1668 = vadd.f32 %v1629, %v1667
        %v1669 = vpop.f32.mrf.mxu0
        %1670 = vdwg.mxu0
        %v1671 = vadd.f32 %v1567, %v1668
        %s1672 = scalar_lea.vmem %s14, 1
        %v1673 = vld [vmem:[%s1672] sm:$0x1]
        %s1674 = scalar_lea.vmem %s15, 1
        %v1675 = vld [vmem:[%s1674] sm:$0x1]
        %v1676 = vsel %vm710, %v1671, 0.0
        %1677 = vadd.xlane.f32.xlu0 %v1676
        %v1678 = vpop.xlane.xlu0 %1677
        %v1679 = vmul.f32 %v1678, %v1037
        %v1680 = vsub.f32 %v1671, %v1679
        %v1681 = vmul.f32 %v1680, %v1680
        %v1682 = vsel %vm710, %v1681, 0.0
        %1683 = vadd.xlane.f32.xlu0 %v1682
        %v1684 = vpop.xlane.xlu0 %1683
        %v1685 = vmul.f32 %v1684, %v1037
        %v1686 = vadd.f32 %v1685, 1e-12
        %v1687 = vrsqrt.pop %v1686
        %v1688 = vmul.f32 %v1687, %v1686
        %v1689 = vmul.f32 %v1688, %v1687
        %v1690 = vmul.f32 0.5, %v1689
        %v1691 = vsub.f32 1.5, %v1690
        %v1692 = vmul.f32 %v1687, %v1691
        %vm1693 = vweird.f32 %v1686
        %vm1694 = vweird.f32 %v1687
        %vm1695 = vmor %vm1693, %vm1694
        %v1696 = vsel %vm1695, %v1687, %v1692
        %v1697 = vmul.f32 %v1680, %v1696
        %v1699 = vperm.slane %v1673, 0
        %v1701 = vmul.f32 %v1697, %v1699
        %v1703 = vperm.slane %v1675, 0
        %v1705 = vadd.f32 %v1701, %v1703
        %v1706 = vpack.c.bf16 %v1705, %v1705
        %s1707 = scalar_lea.vmem %s4, 32
        %v1708 = vld [vmem:[%s1707] sm:$0xf]
        %v1709 = vld [vmem:[%s1707 + $0x4] sm:$0xf]
        %v1710 = vld [vmem:[%s1707 + $0x8] sm:$0xf]
        %v1711 = vld [vmem:[%s1707 + $0xc] sm:$0xf]
        %s1712 = scalar_lea.vmem %s5, 2
        %v1713 = vld [vmem:[%s1712] sm:$0x1]
        %v1715 = vperm.slane %v1713, 0
        %v1721 = vunpack.c.l.b16 %v1708
        %v1722 = vunpack.c.l.b16 %v1709
        %v1723 = vunpack.c.l.b16 %v1710
        %v1724 = vunpack.c.l.b16 %v1711
        %v1725 = vpack.c.b16 %v1722, %v1721
        %v1726 = vpack.c.b16 %v1724, %v1723
        %v1730 = vsel %vm710, %v1706, 0
        %1732 = vmatpush.bf16.msra.mxu0 0
        %1733 = vmatpush.bf16.msra.mxu0 0
        %1734 = vmatpush.bf16.msra.mxu0 0
        %1735 = vmatpush.bf16.msra.mxu0 0
        %1736 = vmatpush.bf16.msra.mxu0 0
        %1737 = vmatpush.bf16.msra.mxu0 0
        %1738 = vmatpush.bf16.msra.mxu0 %v1726
        %1739 = vmatpush.bf16.msra.mxu0 %v1725
        %1740 = vmatmul.bf16.gmra.mxu0 %v1730
        %v1741 = vpop.f32.mrf.mxu0
        %v1742 = vadd.f32 %v1715, %v1741
        %v1743 = vpop.f32.mrf.mxu0
        %1744 = vdwg.mxu0
        %1746 = vrot.lane.b32.xlu0 %v1742, 120
        %v1747 = vpop.permute.xlu0 %1746
        %1749 = vrot.lane.b32.xlu0 %v1742, 112
        %v1750 = vpop.permute.xlu0 %1749
        %1752 = vrot.lane.b32.xlu0 %v1742, 104
        %v1753 = vpop.permute.xlu0 %1752
        %v1755 = vpack.c.bf16 %v1742, %v1742
        %v1756 = vpack.c.bf16 %v1747, %v1747
        %v1757 = vpack.c.bf16 %v1750, %v1750
        %v1758 = vpack.c.bf16 %v1753, %v1753
        %v1760 = vunpack.c.l.b16 %v1755
        %v1761 = vpack.c.b16 %v1760, %v1760
        %1762 = vrot.lane.b32.xlu0 %v1761, 96
        %v1763 = vpop.permute.xlu0 %1762
        %v1765 = vsel %vm746, %v1755, 0
        %v1768 = vsel %vm746, %v1763, 0
        %1770 = vmatpush.bf16.xpose.msra.mxu0 0
        %1771 = vmatpush.bf16.xpose.msra.mxu0 0
        %1772 = vmatpush.bf16.xpose.msra.mxu0 0
        %1773 = vmatpush.bf16.xpose.msra.mxu0 0
        %1774 = vmatpush.bf16.xpose.msra.mxu0 0
        %1775 = vmatpush.bf16.xpose.msra.mxu0 0
        %1776 = vmatpush.bf16.xpose.msra.mxu0 0
        %1777 = vmatpush.bf16.xpose.msra.mxu0 %v1768
        %1778 = vmatmul.bf16.gmra.mxu0 %v1765
        %v1779 = vpop.f32.mrf.mxu0
        %v1780 = vadd.f32 0.0, %v1779
        %v1781 = vpop.f32.mrf.mxu0
        %1782 = vdwg.mxu0
        %v1784 = vunpack.c.l.b16 %v1756
        %v1785 = vpack.c.b16 %v1784, %v1784
        %1786 = vrot.lane.b32.xlu0 %v1785, 96
        %v1787 = vpop.permute.xlu0 %1786
        %v1789 = vsel %vm746, %v1756, 0
        %v1792 = vsel %vm746, %v1787, 0
        %1794 = vmatpush.bf16.xpose.msra.mxu0 0
        %1795 = vmatpush.bf16.xpose.msra.mxu0 0
        %1796 = vmatpush.bf16.xpose.msra.mxu0 0
        %1797 = vmatpush.bf16.xpose.msra.mxu0 0
        %1798 = vmatpush.bf16.xpose.msra.mxu0 0
        %1799 = vmatpush.bf16.xpose.msra.mxu0 0
        %1800 = vmatpush.bf16.xpose.msra.mxu0 0
        %1801 = vmatpush.bf16.xpose.msra.mxu0 %v1792
        %1802 = vmatmul.bf16.gmra.mxu0 %v1789
        %v1803 = vpop.f32.mrf.mxu0
        %v1804 = vadd.f32 0.0, %v1803
        %v1805 = vpop.f32.mrf.mxu0
        %1806 = vdwg.mxu0
        %v1808 = vunpack.c.l.b16 %v1757
        %v1809 = vpack.c.b16 %v1808, %v1808
        %1810 = vrot.lane.b32.xlu0 %v1809, 96
        %v1811 = vpop.permute.xlu0 %1810
        %v1813 = vsel %vm746, %v1757, 0
        %v1816 = vsel %vm746, %v1811, 0
        %1818 = vmatpush.bf16.xpose.msra.mxu0 0
        %1819 = vmatpush.bf16.xpose.msra.mxu0 0
        %1820 = vmatpush.bf16.xpose.msra.mxu0 0
        %1821 = vmatpush.bf16.xpose.msra.mxu0 0
        %1822 = vmatpush.bf16.xpose.msra.mxu0 0
        %1823 = vmatpush.bf16.xpose.msra.mxu0 0
        %1824 = vmatpush.bf16.xpose.msra.mxu0 0
        %1825 = vmatpush.bf16.xpose.msra.mxu0 %v1816
        %1826 = vmatmul.bf16.gmra.mxu0 %v1813
        %v1827 = vpop.f32.mrf.mxu0
        %v1828 = vadd.f32 0.0, %v1827
        %v1829 = vpop.f32.mrf.mxu0
        %1830 = vdwg.mxu0
        %v1832 = vunpack.c.l.b16 %v1758
        %v1833 = vpack.c.b16 %v1832, %v1832
        %1834 = vrot.lane.b32.xlu0 %v1833, 96
        %v1835 = vpop.permute.xlu0 %1834
        %v1837 = vsel %vm746, %v1758, 0
        %v1840 = vsel %vm746, %v1835, 0
        %1842 = vmatpush.bf16.xpose.msra.mxu0 0
        %1843 = vmatpush.bf16.xpose.msra.mxu0 0
        %1844 = vmatpush.bf16.xpose.msra.mxu0 0
        %1845 = vmatpush.bf16.xpose.msra.mxu0 0
        %1846 = vmatpush.bf16.xpose.msra.mxu0 0
        %1847 = vmatpush.bf16.xpose.msra.mxu0 0
        %1848 = vmatpush.bf16.xpose.msra.mxu0 0
        %1849 = vmatpush.bf16.xpose.msra.mxu0 %v1840
        %1850 = vmatmul.bf16.gmra.mxu0 %v1837
        %v1851 = vpop.f32.mrf.mxu0
        %v1852 = vadd.f32 0.0, %v1851
        %v1853 = vpop.f32.mrf.mxu0
        %1854 = vdwg.mxu0
        %v1855 = vsel %vm746, %v1780, -inf
        %1856 = vmax.xlane.f32.xlu0 %v1855
        %v1857 = vpop.xlane.xlu0 %1856
        %v1858 = vsel %vm746, %v1804, -inf
        %1859 = vmax.xlane.f32.xlu0 %v1858
        %v1860 = vpop.xlane.xlu0 %1859
        %v1861 = vsel %vm746, %v1828, -inf
        %1862 = vmax.xlane.f32.xlu0 %v1861
        %v1863 = vpop.xlane.xlu0 %1862
        %v1864 = vsel %vm746, %v1852, -inf
        %1865 = vmax.xlane.f32.xlu0 %v1864
        %v1866 = vpop.xlane.xlu0 %1865
        %v1867 = vsub.f32 %v1780, %v1857
        %v1868 = vsub.f32 %v1804, %v1860
        %v1869 = vsub.f32 %v1828, %v1863
        %v1870 = vsub.f32 %v1852, %v1866
        %v1871 = vmul.f32 %v1867, 1.442695
        %v1872 = vpow.pop %v1871
        %v1873 = vmul.f32 %v1868, 1.442695
        %v1874 = vpow.pop %v1873
        %v1875 = vmul.f32 %v1869, 1.442695
        %v1876 = vpow.pop %v1875
        %v1877 = vmul.f32 %v1870, 1.442695
        %v1878 = vpow.pop %v1877
        %v1879 = vsel %vm746, %v1872, 0.0
        %1880 = vadd.xlane.f32.xlu0 %v1879
        %v1881 = vpop.xlane.xlu0 %1880
        %v1882 = vsel %vm746, %v1874, 0.0
        %1883 = vadd.xlane.f32.xlu0 %v1882
        %v1884 = vpop.xlane.xlu0 %1883
        %v1885 = vsel %vm746, %v1876, 0.0
        %1886 = vadd.xlane.f32.xlu0 %v1885
        %v1887 = vpop.xlane.xlu0 %1886
        %v1888 = vsel %vm746, %v1878, 0.0
        %1889 = vadd.xlane.f32.xlu0 %v1888
        %v1890 = vpop.xlane.xlu0 %1889
        %v1891 = vrcp.pop %v1881
        %v1892 = vrcp.pop %v1884
        %v1893 = vrcp.pop %v1887
        %v1894 = vrcp.pop %v1890
        %v1895 = vmul.f32 %v1872, %v1891
        %v1896 = vmul.f32 %v1874, %v1892
        %v1897 = vmul.f32 %v1876, %v1893
        %v1898 = vmul.f32 %v1878, %v1894
        %v1899 = vpack.c.bf16 %v1895, %v1895
        %v1900 = vpack.c.bf16 %v1896, %v1896
        %v1901 = vpack.c.bf16 %v1897, %v1897
        %v1902 = vpack.c.bf16 %v1898, %v1898
        %1903 = vrot.lane.b32.xlu0 %v1761, 64
        %v1904 = vpop.permute.xlu0 %1903
        %v1906 = vsel %vm746, %v1899, 0
        %v1909 = vsel %vm891, %v1904, 0
        %1911 = vmatpush.bf16.msra.mxu0 0
        %1912 = vmatpush.bf16.msra.mxu0 0
        %1913 = vmatpush.bf16.msra.mxu0 0
        %1914 = vmatpush.bf16.msra.mxu0 0
        %1915 = vmatpush.bf16.msra.mxu0 0
        %1916 = vmatpush.bf16.msra.mxu0 0
        %1917 = vmatpush.bf16.msra.mxu0 0
        %1918 = vmatpush.bf16.msra.mxu0 %v1909
        %1919 = vmatmul.bf16.gmra.mxu0 %v1906
        %v1920 = vpop.f32.mrf.mxu0
        %v1921 = vadd.f32 0.0, %v1920
        %v1922 = vpop.f32.mrf.mxu0
        %1923 = vdwg.mxu0
        %1924 = vrot.lane.b32.xlu0 %v1785, 64
        %v1925 = vpop.permute.xlu0 %1924
        %v1927 = vsel %vm746, %v1900, 0
        %v1930 = vsel %vm891, %v1925, 0
        %1932 = vmatpush.bf16.msra.mxu0 0
        %1933 = vmatpush.bf16.msra.mxu0 0
        %1934 = vmatpush.bf16.msra.mxu0 0
        %1935 = vmatpush.bf16.msra.mxu0 0
        %1936 = vmatpush.bf16.msra.mxu0 0
        %1937 = vmatpush.bf16.msra.mxu0 0
        %1938 = vmatpush.bf16.msra.mxu0 0
        %1939 = vmatpush.bf16.msra.mxu0 %v1930
        %1940 = vmatmul.bf16.gmra.mxu0 %v1927
        %v1941 = vpop.f32.mrf.mxu0
        %v1942 = vadd.f32 0.0, %v1941
        %v1943 = vpop.f32.mrf.mxu0
        %1944 = vdwg.mxu0
        %1945 = vrot.lane.b32.xlu0 %v1809, 64
        %v1946 = vpop.permute.xlu0 %1945
        %v1948 = vsel %vm746, %v1901, 0
        %v1951 = vsel %vm891, %v1946, 0
        %1953 = vmatpush.bf16.msra.mxu0 0
        %1954 = vmatpush.bf16.msra.mxu0 0
        %1955 = vmatpush.bf16.msra.mxu0 0
        %1956 = vmatpush.bf16.msra.mxu0 0
        %1957 = vmatpush.bf16.msra.mxu0 0
        %1958 = vmatpush.bf16.msra.mxu0 0
        %1959 = vmatpush.bf16.msra.mxu0 0
        %1960 = vmatpush.bf16.msra.mxu0 %v1951
        %1961 = vmatmul.bf16.gmra.mxu0 %v1948
        %v1962 = vpop.f32.mrf.mxu0
        %v1963 = vadd.f32 0.0, %v1962
        %v1964 = vpop.f32.mrf.mxu0
        %1965 = vdwg.mxu0
        %1966 = vrot.lane.b32.xlu0 %v1833, 64
        %v1967 = vpop.permute.xlu0 %1966
        %v1969 = vsel %vm746, %v1902, 0
        %v1972 = vsel %vm891, %v1967, 0
        %1974 = vmatpush.bf16.msra.mxu0 0
        %1975 = vmatpush.bf16.msra.mxu0 0
        %1976 = vmatpush.bf16.msra.mxu0 0
        %1977 = vmatpush.bf16.msra.mxu0 0
        %1978 = vmatpush.bf16.msra.mxu0 0
        %1979 = vmatpush.bf16.msra.mxu0 0
        %1980 = vmatpush.bf16.msra.mxu0 0
        %1981 = vmatpush.bf16.msra.mxu0 %v1972
        %1982 = vmatmul.bf16.gmra.mxu0 %v1969
        %v1983 = vpop.f32.mrf.mxu0
        %v1984 = vadd.f32 0.0, %v1983
        %v1985 = vpop.f32.mrf.mxu0
        %1986 = vdwg.mxu0
        %1988 = vrot.lane.b32.xlu0 %v1942, 8
        %v1989 = vpop.permute.xlu0 %1988
        %1992 = vrot.lane.b32.xlu0 %v1963, 16
        %v1993 = vpop.permute.xlu0 %1992
        %1996 = vrot.lane.b32.xlu0 %v1984, 24
        %v1997 = vpop.permute.xlu0 %1996
        %v1999 = vsel %vm746, %v1921, %v1989
        %v2000 = vsel %vm984, %v1999, %v1993
        %v2001 = vsel %vm986, %v2000, %v1997
        %v2002 = vpack.c.bf16 %v2001, %v2001
        %s2003 = scalar_lea.vmem %s6, 32
        %v2004 = vld [vmem:[%s2003] sm:$0xf]
        %v2005 = vld [vmem:[%s2003 + $0x4] sm:$0xf]
        %v2006 = vld [vmem:[%s2003 + $0x8] sm:$0xf]
        %v2007 = vld [vmem:[%s2003 + $0xc] sm:$0xf]
        %s2008 = scalar_lea.vmem %s7, 2
        %v2009 = vld [vmem:[%s2008] sm:$0x1]
        %v2011 = vperm.slane %v2009, 0
        %v2017 = vunpack.c.l.b16 %v2004
        %v2018 = vunpack.c.l.b16 %v2005
        %v2019 = vunpack.c.l.b16 %v2006
        %v2020 = vunpack.c.l.b16 %v2007
        %v2021 = vpack.c.b16 %v2018, %v2017
        %v2022 = vpack.c.b16 %v2020, %v2019
        %v2026 = vsel %vm710, %v2002, 0
        %2028 = vmatpush.bf16.msra.mxu0 0
        %2029 = vmatpush.bf16.msra.mxu0 0
        %2030 = vmatpush.bf16.msra.mxu0 0
        %2031 = vmatpush.bf16.msra.mxu0 0
        %2032 = vmatpush.bf16.msra.mxu0 0
        %2033 = vmatpush.bf16.msra.mxu0 0
        %2034 = vmatpush.bf16.msra.mxu0 %v2022
        %2035 = vmatpush.bf16.msra.mxu0 %v2021
        %2036 = vmatmul.bf16.gmra.mxu0 %v2026
        %v2037 = vpop.f32.mrf.mxu0
        %v2038 = vadd.f32 %v2011, %v2037
        %v2039 = vpop.f32.mrf.mxu0
        %2040 = vdwg.mxu0
        %v2041 = vadd.f32 %v1705, %v2038
        %s2042 = scalar_lea.vmem %s8, 2
        %v2043 = vld [vmem:[%s2042] sm:$0x1]
        %s2044 = scalar_lea.vmem %s9, 2
        %v2045 = vld [vmem:[%s2044] sm:$0x1]
        %v2046 = vsel %vm710, %v2041, 0.0
        %2047 = vadd.xlane.f32.xlu0 %v2046
        %v2048 = vpop.xlane.xlu0 %2047
        %v2049 = vmul.f32 %v2048, %v1037
        %v2050 = vsub.f32 %v2041, %v2049
        %v2051 = vmul.f32 %v2050, %v2050
        %v2052 = vsel %vm710, %v2051, 0.0
        %2053 = vadd.xlane.f32.xlu0 %v2052
        %v2054 = vpop.xlane.xlu0 %2053
        %v2055 = vmul.f32 %v2054, %v1037
        %v2056 = vadd.f32 %v2055, 1e-12
        %v2057 = vrsqrt.pop %v2056
        %v2058 = vmul.f32 %v2057, %v2056
        %v2059 = vmul.f32 %v2058, %v2057
        %v2060 = vmul.f32 0.5, %v2059
        %v2061 = vsub.f32 1.5, %v2060
        %v2062 = vmul.f32 %v2057, %v2061
        %vm2063 = vweird.f32 %v2056
        %vm2064 = vweird.f32 %v2057
        %vm2065 = vmor %vm2063, %vm2064
        %v2066 = vsel %vm2065, %v2057, %v2062
        %v2067 = vmul.f32 %v2050, %v2066
        %v2069 = vperm.slane %v2043, 0
        %v2071 = vmul.f32 %v2067, %v2069
        %v2073 = vperm.slane %v2045, 0
        %v2075 = vadd.f32 %v2071, %v2073
        %v2076 = vpack.c.bf16 %v2075, %v2075
        %s2077 = scalar_lea.vmem %s10, 32
        %v2078 = vld [vmem:[%s2077] sm:$0xf]
        %v2079 = vld [vmem:[%s2077 + $0x4] sm:$0xf]
        %v2080 = vld [vmem:[%s2077 + $0x8] sm:$0xf]
        %v2081 = vld [vmem:[%s2077 + $0xc] sm:$0xf]
        %s2082 = scalar_lea.vmem %s11, 2
        %v2083 = vld [vmem:[%s2082] sm:$0x1]
        %v2085 = vperm.slane %v2083, 0
        %v2091 = vunpack.c.l.b16 %v2078
        %v2092 = vunpack.c.l.b16 %v2079
        %v2093 = vunpack.c.l.b16 %v2080
        %v2094 = vunpack.c.l.b16 %v2081
        %v2095 = vpack.c.b16 %v2092, %v2091
        %v2096 = vpack.c.b16 %v2094, %v2093
        %v2100 = vsel %vm710, %v2076, 0
        %2102 = vmatpush.bf16.msra.mxu0 0
        %2103 = vmatpush.bf16.msra.mxu0 0
        %2104 = vmatpush.bf16.msra.mxu0 0
        %2105 = vmatpush.bf16.msra.mxu0 0
        %2106 = vmatpush.bf16.msra.mxu0 0
        %2107 = vmatpush.bf16.msra.mxu0 0
        %2108 = vmatpush.bf16.msra.mxu0 %v2096
        %2109 = vmatpush.bf16.msra.mxu0 %v2095
        %2110 = vmatmul.bf16.gmra.mxu0 %v2100
        %v2111 = vpop.f32.mrf.mxu0
        %v2112 = vadd.f32 %v2085, %v2111
        %v2113 = vpop.f32.mrf.mxu0
        %2114 = vdwg.mxu0
        %v2115 = vmul.f32 %v2112, %v2112
        %v2116 = vmul.f32 %v2112, %v2115
        %v2117 = vmul.f32 %v2116, 0.044715
        %v2118 = vadd.f32 %v2112, %v2117
        %v2119 = vmul.f32 %v2118, 0.7978846
        %v2120 = vtanh.pop %v2119
        %v2121 = vadd.f32 %v2120, 1.0
        %v2122 = vmul.f32 %v2121, 0.5
        %v2123 = vmul.f32 %v2112, %v2122
        %v2124 = vpack.c.bf16 %v2123, %v2123
        %s2125 = scalar_lea.vmem %s12, 64
        %v2126 = vld [vmem:[%s2125] sm:$0xf]
        %v2127 = vld [vmem:[%s2125 + $0x4] sm:$0xf]
        %v2128 = vld [vmem:[%s2125 + $0x8] sm:$0xf]
        %v2129 = vld [vmem:[%s2125 + $0xc] sm:$0xf]
        %v2130 = vld [vmem:[%s2125 + $0x10] sm:$0xf]
        %v2131 = vld [vmem:[%s2125 + $0x14] sm:$0xf]
        %v2132 = vld [vmem:[%s2125 + $0x18] sm:$0xf]
        %v2133 = vld [vmem:[%s2125 + $0x1c] sm:$0xf]
        %s2134 = scalar_lea.vmem %s13, 2
        %v2135 = vld [vmem:[%s2134] sm:$0x1]
        %v2137 = vperm.slane %v2135, 0
        %v2147 = vunpack.c.l.b16 %v2126
        %v2148 = vunpack.c.l.b16 %v2127
        %v2149 = vunpack.c.l.b16 %v2128
        %v2150 = vunpack.c.l.b16 %v2129
        %v2151 = vunpack.c.l.b16 %v2130
        %v2152 = vunpack.c.l.b16 %v2131
        %v2153 = vunpack.c.l.b16 %v2132
        %v2154 = vunpack.c.l.b16 %v2133
        %v2155 = vpack.c.b16 %v2148, %v2147
        %v2156 = vpack.c.b16 %v2150, %v2149
        %v2157 = vpack.c.b16 %v2152, %v2151
        %v2158 = vpack.c.b16 %v2154, %v2153
        %v2164 = vsel %vm1148, %v2124, 0
        %2166 = vmatpush.bf16.msra.mxu0 0
        %2167 = vmatpush.bf16.msra.mxu0 0
        %2168 = vmatpush.bf16.msra.mxu0 0
        %2169 = vmatpush.bf16.msra.mxu0 0
        %2170 = vmatpush.bf16.msra.mxu0 %v2158
        %2171 = vmatpush.bf16.msra.mxu0 %v2157
        %2172 = vmatpush.bf16.msra.mxu0 %v2156
        %2173 = vmatpush.bf16.msra.mxu0 %v2155
        %2174 = vmatmul.bf16.gmra.mxu0 %v2164
        %v2175 = vpop.f32.mrf.mxu0
        %v2176 = vadd.f32 %v2137, %v2175
        %v2177 = vpop.f32.mrf.mxu0
        %2178 = vdwg.mxu0
        %v2179 = vadd.f32 %v2075, %v2176
        %s2180 = scalar_lea.vmem %s14, 2
        %v2181 = vld [vmem:[%s2180] sm:$0x1]
        %s2182 = scalar_lea.vmem %s15, 2
        %v2183 = vld [vmem:[%s2182] sm:$0x1]
        %v2184 = vsel %vm710, %v2179, 0.0
        %2185 = vadd.xlane.f32.xlu0 %v2184
        %v2186 = vpop.xlane.xlu0 %2185
        %v2187 = vmul.f32 %v2186, %v1037
        %v2188 = vsub.f32 %v2179, %v2187
        %v2189 = vmul.f32 %v2188, %v2188
        %v2190 = vsel %vm710, %v2189, 0.0
        %2191 = vadd.xlane.f32.xlu0 %v2190
        %v2192 = vpop.xlane.xlu0 %2191
        %v2193 = vmul.f32 %v2192, %v1037
        %v2194 = vadd.f32 %v2193, 1e-12
        %v2195 = vrsqrt.pop %v2194
        %v2196 = vmul.f32 %v2195, %v2194
        %v2197 = vmul.f32 %v2196, %v2195
        %v2198 = vmul.f32 0.5, %v2197
        %v2199 = vsub.f32 1.5, %v2198
        %v2200 = vmul.f32 %v2195, %v2199
        %vm2201 = vweird.f32 %v2194
        %vm2202 = vweird.f32 %v2195
        %vm2203 = vmor %vm2201, %vm2202
        %v2204 = vsel %vm2203, %v2195, %v2200
        %v2205 = vmul.f32 %v2188, %v2204
        %v2207 = vperm.slane %v2181, 0
        %v2209 = vmul.f32 %v2205, %v2207
        %v2211 = vperm.slane %v2183, 0
        %v2213 = vadd.f32 %v2209, %v2211
        %v2215 = vrot.slane %v2213, 1
        %2216 = vrot.lane.b32.xlu0 %v2215, 32
        %v2217 = vpop.permute.xlu0 %2216
        %v2219 = vrot.slane %v2213, 2
        %2220 = vrot.lane.b32.xlu0 %v2219, 64
        %v2221 = vpop.permute.xlu0 %2220
        %v2223 = vrot.slane %v2213, 3
        %2224 = vrot.lane.b32.xlu0 %v2223, 96
        %v2225 = vpop.permute.xlu0 %2224
        %v2227 = vrot.slane %v2213, 4
        %v2229 = vrot.slane %v2213, 5
        %2230 = vrot.lane.b32.xlu0 %v2229, 32
        %v2231 = vpop.permute.xlu0 %2230
        %v2233 = vrot.slane %v2213, 6
        %2234 = vrot.lane.b32.xlu0 %v2233, 64
        %v2235 = vpop.permute.xlu0 %2234
        %v2237 = vrot.slane %v2213, 7
        %2238 = vrot.lane.b32.xlu0 %v2237, 96
        %v2239 = vpop.permute.xlu0 %2238
        %v2241 = vsel %vm710, %v2213, %v2217
        %v2242 = vsel %vm1148, %v2241, %v2221
        %vm2243 = vcmask 785408
        %v2244 = vsel %vm2243, %v2242, %v2225
        %v2245 = vsel %vm710, %v2227, %v2231
        %v2246 = vsel %vm1148, %v2245, %v2235
        %v2247 = vsel %vm2243, %v2246, %v2239
        %v2250 = vrot.slane %v2247, 7
        %vm2251 = vcmask 1040384
        %v2252 = vsel %vm2251, %v2244, %v2250
        %v2254 = vlaneseq
        %vm2255 = vcmp.ge.s32.totalorder %v2254, 0
        %vm2256 = vcmp.lt.s32.totalorder %v2254, 256
        %vm2257 = vmand %vm2255, %vm2256
        %2258 = vst.msk [vmem:[%s514] sm:$0x3] %vm2257, %v2252
        %s2259 = sand.u32 %s379, 1
        %s2260 = scalar_lea.sflag [#allocation3], %s2259
        %s2261 = sand.u32 %s379, 1
        %s2262 = smul.addr %s2261, 2
        %s2263 = scalar_lea.vmem [#allocation2], %s2262
        // Predicated region
        $region85: #{tpu_custom_call.1} parent=83 // pred_check
          %p2264 = pneg %p389
        $region86: #{tpu_custom_call.1} parent=83 // pred_check_branch
          %2266 = sbr.rel (%p2264) target = $region88
        $region87: #{tpu_custom_call.1} parent=83 // pred_region
          %2268 = vsyncadd %s2260, 0
          %s2269 = smul.addr %s30, 2
          %s2270 = scalar_lea.hbm %s16, %s2269
          %s2272 = sshll.u32 %s2263, 4
          %s2273 = int_to_ptr.vmem [resolvable:$true] %s2272
          %s2274 = sshll.u32 %s2270, 4
          %s2275 = int_to_ptr.hbm [resolvable:$true] %s2274
          %2277 = dma.vmem_to_hbm [thread:$0]  %s2273, 32, %s2275, %s2260
        $region88: #{tpu_custom_call.1} parent=83 // pred_fallthru
          _
      $region84: #{tpu_custom_call.1} parent=5 // pred_fallthru
        _
      %p2278 = scmp.le.s32.totalorder 2, %s25
      // Predicated region
      $region89: #{tpu_custom_call.1} parent=5 // pred_check
        %p2279 = pneg %p2278
      $region90: #{tpu_custom_call.1} parent=5 // pred_check_branch
        %2281 = sbr.rel (%p2279) target = $region92
      $region91: #{tpu_custom_call.1} parent=5 // pred_region
        %s2282 = ssub.s32 %s25, 2
        // Predicated region
        $region93: #{tpu_custom_call.1} parent=91 // pred_check
          %p2283 = pneg %p395
        $region94: #{tpu_custom_call.1} parent=91 // pred_check_branch
          %2285 = sbr.rel (%p2283) target = $region96
        $region95: #{tpu_custom_call.1} parent=91 // pred_region
          %s2286 = sand.u32 %s380, 1
          %s2287 = scalar_lea.sflag [#allocation3], %s2286
          %s2288 = sand.u32 %s380, 1
          %s2289 = smul.addr %s2288, 2
          %s2290 = scalar_lea.vmem [#allocation2], %s2289
          %2292 = dma.done %s2287, 32
        $region96: #{tpu_custom_call.1} parent=91 // pred_fallthru
          _
      $region92: #{tpu_custom_call.1} parent=5 // pred_fallthru
        _
    $region6: #{tpu_custom_call.1} parent=1 // loop_footer
      %s29 = sadd.s32 1, %s25
    $region7: #{tpu_custom_call.1} parent=1 // loop_footer_branch
      %24 = sbr.rel target = $region3
    $region8: #{tpu_custom_call.1} parent=1 // loop_exit
      _
    %2293 = vsyncpa [#allocation3], 1
    %s2294 = scalar_lea.sflag [#allocation3], 1
    %2295 = vsyncpa %s2294, 1

</llo_original>
